<compile_context>
chip_gen: v7x
topology: tpu7x:2x2x1
jax: 0.10.0
libtpu: 0.0.40
codegen_flags: <defaults>
</compile_context>

<pallas_src>
import jax
import jax.numpy as jnp
from jax.experimental import pallas as pl
from jax.experimental.pallas import tpu as pltpu

# ----------------------------- config ---------------------------------------
B = 2               # batch
C = 3               # input channels
IMG = 16            # image height/width
PATCH = 8           # patch size
D = 32              # hidden dim
H = 4               # attention heads
HD = D // H         # head dim
MLP = 64            # mlp dim
LAYERS = 2          # encoder layers
NUM_CLASSES = 10
NC_PAD = 128        # lane-dense padded class dim for the kernel output
NP = (IMG // PATCH) ** 2        # number of patches
SEQ = NP + 1                    # +1 cls token
CPP = C * PATCH * PATCH         # flattened patch length
EPS = 1e-6                      # torchvision ViT LayerNorm eps
TB = 1                          # batch tile per grid step (grid=(B//TB,))


# --------------------------- kernel helpers ----------------------------------
def _layer_norm(v, g, b):
    # E[x^2] - mu^2: the two cross-lane reductions are independent, so the
    # XLUs can overlap them (vs. the serial mean -> mean((x-mu)^2) chain).
    mu = jnp.mean(v, axis=-1, keepdims=True)
    var = jnp.maximum(jnp.mean(v * v, axis=-1, keepdims=True) - mu * mu, 0.0)
    return (v - mu) * jax.lax.rsqrt(var + EPS) * g + b


def _gelu_tanh(m):
    # TODO(synk): torchvision's nn.GELU default is the exact erf form; the tanh
    # approximation is used for robust Mosaic lowering (matches to ~1e-3).
    return 0.5 * m * (1.0 + jnp.tanh(0.7978845608028654 * (m + 0.044715 * m * m * m)))


# --------------------------- fused pallas kernel ------------------------------
def vit_fused_kernel(patches_ref, w_patch_ref, addend_ref,
                     ln1g_ref, ln1b_ref, wqkv_ref, bqkv_ref, wo_ref, bo_ref,
                     ln2g_ref, ln2b_ref, w1_ref, b1_ref, w2_ref, b2_ref,
                     lng_ref, lnb_ref, wh_ref, bh_ref, out_ref):
    bf16 = jnp.bfloat16

    # ---- patch embedding + cls token + positional embedding -----------------
    # addend row 0 = cls + pos[0]; rows 1.. = conv_bias + pos[i].
    emb = jnp.dot(patches_ref[0], w_patch_ref[...],
                  preferred_element_type=jnp.float32)                  # (NP, D)
    x = addend_ref[...] + jnp.concatenate(
        [jnp.zeros((1, D), jnp.float32), emb], axis=0)                 # (SEQ, D)

    # ---- transformer encoder layers (statically unrolled, VMEM-resident) ----
    # TODO(synk): for a real ViT-B config move LAYERS to an "arbitrary" grid
    # axis with per-layer weight index_maps so only the current layer's weights
    # live in VMEM (mandatory on v7x's 64 MiB VMEM).
    for l in range(LAYERS):
        # pre-LN multi-head self-attention; fused QKV projection.
        h = _layer_norm(x, ln1g_ref[l], ln1b_ref[l])                   # (SEQ, D)
        qkv = jnp.dot(h.astype(bf16), wqkv_ref[l],
                      preferred_element_type=jnp.float32) + bqkv_ref[l]  # (SEQ, 3D)
        heads = []
        for hi in range(H):
            q = qkv[:, hi * HD:(hi + 1) * HD]        # 1/sqrt(HD) folded into w_q/b_q
            k = qkv[:, D + hi * HD:D + (hi + 1) * HD]
            v = qkv[:, 2 * D + hi * HD:2 * D + (hi + 1) * HD]
            s = jax.lax.dot_general(q.astype(bf16), k.astype(bf16),
                                    (((1,), (1,)), ((), ())),
                                    preferred_element_type=jnp.float32)  # (SEQ, SEQ)
            s = s - jnp.max(s, axis=-1, keepdims=True)
            p = jnp.exp(s)
            p = p * pl.reciprocal(jnp.sum(p, axis=-1, keepdims=True), approx=True)
            heads.append(jnp.dot(p.astype(bf16), v.astype(bf16),
                                 preferred_element_type=jnp.float32))    # (SEQ, HD)
        o = jnp.concatenate(heads, axis=-1)                              # (SEQ, D)
        x = x + jnp.dot(o.astype(bf16), wo_ref[l],
                        preferred_element_type=jnp.float32) + bo_ref[l]  # residual 1

        # pre-LN MLP
        h2 = _layer_norm(x, ln2g_ref[l], ln2b_ref[l])
        m = jnp.dot(h2.astype(bf16), w1_ref[l],
                    preferred_element_type=jnp.float32) + b1_ref[l]
        m = _gelu_tanh(m)
        x = x + jnp.dot(m.astype(bf16), w2_ref[l],
                        preferred_element_type=jnp.float32) + b2_ref[l]  # residual 2

    # ---- final LayerNorm on the cls token + classification head -------------
    cls = _layer_norm(x[0:1, :], lng_ref[...], lnb_ref[...])             # (1, D)
    out_ref[0] = (jnp.dot(cls.astype(bf16), wh_ref[...],
                          preferred_element_type=jnp.float32)
                  + bh_ref[...])                                         # (1, NC_PAD)


# ----------------------------- parameters ------------------------------------
def init_params(key):
    """Synthetic weights in PyTorch-style layouts (out_features, in_features)."""
    ks = jax.random.split(key, 8)
    s = 0.02

    def nrm(k, shape):
        return jax.random.normal(k, shape, jnp.float32) * s

    return {
        "conv_w": nrm(ks[0], (D, C, PATCH, PATCH)),     # Conv2d(C, D, P, stride=P)
        "conv_b": jnp.zeros((D,), jnp.float32),
        "cls": nrm(ks[1], (1, 1, D)),
        "pos": nrm(ks[2], (1, SEQ, D)),
        "ln1_w": jnp.ones((LAYERS, D), jnp.float32),
        "ln1_b": jnp.zeros((LAYERS, D), jnp.float32),
        "in_proj_w": nrm(ks[3], (LAYERS, 3 * D, D)),
        "in_proj_b": jnp.zeros((LAYERS, 3 * D), jnp.float32),
        "out_proj_w": nrm(ks[4], (LAYERS, D, D)),
        "out_proj_b": jnp.zeros((LAYERS, D), jnp.float32),
        "ln2_w": jnp.ones((LAYERS, D), jnp.float32),
        "ln2_b": jnp.zeros((LAYERS, D), jnp.float32),
        "mlp1_w": nrm(ks[5], (LAYERS, MLP, D)),
        "mlp1_b": jnp.zeros((LAYERS, MLP), jnp.float32),
        "mlp2_w": nrm(ks[6], (LAYERS, D, MLP)),
        "mlp2_b": jnp.zeros((LAYERS, D), jnp.float32),
        "ln_w": jnp.ones((D,), jnp.float32),
        "ln_b": jnp.zeros((D,), jnp.float32),
        "head_w": nrm(ks[7], (NUM_CLASSES, D)),         # replaced nn.Linear head
        "head_b": jnp.zeros((NUM_CLASSES,), jnp.float32),
    }


def prepare_params(p):
    """One-time weight preprocessing, hoisted out of the per-call forward."""
    scale = 1.0 / (HD ** 0.5)
    bf16 = jnp.bfloat16

    # Conv2d(kernel=P, stride=P) == matmul with (c, kh, kw)-flattened patches.
    w_patch = p["conv_w"].reshape(D, CPP).T                       # (CPP, D)

    # Constant additive term: row 0 = cls + pos[0]; rows 1.. = conv_b + pos[i].
    addend = p["pos"][0] + jnp.concatenate(
        [p["cls"][0], jnp.broadcast_to(p["conv_b"][None, :], (NP, D))], axis=0)

    # Fused QKV projection (LAYERS, D, 3D); 1/sqrt(HD) folded into the q part.
    w_qkv = jnp.transpose(p["in_proj_w"], (0, 2, 1))
    w_qkv = w_qkv.at[:, :, :D].multiply(scale)
    b_qkv = p["in_proj_b"][:, None, :]
    b_qkv = b_qkv.at[:, :, :D].multiply(scale)

    return {
        "w_patch": w_patch.astype(bf16),
        "addend": addend,                                          # (SEQ, D) f32
        "ln1_g": p["ln1_w"][:, None, :],
        "ln1_b": p["ln1_b"][:, None, :],
        "w_qkv": w_qkv.astype(bf16),                               # (L, D, 3D)
        "b_qkv": b_qkv,                                            # (L, 1, 3D)
        "w_o": jnp.transpose(p["out_proj_w"], (0, 2, 1)).astype(bf16),
        "b_o": p["out_proj_b"][:, None, :],
        "ln2_g": p["ln2_w"][:, None, :],
        "ln2_b": p["ln2_b"][:, None, :],
        "w1": jnp.transpose(p["mlp1_w"], (0, 2, 1)).astype(bf16),  # (L, D, MLP)
        "b1": p["mlp1_b"][:, None, :],
        "w2": jnp.transpose(p["mlp2_w"], (0, 2, 1)).astype(bf16),  # (L, MLP, D)
        "b2": p["mlp2_b"][:, None, :],
        "ln_g": p["ln_w"][None, :],
        "ln_b": p["ln_b"][None, :],
        "w_head": jnp.pad(p["head_w"].T,
                          ((0, 0), (0, NC_PAD - NUM_CLASSES))).astype(bf16),
        "b_head": jnp.pad(p["head_b"][None, :],
                          ((0, 0), (0, NC_PAD - NUM_CLASSES))),
    }


# ----------------------------- forward ---------------------------------------
def _extract_patches(x):
    # x: (B, C, H, W) NCHW -> (B, NP, C*P*P), flatten order (c, kh, kw),
    # exactly matching Conv2d(kernel=P, stride=P) weight flattening.
    b, c, hh, ww = x.shape
    nh, nw = hh // PATCH, ww // PATCH
    x = x.reshape(b, c, nh, PATCH, nw, PATCH)
    x = x.transpose(0, 2, 4, 1, 3, 5)          # (B, nh, nw, C, P, P)
    return x.reshape(b, nh * nw, c * PATCH * PATCH)


def _replicated_spec(shape):
    zeros = (0,) * len(shape)
    return pl.BlockSpec(shape, lambda i, _z=zeros: _z)


@jax.jit
def vit_forward(x, prep):
    b = x.shape[0]
    assert b % TB == 0

    # im2col glue (input-dependent, stays inside the jit); bf16 MXU operand.
    patches = _extract_patches(x).astype(jnp.bfloat16)              # (B, NP, CPP)

    weight_args = (prep["w_patch"], prep["addend"],
                   prep["ln1_g"], prep["ln1_b"],
                   prep["w_qkv"], prep["b_qkv"], prep["w_o"], prep["b_o"],
                   prep["ln2_g"], prep["ln2_b"],
                   prep["w1"], prep["b1"], prep["w2"], prep["b2"],
                   prep["ln_g"], prep["ln_b"], prep["w_head"], prep["b_head"])

    logits = pl.pallas_call(
        vit_fused_kernel,
        out_shape=jax.ShapeDtypeStruct((b, 1, NC_PAD), jnp.float32),
        grid=(b // TB,),
        in_specs=[pl.BlockSpec((TB, NP, CPP), lambda i: (i, 0, 0))]
                 + [_replicated_spec(w.shape) for w in weight_args],
        out_specs=pl.BlockSpec((TB, 1, NC_PAD), lambda i: (i, 0, 0)),
        compiler_params=pltpu.CompilerParams(
            dimension_semantics=("parallel",)),
    )(patches, *weight_args)

    return logits[:, 0, :NUM_CLASSES]


# ------------------------------ main ------------------------------------------
if __name__ == "__main__":
    key = jax.random.PRNGKey(0)
    x = jax.random.normal(key, (B, C, IMG, IMG), jnp.float32)   # NCHW, like PyTorch
    raw_params = init_params(jax.random.PRNGKey(1))
    prep = prepare_params(raw_params)   # one-time weight prep, outside the jit

    out = vit_forward(x, prep)
    out = jax.block_until_ready(out)
    assert out.shape == (B, NUM_CLASSES), out.shape
    assert bool(jnp.all(jnp.isfinite(out)))
    print("KERNEL_OK")
</pallas_src>

<mosaic_0001>
module attributes {stable_mosaic.version = 11 : i64} {
  func.func @vit_fused_kernel(%arg0: i32, %arg1: memref<1x4x192xbf16, #tpu.memory_space<vmem>>, %arg2: memref<192x32xbf16, #tpu.memory_space<vmem>>, %arg3: memref<5x32xf32, #tpu.memory_space<vmem>>, %arg4: memref<2x1x32xf32, #tpu.memory_space<vmem>>, %arg5: memref<2x1x32xf32, #tpu.memory_space<vmem>>, %arg6: memref<2x32x96xbf16, #tpu.memory_space<vmem>>, %arg7: memref<2x1x96xf32, #tpu.memory_space<vmem>>, %arg8: memref<2x32x32xbf16, #tpu.memory_space<vmem>>, %arg9: memref<2x1x32xf32, #tpu.memory_space<vmem>>, %arg10: memref<2x1x32xf32, #tpu.memory_space<vmem>>, %arg11: memref<2x1x32xf32, #tpu.memory_space<vmem>>, %arg12: memref<2x32x64xbf16, #tpu.memory_space<vmem>>, %arg13: memref<2x1x64xf32, #tpu.memory_space<vmem>>, %arg14: memref<2x64x32xbf16, #tpu.memory_space<vmem>>, %arg15: memref<2x1x32xf32, #tpu.memory_space<vmem>>, %arg16: memref<1x32xf32, #tpu.memory_space<vmem>>, %arg17: memref<1x32xf32, #tpu.memory_space<vmem>>, %arg18: memref<32x128xbf16, #tpu.memory_space<vmem>>, %arg19: memref<1x128xf32, #tpu.memory_space<vmem>>, %arg20: memref<1x1x128xf32, #tpu.memory_space<vmem>>) attributes {dimension_semantics = [#tpu.dimension_semantics<parallel>], iteration_bounds = array<i64: 2>, scalar_prefetch = 0 : i64, scratch_operands = 0 : i64, tpu.core_type = #tpu.core_type<tc>, window_params = [{transform_indices = @transform_0, window_bounds = array<i64: 1, 4, 192>}, {pipeline_mode = #tpu.pipeline_mode<synchronous>, transform_indices = @transform_1, window_bounds = array<i64: 192, 32>}, {pipeline_mode = #tpu.pipeline_mode<synchronous>, transform_indices = @transform_2, window_bounds = array<i64: 5, 32>}, {pipeline_mode = #tpu.pipeline_mode<synchronous>, transform_indices = @transform_3, window_bounds = array<i64: 2, 1, 32>}, {pipeline_mode = #tpu.pipeline_mode<synchronous>, transform_indices = @transform_4, window_bounds = array<i64: 2, 1, 32>}, {pipeline_mode = #tpu.pipeline_mode<synchronous>, transform_indices = @transform_5, window_bounds = array<i64: 2, 32, 96>}, {pipeline_mode = #tpu.pipeline_mode<synchronous>, transform_indices = @transform_6, window_bounds = array<i64: 2, 1, 96>}, {pipeline_mode = #tpu.pipeline_mode<synchronous>, transform_indices = @transform_7, window_bounds = array<i64: 2, 32, 32>}, {pipeline_mode = #tpu.pipeline_mode<synchronous>, transform_indices = @transform_8, window_bounds = array<i64: 2, 1, 32>}, {pipeline_mode = #tpu.pipeline_mode<synchronous>, transform_indices = @transform_9, window_bounds = array<i64: 2, 1, 32>}, {pipeline_mode = #tpu.pipeline_mode<synchronous>, transform_indices = @transform_10, window_bounds = array<i64: 2, 1, 32>}, {pipeline_mode = #tpu.pipeline_mode<synchronous>, transform_indices = @transform_11, window_bounds = array<i64: 2, 32, 64>}, {pipeline_mode = #tpu.pipeline_mode<synchronous>, transform_indices = @transform_12, window_bounds = array<i64: 2, 1, 64>}, {pipeline_mode = #tpu.pipeline_mode<synchronous>, transform_indices = @transform_13, window_bounds = array<i64: 2, 64, 32>}, {pipeline_mode = #tpu.pipeline_mode<synchronous>, transform_indices = @transform_14, window_bounds = array<i64: 2, 1, 32>}, {pipeline_mode = #tpu.pipeline_mode<synchronous>, transform_indices = @transform_15, window_bounds = array<i64: 1, 32>}, {pipeline_mode = #tpu.pipeline_mode<synchronous>, transform_indices = @transform_16, window_bounds = array<i64: 1, 32>}, {pipeline_mode = #tpu.pipeline_mode<synchronous>, transform_indices = @transform_17, window_bounds = array<i64: 32, 128>}, {pipeline_mode = #tpu.pipeline_mode<synchronous>, transform_indices = @transform_18, window_bounds = array<i64: 1, 128>}, {transform_indices = @transform_19, window_bounds = array<i64: 1, 1, 128>}]} {
    %c0 = arith.constant 0 : index
    %c0_0 = arith.constant 0 : index
    %c0_1 = arith.constant 0 : index
    %0 = vector.load %arg1[%c0, %c0_0, %c0_1] : memref<1x4x192xbf16, #tpu.memory_space<vmem>>, vector<1x4x192xbf16>
    %1 = vector.shape_cast %0 : vector<1x4x192xbf16> to vector<4x192xbf16>
    %c0_2 = arith.constant 0 : index
    %c0_3 = arith.constant 0 : index
    %2 = vector.load %arg2[%c0_2, %c0_3] : memref<192x32xbf16, #tpu.memory_space<vmem>>, vector<192x32xbf16>
    %cst = arith.constant dense<0.000000e+00> : vector<4x32xf32>
    %3 = tpu.matmul %1, %2, %cst {dimension_numbers = #tpu.dot_dimension_numbers<[1], [0], [0], [1], [0, 0, 1, 1], [], []>} : vector<4x192xbf16>, vector<192x32xbf16>, vector<4x32xf32> -> vector<4x32xf32>
    %c0_4 = arith.constant 0 : index
    %c0_5 = arith.constant 0 : index
    %4 = vector.load %arg3[%c0_4, %c0_5] : memref<5x32xf32, #tpu.memory_space<vmem>>, vector<5x32xf32>
    %cst_6 = arith.constant 0.000000e+00 : f32
    %5 = vector.broadcast %cst_6 : f32 to vector<1x32xf32>
    %6 = tpu.concatenate %5, %3 in 0 : vector<1x32xf32>, vector<4x32xf32> -> vector<5x32xf32>
    %7 = arith.addf %4, %6 : vector<5x32xf32>
    %c0_7 = arith.constant 0 : index
    %c0_8 = arith.constant 0 : index
    %c0_9 = arith.constant 0 : index
    %8 = vector.load %arg4[%c0_7, %c0_8, %c0_9] : memref<2x1x32xf32, #tpu.memory_space<vmem>>, vector<1x1x32xf32>
    %9 = vector.shape_cast %8 : vector<1x1x32xf32> to vector<1x32xf32>
    %c0_10 = arith.constant 0 : index
    %c0_11 = arith.constant 0 : index
    %c0_12 = arith.constant 0 : index
    %10 = vector.load %arg5[%c0_10, %c0_11, %c0_12] : memref<2x1x32xf32, #tpu.memory_space<vmem>>, vector<1x1x32xf32>
    %11 = vector.shape_cast %10 : vector<1x1x32xf32> to vector<1x32xf32>
    %cst_13 = arith.constant dense<0.000000e+00> : vector<5xf32>
    %12 = vector.multi_reduction <add>, %7, %cst_13 [1] : vector<5x32xf32> to vector<5xf32>
    %13 = vector.shape_cast %12 : vector<5xf32> to vector<5x1xf32>
    %cst_14 = arith.constant 3.200000e+01 : f32
    %14 = vector.broadcast %cst_14 : f32 to vector<5x1xf32>
    %15 = arith.divf %13, %14 : vector<5x1xf32>
    %16 = arith.mulf %7, %7 : vector<5x32xf32>
    %cst_15 = arith.constant dense<0.000000e+00> : vector<5xf32>
    %17 = vector.multi_reduction <add>, %16, %cst_15 [1] : vector<5x32xf32> to vector<5xf32>
    %18 = vector.shape_cast %17 : vector<5xf32> to vector<5x1xf32>
    %cst_16 = arith.constant 3.200000e+01 : f32
    %19 = vector.broadcast %cst_16 : f32 to vector<5x1xf32>
    %20 = arith.divf %18, %19 : vector<5x1xf32>
    %21 = arith.mulf %15, %15 : vector<5x1xf32>
    %22 = arith.subf %20, %21 : vector<5x1xf32>
    %cst_17 = arith.constant 0.000000e+00 : f32
    %23 = vector.broadcast %cst_17 : f32 to vector<5x1xf32>
    %24 = arith.maximumf %22, %23 : vector<5x1xf32>
    %25 = vector.broadcast %15 : vector<5x1xf32> to vector<5x32xf32>
    %26 = arith.subf %7, %25 : vector<5x32xf32>
    %cst_18 = arith.constant 9.99999997E-7 : f32
    %27 = vector.broadcast %cst_18 : f32 to vector<5x1xf32>
    %28 = arith.addf %24, %27 : vector<5x1xf32>
    %29 = math.rsqrt %28 : vector<5x1xf32>
    %30 = vector.broadcast %29 : vector<5x1xf32> to vector<5x32xf32>
    %31 = arith.mulf %26, %30 : vector<5x32xf32>
    %32 = vector.broadcast %9 : vector<1x32xf32> to vector<5x32xf32>
    %33 = arith.mulf %31, %32 : vector<5x32xf32>
    %34 = vector.broadcast %11 : vector<1x32xf32> to vector<5x32xf32>
    %35 = arith.addf %33, %34 : vector<5x32xf32>
    %36 = arith.truncf %35 : vector<5x32xf32> to vector<5x32xbf16>
    %c0_19 = arith.constant 0 : index
    %c0_20 = arith.constant 0 : index
    %c0_21 = arith.constant 0 : index
    %37 = vector.load %arg6[%c0_19, %c0_20, %c0_21] : memref<2x32x96xbf16, #tpu.memory_space<vmem>>, vector<1x32x96xbf16>
    %38 = vector.shape_cast %37 : vector<1x32x96xbf16> to vector<32x96xbf16>
    %cst_22 = arith.constant dense<0.000000e+00> : vector<5x96xf32>
    %39 = tpu.matmul %36, %38, %cst_22 {dimension_numbers = #tpu.dot_dimension_numbers<[1], [0], [0], [1], [0, 0, 1, 1], [], []>} : vector<5x32xbf16>, vector<32x96xbf16>, vector<5x96xf32> -> vector<5x96xf32>
    %c0_23 = arith.constant 0 : index
    %c0_24 = arith.constant 0 : index
    %c0_25 = arith.constant 0 : index
    %40 = vector.load %arg7[%c0_23, %c0_24, %c0_25] : memref<2x1x96xf32, #tpu.memory_space<vmem>>, vector<1x1x96xf32>
    %41 = vector.shape_cast %40 : vector<1x1x96xf32> to vector<1x96xf32>
    %42 = vector.broadcast %41 : vector<1x96xf32> to vector<5x96xf32>
    %43 = arith.addf %39, %42 : vector<5x96xf32>
    %44 = vector.extract_strided_slice %43 {offsets = [0, 0], sizes = [5, 8], strides = [1, 1]} : vector<5x96xf32> to vector<5x8xf32>
    %45 = vector.extract_strided_slice %43 {offsets = [0, 32], sizes = [5, 8], strides = [1, 1]} : vector<5x96xf32> to vector<5x8xf32>
    %46 = vector.extract_strided_slice %43 {offsets = [0, 64], sizes = [5, 8], strides = [1, 1]} : vector<5x96xf32> to vector<5x8xf32>
    %47 = arith.truncf %44 : vector<5x8xf32> to vector<5x8xbf16>
    %48 = arith.truncf %45 : vector<5x8xf32> to vector<5x8xbf16>
    %cst_26 = arith.constant dense<0.000000e+00> : vector<5x5xf32>
    %49 = tpu.matmul %47, %48, %cst_26 {dimension_numbers = #tpu.dot_dimension_numbers<[1], [1], [0], [0], [0, 0, 1, 0], [], []>} : vector<5x8xbf16>, vector<5x8xbf16>, vector<5x5xf32> -> vector<5x5xf32>
    %cst_27 = arith.constant dense<0xFF800000> : vector<5xf32>
    %50 = vector.multi_reduction <maximumf>, %49, %cst_27 [1] : vector<5x5xf32> to vector<5xf32>
    %51 = vector.shape_cast %50 : vector<5xf32> to vector<5x1xf32>
    %52 = vector.broadcast %51 : vector<5x1xf32> to vector<5x5xf32>
    %53 = arith.subf %49, %52 : vector<5x5xf32>
    %54 = math.exp %53 : vector<5x5xf32>
    %cst_28 = arith.constant dense<0.000000e+00> : vector<5xf32>
    %55 = vector.multi_reduction <add>, %54, %cst_28 [1] : vector<5x5xf32> to vector<5xf32>
    %56 = vector.shape_cast %55 : vector<5xf32> to vector<5x1xf32>
    %57 = tpu.reciprocal %56 {approx = true} : vector<5x1xf32> -> vector<5x1xf32>
    %58 = vector.broadcast %57 : vector<5x1xf32> to vector<5x5xf32>
    %59 = arith.mulf %54, %58 : vector<5x5xf32>
    %60 = arith.truncf %59 : vector<5x5xf32> to vector<5x5xbf16>
    %61 = arith.truncf %46 : vector<5x8xf32> to vector<5x8xbf16>
    %cst_29 = arith.constant dense<0.000000e+00> : vector<5x8xf32>
    %62 = tpu.matmul %60, %61, %cst_29 {dimension_numbers = #tpu.dot_dimension_numbers<[1], [0], [0], [1], [0, 0, 1, 1], [], []>} : vector<5x5xbf16>, vector<5x8xbf16>, vector<5x8xf32> -> vector<5x8xf32>
    %63 = vector.extract_strided_slice %43 {offsets = [0, 8], sizes = [5, 8], strides = [1, 1]} : vector<5x96xf32> to vector<5x8xf32>
    %64 = vector.extract_strided_slice %43 {offsets = [0, 40], sizes = [5, 8], strides = [1, 1]} : vector<5x96xf32> to vector<5x8xf32>
    %65 = vector.extract_strided_slice %43 {offsets = [0, 72], sizes = [5, 8], strides = [1, 1]} : vector<5x96xf32> to vector<5x8xf32>
    %66 = arith.truncf %63 : vector<5x8xf32> to vector<5x8xbf16>
    %67 = arith.truncf %64 : vector<5x8xf32> to vector<5x8xbf16>
    %cst_30 = arith.constant dense<0.000000e+00> : vector<5x5xf32>
    %68 = tpu.matmul %66, %67, %cst_30 {dimension_numbers = #tpu.dot_dimension_numbers<[1], [1], [0], [0], [0, 0, 1, 0], [], []>} : vector<5x8xbf16>, vector<5x8xbf16>, vector<5x5xf32> -> vector<5x5xf32>
    %cst_31 = arith.constant dense<0xFF800000> : vector<5xf32>
    %69 = vector.multi_reduction <maximumf>, %68, %cst_31 [1] : vector<5x5xf32> to vector<5xf32>
    %70 = vector.shape_cast %69 : vector<5xf32> to vector<5x1xf32>
    %71 = vector.broadcast %70 : vector<5x1xf32> to vector<5x5xf32>
    %72 = arith.subf %68, %71 : vector<5x5xf32>
    %73 = math.exp %72 : vector<5x5xf32>
    %cst_32 = arith.constant dense<0.000000e+00> : vector<5xf32>
    %74 = vector.multi_reduction <add>, %73, %cst_32 [1] : vector<5x5xf32> to vector<5xf32>
    %75 = vector.shape_cast %74 : vector<5xf32> to vector<5x1xf32>
    %76 = tpu.reciprocal %75 {approx = true} : vector<5x1xf32> -> vector<5x1xf32>
    %77 = vector.broadcast %76 : vector<5x1xf32> to vector<5x5xf32>
    %78 = arith.mulf %73, %77 : vector<5x5xf32>
    %79 = arith.truncf %78 : vector<5x5xf32> to vector<5x5xbf16>
    %80 = arith.truncf %65 : vector<5x8xf32> to vector<5x8xbf16>
    %cst_33 = arith.constant dense<0.000000e+00> : vector<5x8xf32>
    %81 = tpu.matmul %79, %80, %cst_33 {dimension_numbers = #tpu.dot_dimension_numbers<[1], [0], [0], [1], [0, 0, 1, 1], [], []>} : vector<5x5xbf16>, vector<5x8xbf16>, vector<5x8xf32> -> vector<5x8xf32>
    %82 = vector.extract_strided_slice %43 {offsets = [0, 16], sizes = [5, 8], strides = [1, 1]} : vector<5x96xf32> to vector<5x8xf32>
    %83 = vector.extract_strided_slice %43 {offsets = [0, 48], sizes = [5, 8], strides = [1, 1]} : vector<5x96xf32> to vector<5x8xf32>
    %84 = vector.extract_strided_slice %43 {offsets = [0, 80], sizes = [5, 8], strides = [1, 1]} : vector<5x96xf32> to vector<5x8xf32>
    %85 = arith.truncf %82 : vector<5x8xf32> to vector<5x8xbf16>
    %86 = arith.truncf %83 : vector<5x8xf32> to vector<5x8xbf16>
    %cst_34 = arith.constant dense<0.000000e+00> : vector<5x5xf32>
    %87 = tpu.matmul %85, %86, %cst_34 {dimension_numbers = #tpu.dot_dimension_numbers<[1], [1], [0], [0], [0, 0, 1, 0], [], []>} : vector<5x8xbf16>, vector<5x8xbf16>, vector<5x5xf32> -> vector<5x5xf32>
    %cst_35 = arith.constant dense<0xFF800000> : vector<5xf32>
    %88 = vector.multi_reduction <maximumf>, %87, %cst_35 [1] : vector<5x5xf32> to vector<5xf32>
    %89 = vector.shape_cast %88 : vector<5xf32> to vector<5x1xf32>
    %90 = vector.broadcast %89 : vector<5x1xf32> to vector<5x5xf32>
    %91 = arith.subf %87, %90 : vector<5x5xf32>
    %92 = math.exp %91 : vector<5x5xf32>
    %cst_36 = arith.constant dense<0.000000e+00> : vector<5xf32>
    %93 = vector.multi_reduction <add>, %92, %cst_36 [1] : vector<5x5xf32> to vector<5xf32>
    %94 = vector.shape_cast %93 : vector<5xf32> to vector<5x1xf32>
    %95 = tpu.reciprocal %94 {approx = true} : vector<5x1xf32> -> vector<5x1xf32>
    %96 = vector.broadcast %95 : vector<5x1xf32> to vector<5x5xf32>
    %97 = arith.mulf %92, %96 : vector<5x5xf32>
    %98 = arith.truncf %97 : vector<5x5xf32> to vector<5x5xbf16>
    %99 = arith.truncf %84 : vector<5x8xf32> to vector<5x8xbf16>
    %cst_37 = arith.constant dense<0.000000e+00> : vector<5x8xf32>
    %100 = tpu.matmul %98, %99, %cst_37 {dimension_numbers = #tpu.dot_dimension_numbers<[1], [0], [0], [1], [0, 0, 1, 1], [], []>} : vector<5x5xbf16>, vector<5x8xbf16>, vector<5x8xf32> -> vector<5x8xf32>
    %101 = vector.extract_strided_slice %43 {offsets = [0, 24], sizes = [5, 8], strides = [1, 1]} : vector<5x96xf32> to vector<5x8xf32>
    %102 = vector.extract_strided_slice %43 {offsets = [0, 56], sizes = [5, 8], strides = [1, 1]} : vector<5x96xf32> to vector<5x8xf32>
    %103 = vector.extract_strided_slice %43 {offsets = [0, 88], sizes = [5, 8], strides = [1, 1]} : vector<5x96xf32> to vector<5x8xf32>
    %104 = arith.truncf %101 : vector<5x8xf32> to vector<5x8xbf16>
    %105 = arith.truncf %102 : vector<5x8xf32> to vector<5x8xbf16>
    %cst_38 = arith.constant dense<0.000000e+00> : vector<5x5xf32>
    %106 = tpu.matmul %104, %105, %cst_38 {dimension_numbers = #tpu.dot_dimension_numbers<[1], [1], [0], [0], [0, 0, 1, 0], [], []>} : vector<5x8xbf16>, vector<5x8xbf16>, vector<5x5xf32> -> vector<5x5xf32>
    %cst_39 = arith.constant dense<0xFF800000> : vector<5xf32>
    %107 = vector.multi_reduction <maximumf>, %106, %cst_39 [1] : vector<5x5xf32> to vector<5xf32>
    %108 = vector.shape_cast %107 : vector<5xf32> to vector<5x1xf32>
    %109 = vector.broadcast %108 : vector<5x1xf32> to vector<5x5xf32>
    %110 = arith.subf %106, %109 : vector<5x5xf32>
    %111 = math.exp %110 : vector<5x5xf32>
    %cst_40 = arith.constant dense<0.000000e+00> : vector<5xf32>
    %112 = vector.multi_reduction <add>, %111, %cst_40 [1] : vector<5x5xf32> to vector<5xf32>
    %113 = vector.shape_cast %112 : vector<5xf32> to vector<5x1xf32>
    %114 = tpu.reciprocal %113 {approx = true} : vector<5x1xf32> -> vector<5x1xf32>
    %115 = vector.broadcast %114 : vector<5x1xf32> to vector<5x5xf32>
    %116 = arith.mulf %111, %115 : vector<5x5xf32>
    %117 = arith.truncf %116 : vector<5x5xf32> to vector<5x5xbf16>
    %118 = arith.truncf %103 : vector<5x8xf32> to vector<5x8xbf16>
    %cst_41 = arith.constant dense<0.000000e+00> : vector<5x8xf32>
    %119 = tpu.matmul %117, %118, %cst_41 {dimension_numbers = #tpu.dot_dimension_numbers<[1], [0], [0], [1], [0, 0, 1, 1], [], []>} : vector<5x5xbf16>, vector<5x8xbf16>, vector<5x8xf32> -> vector<5x8xf32>
    %120 = tpu.concatenate %62, %81, %100, %119 in 1 : vector<5x8xf32>, vector<5x8xf32>, vector<5x8xf32>, vector<5x8xf32> -> vector<5x32xf32>
    %121 = arith.truncf %120 : vector<5x32xf32> to vector<5x32xbf16>
    %c0_42 = arith.constant 0 : index
    %c0_43 = arith.constant 0 : index
    %c0_44 = arith.constant 0 : index
    %122 = vector.load %arg8[%c0_42, %c0_43, %c0_44] : memref<2x32x32xbf16, #tpu.memory_space<vmem>>, vector<1x32x32xbf16>
    %123 = vector.shape_cast %122 : vector<1x32x32xbf16> to vector<32x32xbf16>
    %cst_45 = arith.constant dense<0.000000e+00> : vector<5x32xf32>
    %124 = tpu.matmul %121, %123, %cst_45 {dimension_numbers = #tpu.dot_dimension_numbers<[1], [0], [0], [1], [0, 0, 1, 1], [], []>} : vector<5x32xbf16>, vector<32x32xbf16>, vector<5x32xf32> -> vector<5x32xf32>
    %125 = arith.addf %7, %124 : vector<5x32xf32>
    %c0_46 = arith.constant 0 : index
    %c0_47 = arith.constant 0 : index
    %c0_48 = arith.constant 0 : index
    %126 = vector.load %arg9[%c0_46, %c0_47, %c0_48] : memref<2x1x32xf32, #tpu.memory_space<vmem>>, vector<1x1x32xf32>
    %127 = vector.shape_cast %126 : vector<1x1x32xf32> to vector<1x32xf32>
    %128 = vector.broadcast %127 : vector<1x32xf32> to vector<5x32xf32>
    %129 = arith.addf %125, %128 : vector<5x32xf32>
    %c0_49 = arith.constant 0 : index
    %c0_50 = arith.constant 0 : index
    %c0_51 = arith.constant 0 : index
    %130 = vector.load %arg10[%c0_49, %c0_50, %c0_51] : memref<2x1x32xf32, #tpu.memory_space<vmem>>, vector<1x1x32xf32>
    %131 = vector.shape_cast %130 : vector<1x1x32xf32> to vector<1x32xf32>
    %c0_52 = arith.constant 0 : index
    %c0_53 = arith.constant 0 : index
    %c0_54 = arith.constant 0 : index
    %132 = vector.load %arg11[%c0_52, %c0_53, %c0_54] : memref<2x1x32xf32, #tpu.memory_space<vmem>>, vector<1x1x32xf32>
    %133 = vector.shape_cast %132 : vector<1x1x32xf32> to vector<1x32xf32>
    %cst_55 = arith.constant dense<0.000000e+00> : vector<5xf32>
    %134 = vector.multi_reduction <add>, %129, %cst_55 [1] : vector<5x32xf32> to vector<5xf32>
    %135 = vector.shape_cast %134 : vector<5xf32> to vector<5x1xf32>
    %cst_56 = arith.constant 3.200000e+01 : f32
    %136 = vector.broadcast %cst_56 : f32 to vector<5x1xf32>
    %137 = arith.divf %135, %136 : vector<5x1xf32>
    %138 = arith.mulf %129, %129 : vector<5x32xf32>
    %cst_57 = arith.constant dense<0.000000e+00> : vector<5xf32>
    %139 = vector.multi_reduction <add>, %138, %cst_57 [1] : vector<5x32xf32> to vector<5xf32>
    %140 = vector.shape_cast %139 : vector<5xf32> to vector<5x1xf32>
    %cst_58 = arith.constant 3.200000e+01 : f32
    %141 = vector.broadcast %cst_58 : f32 to vector<5x1xf32>
    %142 = arith.divf %140, %141 : vector<5x1xf32>
    %143 = arith.mulf %137, %137 : vector<5x1xf32>
    %144 = arith.subf %142, %143 : vector<5x1xf32>
    %cst_59 = arith.constant 0.000000e+00 : f32
    %145 = vector.broadcast %cst_59 : f32 to vector<5x1xf32>
    %146 = arith.maximumf %144, %145 : vector<5x1xf32>
    %147 = vector.broadcast %137 : vector<5x1xf32> to vector<5x32xf32>
    %148 = arith.subf %129, %147 : vector<5x32xf32>
    %cst_60 = arith.constant 9.99999997E-7 : f32
    %149 = vector.broadcast %cst_60 : f32 to vector<5x1xf32>
    %150 = arith.addf %146, %149 : vector<5x1xf32>
    %151 = math.rsqrt %150 : vector<5x1xf32>
    %152 = vector.broadcast %151 : vector<5x1xf32> to vector<5x32xf32>
    %153 = arith.mulf %148, %152 : vector<5x32xf32>
    %154 = vector.broadcast %131 : vector<1x32xf32> to vector<5x32xf32>
    %155 = arith.mulf %153, %154 : vector<5x32xf32>
    %156 = vector.broadcast %133 : vector<1x32xf32> to vector<5x32xf32>
    %157 = arith.addf %155, %156 : vector<5x32xf32>
    %158 = arith.truncf %157 : vector<5x32xf32> to vector<5x32xbf16>
    %c0_61 = arith.constant 0 : index
    %c0_62 = arith.constant 0 : index
    %c0_63 = arith.constant 0 : index
    %159 = vector.load %arg12[%c0_61, %c0_62, %c0_63] : memref<2x32x64xbf16, #tpu.memory_space<vmem>>, vector<1x32x64xbf16>
    %160 = vector.shape_cast %159 : vector<1x32x64xbf16> to vector<32x64xbf16>
    %cst_64 = arith.constant dense<0.000000e+00> : vector<5x64xf32>
    %161 = tpu.matmul %158, %160, %cst_64 {dimension_numbers = #tpu.dot_dimension_numbers<[1], [0], [0], [1], [0, 0, 1, 1], [], []>} : vector<5x32xbf16>, vector<32x64xbf16>, vector<5x64xf32> -> vector<5x64xf32>
    %c0_65 = arith.constant 0 : index
    %c0_66 = arith.constant 0 : index
    %c0_67 = arith.constant 0 : index
    %162 = vector.load %arg13[%c0_65, %c0_66, %c0_67] : memref<2x1x64xf32, #tpu.memory_space<vmem>>, vector<1x1x64xf32>
    %163 = vector.shape_cast %162 : vector<1x1x64xf32> to vector<1x64xf32>
    %164 = vector.broadcast %163 : vector<1x64xf32> to vector<5x64xf32>
    %165 = arith.addf %161, %164 : vector<5x64xf32>
    %cst_68 = arith.constant 5.000000e-01 : f32
    %166 = vector.broadcast %cst_68 : f32 to vector<5x64xf32>
    %167 = arith.mulf %166, %165 : vector<5x64xf32>
    %cst_69 = arith.constant 4.471500e-02 : f32
    %168 = vector.broadcast %cst_69 : f32 to vector<5x64xf32>
    %169 = arith.mulf %168, %165 : vector<5x64xf32>
    %170 = arith.mulf %169, %165 : vector<5x64xf32>
    %171 = arith.mulf %170, %165 : vector<5x64xf32>
    %172 = arith.addf %165, %171 : vector<5x64xf32>
    %cst_70 = arith.constant 0.797884583 : f32
    %173 = vector.broadcast %cst_70 : f32 to vector<5x64xf32>
    %174 = arith.mulf %173, %172 : vector<5x64xf32>
    %175 = math.tanh %174 : vector<5x64xf32>
    %cst_71 = arith.constant 1.000000e+00 : f32
    %176 = vector.broadcast %cst_71 : f32 to vector<5x64xf32>
    %177 = arith.addf %176, %175 : vector<5x64xf32>
    %178 = arith.mulf %167, %177 : vector<5x64xf32>
    %179 = arith.truncf %178 : vector<5x64xf32> to vector<5x64xbf16>
    %c0_72 = arith.constant 0 : index
    %c0_73 = arith.constant 0 : index
    %c0_74 = arith.constant 0 : index
    %180 = vector.load %arg14[%c0_72, %c0_73, %c0_74] : memref<2x64x32xbf16, #tpu.memory_space<vmem>>, vector<1x64x32xbf16>
    %181 = vector.shape_cast %180 : vector<1x64x32xbf16> to vector<64x32xbf16>
    %cst_75 = arith.constant dense<0.000000e+00> : vector<5x32xf32>
    %182 = tpu.matmul %179, %181, %cst_75 {dimension_numbers = #tpu.dot_dimension_numbers<[1], [0], [0], [1], [0, 0, 1, 1], [], []>} : vector<5x64xbf16>, vector<64x32xbf16>, vector<5x32xf32> -> vector<5x32xf32>
    %183 = arith.addf %129, %182 : vector<5x32xf32>
    %c0_76 = arith.constant 0 : index
    %c0_77 = arith.constant 0 : index
    %c0_78 = arith.constant 0 : index
    %184 = vector.load %arg15[%c0_76, %c0_77, %c0_78] : memref<2x1x32xf32, #tpu.memory_space<vmem>>, vector<1x1x32xf32>
    %185 = vector.shape_cast %184 : vector<1x1x32xf32> to vector<1x32xf32>
    %186 = vector.broadcast %185 : vector<1x32xf32> to vector<5x32xf32>
    %187 = arith.addf %183, %186 : vector<5x32xf32>
    %c1 = arith.constant 1 : index
    %c0_79 = arith.constant 0 : index
    %c0_80 = arith.constant 0 : index
    %188 = vector.load %arg4[%c1, %c0_79, %c0_80] : memref<2x1x32xf32, #tpu.memory_space<vmem>>, vector<1x1x32xf32>
    %189 = vector.shape_cast %188 : vector<1x1x32xf32> to vector<1x32xf32>
    %c1_81 = arith.constant 1 : index
    %c0_82 = arith.constant 0 : index
    %c0_83 = arith.constant 0 : index
    %190 = vector.load %arg5[%c1_81, %c0_82, %c0_83] : memref<2x1x32xf32, #tpu.memory_space<vmem>>, vector<1x1x32xf32>
    %191 = vector.shape_cast %190 : vector<1x1x32xf32> to vector<1x32xf32>
    %cst_84 = arith.constant dense<0.000000e+00> : vector<5xf32>
    %192 = vector.multi_reduction <add>, %187, %cst_84 [1] : vector<5x32xf32> to vector<5xf32>
    %193 = vector.shape_cast %192 : vector<5xf32> to vector<5x1xf32>
    %cst_85 = arith.constant 3.200000e+01 : f32
    %194 = vector.broadcast %cst_85 : f32 to vector<5x1xf32>
    %195 = arith.divf %193, %194 : vector<5x1xf32>
    %196 = arith.mulf %187, %187 : vector<5x32xf32>
    %cst_86 = arith.constant dense<0.000000e+00> : vector<5xf32>
    %197 = vector.multi_reduction <add>, %196, %cst_86 [1] : vector<5x32xf32> to vector<5xf32>
    %198 = vector.shape_cast %197 : vector<5xf32> to vector<5x1xf32>
    %cst_87 = arith.constant 3.200000e+01 : f32
    %199 = vector.broadcast %cst_87 : f32 to vector<5x1xf32>
    %200 = arith.divf %198, %199 : vector<5x1xf32>
    %201 = arith.mulf %195, %195 : vector<5x1xf32>
    %202 = arith.subf %200, %201 : vector<5x1xf32>
    %cst_88 = arith.constant 0.000000e+00 : f32
    %203 = vector.broadcast %cst_88 : f32 to vector<5x1xf32>
    %204 = arith.maximumf %202, %203 : vector<5x1xf32>
    %205 = vector.broadcast %195 : vector<5x1xf32> to vector<5x32xf32>
    %206 = arith.subf %187, %205 : vector<5x32xf32>
    %cst_89 = arith.constant 9.99999997E-7 : f32
    %207 = vector.broadcast %cst_89 : f32 to vector<5x1xf32>
    %208 = arith.addf %204, %207 : vector<5x1xf32>
    %209 = math.rsqrt %208 : vector<5x1xf32>
    %210 = vector.broadcast %209 : vector<5x1xf32> to vector<5x32xf32>
    %211 = arith.mulf %206, %210 : vector<5x32xf32>
    %212 = vector.broadcast %189 : vector<1x32xf32> to vector<5x32xf32>
    %213 = arith.mulf %211, %212 : vector<5x32xf32>
    %214 = vector.broadcast %191 : vector<1x32xf32> to vector<5x32xf32>
    %215 = arith.addf %213, %214 : vector<5x32xf32>
    %216 = arith.truncf %215 : vector<5x32xf32> to vector<5x32xbf16>
    %c1_90 = arith.constant 1 : index
    %c0_91 = arith.constant 0 : index
    %c0_92 = arith.constant 0 : index
    %217 = vector.load %arg6[%c1_90, %c0_91, %c0_92] : memref<2x32x96xbf16, #tpu.memory_space<vmem>>, vector<1x32x96xbf16>
    %218 = vector.shape_cast %217 : vector<1x32x96xbf16> to vector<32x96xbf16>
    %cst_93 = arith.constant dense<0.000000e+00> : vector<5x96xf32>
    %219 = tpu.matmul %216, %218, %cst_93 {dimension_numbers = #tpu.dot_dimension_numbers<[1], [0], [0], [1], [0, 0, 1, 1], [], []>} : vector<5x32xbf16>, vector<32x96xbf16>, vector<5x96xf32> -> vector<5x96xf32>
    %c1_94 = arith.constant 1 : index
    %c0_95 = arith.constant 0 : index
    %c0_96 = arith.constant 0 : index
    %220 = vector.load %arg7[%c1_94, %c0_95, %c0_96] : memref<2x1x96xf32, #tpu.memory_space<vmem>>, vector<1x1x96xf32>
    %221 = vector.shape_cast %220 : vector<1x1x96xf32> to vector<1x96xf32>
    %222 = vector.broadcast %221 : vector<1x96xf32> to vector<5x96xf32>
    %223 = arith.addf %219, %222 : vector<5x96xf32>
    %224 = vector.extract_strided_slice %223 {offsets = [0, 0], sizes = [5, 8], strides = [1, 1]} : vector<5x96xf32> to vector<5x8xf32>
    %225 = vector.extract_strided_slice %223 {offsets = [0, 32], sizes = [5, 8], strides = [1, 1]} : vector<5x96xf32> to vector<5x8xf32>
    %226 = vector.extract_strided_slice %223 {offsets = [0, 64], sizes = [5, 8], strides = [1, 1]} : vector<5x96xf32> to vector<5x8xf32>
    %227 = arith.truncf %224 : vector<5x8xf32> to vector<5x8xbf16>
    %228 = arith.truncf %225 : vector<5x8xf32> to vector<5x8xbf16>
    %cst_97 = arith.constant dense<0.000000e+00> : vector<5x5xf32>
    %229 = tpu.matmul %227, %228, %cst_97 {dimension_numbers = #tpu.dot_dimension_numbers<[1], [1], [0], [0], [0, 0, 1, 0], [], []>} : vector<5x8xbf16>, vector<5x8xbf16>, vector<5x5xf32> -> vector<5x5xf32>
    %cst_98 = arith.constant dense<0xFF800000> : vector<5xf32>
    %230 = vector.multi_reduction <maximumf>, %229, %cst_98 [1] : vector<5x5xf32> to vector<5xf32>
    %231 = vector.shape_cast %230 : vector<5xf32> to vector<5x1xf32>
    %232 = vector.broadcast %231 : vector<5x1xf32> to vector<5x5xf32>
    %233 = arith.subf %229, %232 : vector<5x5xf32>
    %234 = math.exp %233 : vector<5x5xf32>
    %cst_99 = arith.constant dense<0.000000e+00> : vector<5xf32>
    %235 = vector.multi_reduction <add>, %234, %cst_99 [1] : vector<5x5xf32> to vector<5xf32>
    %236 = vector.shape_cast %235 : vector<5xf32> to vector<5x1xf32>
    %237 = tpu.reciprocal %236 {approx = true} : vector<5x1xf32> -> vector<5x1xf32>
    %238 = vector.broadcast %237 : vector<5x1xf32> to vector<5x5xf32>
    %239 = arith.mulf %234, %238 : vector<5x5xf32>
    %240 = arith.truncf %239 : vector<5x5xf32> to vector<5x5xbf16>
    %241 = arith.truncf %226 : vector<5x8xf32> to vector<5x8xbf16>
    %cst_100 = arith.constant dense<0.000000e+00> : vector<5x8xf32>
    %242 = tpu.matmul %240, %241, %cst_100 {dimension_numbers = #tpu.dot_dimension_numbers<[1], [0], [0], [1], [0, 0, 1, 1], [], []>} : vector<5x5xbf16>, vector<5x8xbf16>, vector<5x8xf32> -> vector<5x8xf32>
    %243 = vector.extract_strided_slice %223 {offsets = [0, 8], sizes = [5, 8], strides = [1, 1]} : vector<5x96xf32> to vector<5x8xf32>
    %244 = vector.extract_strided_slice %223 {offsets = [0, 40], sizes = [5, 8], strides = [1, 1]} : vector<5x96xf32> to vector<5x8xf32>
    %245 = vector.extract_strided_slice %223 {offsets = [0, 72], sizes = [5, 8], strides = [1, 1]} : vector<5x96xf32> to vector<5x8xf32>
    %246 = arith.truncf %243 : vector<5x8xf32> to vector<5x8xbf16>
    %247 = arith.truncf %244 : vector<5x8xf32> to vector<5x8xbf16>
    %cst_101 = arith.constant dense<0.000000e+00> : vector<5x5xf32>
    %248 = tpu.matmul %246, %247, %cst_101 {dimension_numbers = #tpu.dot_dimension_numbers<[1], [1], [0], [0], [0, 0, 1, 0], [], []>} : vector<5x8xbf16>, vector<5x8xbf16>, vector<5x5xf32> -> vector<5x5xf32>
    %cst_102 = arith.constant dense<0xFF800000> : vector<5xf32>
    %249 = vector.multi_reduction <maximumf>, %248, %cst_102 [1] : vector<5x5xf32> to vector<5xf32>
    %250 = vector.shape_cast %249 : vector<5xf32> to vector<5x1xf32>
    %251 = vector.broadcast %250 : vector<5x1xf32> to vector<5x5xf32>
    %252 = arith.subf %248, %251 : vector<5x5xf32>
    %253 = math.exp %252 : vector<5x5xf32>
    %cst_103 = arith.constant dense<0.000000e+00> : vector<5xf32>
    %254 = vector.multi_reduction <add>, %253, %cst_103 [1] : vector<5x5xf32> to vector<5xf32>
    %255 = vector.shape_cast %254 : vector<5xf32> to vector<5x1xf32>
    %256 = tpu.reciprocal %255 {approx = true} : vector<5x1xf32> -> vector<5x1xf32>
    %257 = vector.broadcast %256 : vector<5x1xf32> to vector<5x5xf32>
    %258 = arith.mulf %253, %257 : vector<5x5xf32>
    %259 = arith.truncf %258 : vector<5x5xf32> to vector<5x5xbf16>
    %260 = arith.truncf %245 : vector<5x8xf32> to vector<5x8xbf16>
    %cst_104 = arith.constant dense<0.000000e+00> : vector<5x8xf32>
    %261 = tpu.matmul %259, %260, %cst_104 {dimension_numbers = #tpu.dot_dimension_numbers<[1], [0], [0], [1], [0, 0, 1, 1], [], []>} : vector<5x5xbf16>, vector<5x8xbf16>, vector<5x8xf32> -> vector<5x8xf32>
    %262 = vector.extract_strided_slice %223 {offsets = [0, 16], sizes = [5, 8], strides = [1, 1]} : vector<5x96xf32> to vector<5x8xf32>
    %263 = vector.extract_strided_slice %223 {offsets = [0, 48], sizes = [5, 8], strides = [1, 1]} : vector<5x96xf32> to vector<5x8xf32>
    %264 = vector.extract_strided_slice %223 {offsets = [0, 80], sizes = [5, 8], strides = [1, 1]} : vector<5x96xf32> to vector<5x8xf32>
    %265 = arith.truncf %262 : vector<5x8xf32> to vector<5x8xbf16>
    %266 = arith.truncf %263 : vector<5x8xf32> to vector<5x8xbf16>
    %cst_105 = arith.constant dense<0.000000e+00> : vector<5x5xf32>
    %267 = tpu.matmul %265, %266, %cst_105 {dimension_numbers = #tpu.dot_dimension_numbers<[1], [1], [0], [0], [0, 0, 1, 0], [], []>} : vector<5x8xbf16>, vector<5x8xbf16>, vector<5x5xf32> -> vector<5x5xf32>
    %cst_106 = arith.constant dense<0xFF800000> : vector<5xf32>
    %268 = vector.multi_reduction <maximumf>, %267, %cst_106 [1] : vector<5x5xf32> to vector<5xf32>
    %269 = vector.shape_cast %268 : vector<5xf32> to vector<5x1xf32>
    %270 = vector.broadcast %269 : vector<5x1xf32> to vector<5x5xf32>
    %271 = arith.subf %267, %270 : vector<5x5xf32>
    %272 = math.exp %271 : vector<5x5xf32>
    %cst_107 = arith.constant dense<0.000000e+00> : vector<5xf32>
    %273 = vector.multi_reduction <add>, %272, %cst_107 [1] : vector<5x5xf32> to vector<5xf32>
    %274 = vector.shape_cast %273 : vector<5xf32> to vector<5x1xf32>
    %275 = tpu.reciprocal %274 {approx = true} : vector<5x1xf32> -> vector<5x1xf32>
    %276 = vector.broadcast %275 : vector<5x1xf32> to vector<5x5xf32>
    %277 = arith.mulf %272, %276 : vector<5x5xf32>
    %278 = arith.truncf %277 : vector<5x5xf32> to vector<5x5xbf16>
    %279 = arith.truncf %264 : vector<5x8xf32> to vector<5x8xbf16>
    %cst_108 = arith.constant dense<0.000000e+00> : vector<5x8xf32>
    %280 = tpu.matmul %278, %279, %cst_108 {dimension_numbers = #tpu.dot_dimension_numbers<[1], [0], [0], [1], [0, 0, 1, 1], [], []>} : vector<5x5xbf16>, vector<5x8xbf16>, vector<5x8xf32> -> vector<5x8xf32>
    %281 = vector.extract_strided_slice %223 {offsets = [0, 24], sizes = [5, 8], strides = [1, 1]} : vector<5x96xf32> to vector<5x8xf32>
    %282 = vector.extract_strided_slice %223 {offsets = [0, 56], sizes = [5, 8], strides = [1, 1]} : vector<5x96xf32> to vector<5x8xf32>
    %283 = vector.extract_strided_slice %223 {offsets = [0, 88], sizes = [5, 8], strides = [1, 1]} : vector<5x96xf32> to vector<5x8xf32>
    %284 = arith.truncf %281 : vector<5x8xf32> to vector<5x8xbf16>
    %285 = arith.truncf %282 : vector<5x8xf32> to vector<5x8xbf16>
    %cst_109 = arith.constant dense<0.000000e+00> : vector<5x5xf32>
    %286 = tpu.matmul %284, %285, %cst_109 {dimension_numbers = #tpu.dot_dimension_numbers<[1], [1], [0], [0], [0, 0, 1, 0], [], []>} : vector<5x8xbf16>, vector<5x8xbf16>, vector<5x5xf32> -> vector<5x5xf32>
    %cst_110 = arith.constant dense<0xFF800000> : vector<5xf32>
    %287 = vector.multi_reduction <maximumf>, %286, %cst_110 [1] : vector<5x5xf32> to vector<5xf32>
    %288 = vector.shape_cast %287 : vector<5xf32> to vector<5x1xf32>
    %289 = vector.broadcast %288 : vector<5x1xf32> to vector<5x5xf32>
    %290 = arith.subf %286, %289 : vector<5x5xf32>
    %291 = math.exp %290 : vector<5x5xf32>
    %cst_111 = arith.constant dense<0.000000e+00> : vector<5xf32>
    %292 = vector.multi_reduction <add>, %291, %cst_111 [1] : vector<5x5xf32> to vector<5xf32>
    %293 = vector.shape_cast %292 : vector<5xf32> to vector<5x1xf32>
    %294 = tpu.reciprocal %293 {approx = true} : vector<5x1xf32> -> vector<5x1xf32>
    %295 = vector.broadcast %294 : vector<5x1xf32> to vector<5x5xf32>
    %296 = arith.mulf %291, %295 : vector<5x5xf32>
    %297 = arith.truncf %296 : vector<5x5xf32> to vector<5x5xbf16>
    %298 = arith.truncf %283 : vector<5x8xf32> to vector<5x8xbf16>
    %cst_112 = arith.constant dense<0.000000e+00> : vector<5x8xf32>
    %299 = tpu.matmul %297, %298, %cst_112 {dimension_numbers = #tpu.dot_dimension_numbers<[1], [0], [0], [1], [0, 0, 1, 1], [], []>} : vector<5x5xbf16>, vector<5x8xbf16>, vector<5x8xf32> -> vector<5x8xf32>
    %300 = tpu.concatenate %242, %261, %280, %299 in 1 : vector<5x8xf32>, vector<5x8xf32>, vector<5x8xf32>, vector<5x8xf32> -> vector<5x32xf32>
    %301 = arith.truncf %300 : vector<5x32xf32> to vector<5x32xbf16>
    %c1_113 = arith.constant 1 : index
    %c0_114 = arith.constant 0 : index
    %c0_115 = arith.constant 0 : index
    %302 = vector.load %arg8[%c1_113, %c0_114, %c0_115] : memref<2x32x32xbf16, #tpu.memory_space<vmem>>, vector<1x32x32xbf16>
    %303 = vector.shape_cast %302 : vector<1x32x32xbf16> to vector<32x32xbf16>
    %cst_116 = arith.constant dense<0.000000e+00> : vector<5x32xf32>
    %304 = tpu.matmul %301, %303, %cst_116 {dimension_numbers = #tpu.dot_dimension_numbers<[1], [0], [0], [1], [0, 0, 1, 1], [], []>} : vector<5x32xbf16>, vector<32x32xbf16>, vector<5x32xf32> -> vector<5x32xf32>
    %305 = arith.addf %187, %304 : vector<5x32xf32>
    %c1_117 = arith.constant 1 : index
    %c0_118 = arith.constant 0 : index
    %c0_119 = arith.constant 0 : index
    %306 = vector.load %arg9[%c1_117, %c0_118, %c0_119] : memref<2x1x32xf32, #tpu.memory_space<vmem>>, vector<1x1x32xf32>
    %307 = vector.shape_cast %306 : vector<1x1x32xf32> to vector<1x32xf32>
    %308 = vector.broadcast %307 : vector<1x32xf32> to vector<5x32xf32>
    %309 = arith.addf %305, %308 : vector<5x32xf32>
    %c1_120 = arith.constant 1 : index
    %c0_121 = arith.constant 0 : index
    %c0_122 = arith.constant 0 : index
    %310 = vector.load %arg10[%c1_120, %c0_121, %c0_122] : memref<2x1x32xf32, #tpu.memory_space<vmem>>, vector<1x1x32xf32>
    %311 = vector.shape_cast %310 : vector<1x1x32xf32> to vector<1x32xf32>
    %c1_123 = arith.constant 1 : index
    %c0_124 = arith.constant 0 : index
    %c0_125 = arith.constant 0 : index
    %312 = vector.load %arg11[%c1_123, %c0_124, %c0_125] : memref<2x1x32xf32, #tpu.memory_space<vmem>>, vector<1x1x32xf32>
    %313 = vector.shape_cast %312 : vector<1x1x32xf32> to vector<1x32xf32>
    %cst_126 = arith.constant dense<0.000000e+00> : vector<5xf32>
    %314 = vector.multi_reduction <add>, %309, %cst_126 [1] : vector<5x32xf32> to vector<5xf32>
    %315 = vector.shape_cast %314 : vector<5xf32> to vector<5x1xf32>
    %cst_127 = arith.constant 3.200000e+01 : f32
    %316 = vector.broadcast %cst_127 : f32 to vector<5x1xf32>
    %317 = arith.divf %315, %316 : vector<5x1xf32>
    %318 = arith.mulf %309, %309 : vector<5x32xf32>
    %cst_128 = arith.constant dense<0.000000e+00> : vector<5xf32>
    %319 = vector.multi_reduction <add>, %318, %cst_128 [1] : vector<5x32xf32> to vector<5xf32>
    %320 = vector.shape_cast %319 : vector<5xf32> to vector<5x1xf32>
    %cst_129 = arith.constant 3.200000e+01 : f32
    %321 = vector.broadcast %cst_129 : f32 to vector<5x1xf32>
    %322 = arith.divf %320, %321 : vector<5x1xf32>
    %323 = arith.mulf %317, %317 : vector<5x1xf32>
    %324 = arith.subf %322, %323 : vector<5x1xf32>
    %cst_130 = arith.constant 0.000000e+00 : f32
    %325 = vector.broadcast %cst_130 : f32 to vector<5x1xf32>
    %326 = arith.maximumf %324, %325 : vector<5x1xf32>
    %327 = vector.broadcast %317 : vector<5x1xf32> to vector<5x32xf32>
    %328 = arith.subf %309, %327 : vector<5x32xf32>
    %cst_131 = arith.constant 9.99999997E-7 : f32
    %329 = vector.broadcast %cst_131 : f32 to vector<5x1xf32>
    %330 = arith.addf %326, %329 : vector<5x1xf32>
    %331 = math.rsqrt %330 : vector<5x1xf32>
    %332 = vector.broadcast %331 : vector<5x1xf32> to vector<5x32xf32>
    %333 = arith.mulf %328, %332 : vector<5x32xf32>
    %334 = vector.broadcast %311 : vector<1x32xf32> to vector<5x32xf32>
    %335 = arith.mulf %333, %334 : vector<5x32xf32>
    %336 = vector.broadcast %313 : vector<1x32xf32> to vector<5x32xf32>
    %337 = arith.addf %335, %336 : vector<5x32xf32>
    %338 = arith.truncf %337 : vector<5x32xf32> to vector<5x32xbf16>
    %c1_132 = arith.constant 1 : index
    %c0_133 = arith.constant 0 : index
    %c0_134 = arith.constant 0 : index
    %339 = vector.load %arg12[%c1_132, %c0_133, %c0_134] : memref<2x32x64xbf16, #tpu.memory_space<vmem>>, vector<1x32x64xbf16>
    %340 = vector.shape_cast %339 : vector<1x32x64xbf16> to vector<32x64xbf16>
    %cst_135 = arith.constant dense<0.000000e+00> : vector<5x64xf32>
    %341 = tpu.matmul %338, %340, %cst_135 {dimension_numbers = #tpu.dot_dimension_numbers<[1], [0], [0], [1], [0, 0, 1, 1], [], []>} : vector<5x32xbf16>, vector<32x64xbf16>, vector<5x64xf32> -> vector<5x64xf32>
    %c1_136 = arith.constant 1 : index
    %c0_137 = arith.constant 0 : index
    %c0_138 = arith.constant 0 : index
    %342 = vector.load %arg13[%c1_136, %c0_137, %c0_138] : memref<2x1x64xf32, #tpu.memory_space<vmem>>, vector<1x1x64xf32>
    %343 = vector.shape_cast %342 : vector<1x1x64xf32> to vector<1x64xf32>
    %344 = vector.broadcast %343 : vector<1x64xf32> to vector<5x64xf32>
    %345 = arith.addf %341, %344 : vector<5x64xf32>
    %cst_139 = arith.constant 5.000000e-01 : f32
    %346 = vector.broadcast %cst_139 : f32 to vector<5x64xf32>
    %347 = arith.mulf %346, %345 : vector<5x64xf32>
    %cst_140 = arith.constant 4.471500e-02 : f32
    %348 = vector.broadcast %cst_140 : f32 to vector<5x64xf32>
    %349 = arith.mulf %348, %345 : vector<5x64xf32>
    %350 = arith.mulf %349, %345 : vector<5x64xf32>
    %351 = arith.mulf %350, %345 : vector<5x64xf32>
    %352 = arith.addf %345, %351 : vector<5x64xf32>
    %cst_141 = arith.constant 0.797884583 : f32
    %353 = vector.broadcast %cst_141 : f32 to vector<5x64xf32>
    %354 = arith.mulf %353, %352 : vector<5x64xf32>
    %355 = math.tanh %354 : vector<5x64xf32>
    %cst_142 = arith.constant 1.000000e+00 : f32
    %356 = vector.broadcast %cst_142 : f32 to vector<5x64xf32>
    %357 = arith.addf %356, %355 : vector<5x64xf32>
    %358 = arith.mulf %347, %357 : vector<5x64xf32>
    %359 = arith.truncf %358 : vector<5x64xf32> to vector<5x64xbf16>
    %c1_143 = arith.constant 1 : index
    %c0_144 = arith.constant 0 : index
    %c0_145 = arith.constant 0 : index
    %360 = vector.load %arg14[%c1_143, %c0_144, %c0_145] : memref<2x64x32xbf16, #tpu.memory_space<vmem>>, vector<1x64x32xbf16>
    %361 = vector.shape_cast %360 : vector<1x64x32xbf16> to vector<64x32xbf16>
    %cst_146 = arith.constant dense<0.000000e+00> : vector<5x32xf32>
    %362 = tpu.matmul %359, %361, %cst_146 {dimension_numbers = #tpu.dot_dimension_numbers<[1], [0], [0], [1], [0, 0, 1, 1], [], []>} : vector<5x64xbf16>, vector<64x32xbf16>, vector<5x32xf32> -> vector<5x32xf32>
    %363 = arith.addf %309, %362 : vector<5x32xf32>
    %c1_147 = arith.constant 1 : index
    %c0_148 = arith.constant 0 : index
    %c0_149 = arith.constant 0 : index
    %364 = vector.load %arg15[%c1_147, %c0_148, %c0_149] : memref<2x1x32xf32, #tpu.memory_space<vmem>>, vector<1x1x32xf32>
    %365 = vector.shape_cast %364 : vector<1x1x32xf32> to vector<1x32xf32>
    %366 = vector.broadcast %365 : vector<1x32xf32> to vector<5x32xf32>
    %367 = arith.addf %363, %366 : vector<5x32xf32>
    %368 = vector.extract_strided_slice %367 {offsets = [0, 0], sizes = [1, 32], strides = [1, 1]} : vector<5x32xf32> to vector<1x32xf32>
    %c0_150 = arith.constant 0 : index
    %c0_151 = arith.constant 0 : index
    %369 = vector.load %arg16[%c0_150, %c0_151] : memref<1x32xf32, #tpu.memory_space<vmem>>, vector<1x32xf32>
    %c0_152 = arith.constant 0 : index
    %c0_153 = arith.constant 0 : index
    %370 = vector.load %arg17[%c0_152, %c0_153] : memref<1x32xf32, #tpu.memory_space<vmem>>, vector<1x32xf32>
    %cst_154 = arith.constant dense<0.000000e+00> : vector<1xf32>
    %371 = vector.multi_reduction <add>, %368, %cst_154 [1] : vector<1x32xf32> to vector<1xf32>
    %372 = vector.shape_cast %371 : vector<1xf32> to vector<1x1xf32>
    %cst_155 = arith.constant 3.200000e+01 : f32
    %373 = vector.broadcast %cst_155 : f32 to vector<1x1xf32>
    %374 = arith.divf %372, %373 : vector<1x1xf32>
    %375 = arith.mulf %368, %368 : vector<1x32xf32>
    %cst_156 = arith.constant dense<0.000000e+00> : vector<1xf32>
    %376 = vector.multi_reduction <add>, %375, %cst_156 [1] : vector<1x32xf32> to vector<1xf32>
    %377 = vector.shape_cast %376 : vector<1xf32> to vector<1x1xf32>
    %cst_157 = arith.constant 3.200000e+01 : f32
    %378 = vector.broadcast %cst_157 : f32 to vector<1x1xf32>
    %379 = arith.divf %377, %378 : vector<1x1xf32>
    %380 = arith.mulf %374, %374 : vector<1x1xf32>
    %381 = arith.subf %379, %380 : vector<1x1xf32>
    %cst_158 = arith.constant 0.000000e+00 : f32
    %382 = vector.broadcast %cst_158 : f32 to vector<1x1xf32>
    %383 = arith.maximumf %381, %382 : vector<1x1xf32>
    %384 = vector.broadcast %374 : vector<1x1xf32> to vector<1x32xf32>
    %385 = arith.subf %368, %384 : vector<1x32xf32>
    %cst_159 = arith.constant 9.99999997E-7 : f32
    %386 = vector.broadcast %cst_159 : f32 to vector<1x1xf32>
    %387 = arith.addf %383, %386 : vector<1x1xf32>
    %388 = math.rsqrt %387 : vector<1x1xf32>
    %389 = vector.broadcast %388 : vector<1x1xf32> to vector<1x32xf32>
    %390 = arith.mulf %385, %389 : vector<1x32xf32>
    %391 = arith.mulf %390, %369 : vector<1x32xf32>
    %392 = arith.addf %391, %370 : vector<1x32xf32>
    %393 = arith.truncf %392 : vector<1x32xf32> to vector<1x32xbf16>
    %c0_160 = arith.constant 0 : index
    %c0_161 = arith.constant 0 : index
    %394 = vector.load %arg18[%c0_160, %c0_161] : memref<32x128xbf16, #tpu.memory_space<vmem>>, vector<32x128xbf16>
    %cst_162 = arith.constant dense<0.000000e+00> : vector<1x128xf32>
    %395 = tpu.matmul %393, %394, %cst_162 {dimension_numbers = #tpu.dot_dimension_numbers<[1], [0], [0], [1], [0, 0, 1, 1], [], []>} : vector<1x32xbf16>, vector<32x128xbf16>, vector<1x128xf32> -> vector<1x128xf32>
    %c0_163 = arith.constant 0 : index
    %c0_164 = arith.constant 0 : index
    %396 = vector.load %arg19[%c0_163, %c0_164] : memref<1x128xf32, #tpu.memory_space<vmem>>, vector<1x128xf32>
    %397 = arith.addf %395, %396 : vector<1x128xf32>
    %c0_165 = arith.constant 0 : index
    %c0_166 = arith.constant 0 : index
    %c0_167 = arith.constant 0 : index
    %398 = vector.load %arg20[%c0_165, %c0_166, %c0_167] : memref<1x1x128xf32, #tpu.memory_space<vmem>>, vector<1x1x128xf32>
    %399 = vector.shape_cast %398 : vector<1x1x128xf32> to vector<1x128xf32>
    %400 = vector.shape_cast %397 : vector<1x128xf32> to vector<1x1x128xf32>
    tpu.vector_store %arg20[%c0_165, %c0_166, %c0_167], %400 {strides = array<i32>} : memref<1x1x128xf32, #tpu.memory_space<vmem>>, vector<1x1x128xf32>,
    return
  }
  func.func @transform_0(%arg0: i32) -> (i32, i32, i32) {
    %c0_i32 = arith.constant 0 : i32
    %c0_i32_0 = arith.constant 0 : i32
    %c0_i32_1 = arith.constant 0 : i32
    return %arg0, %c0_i32, %c0_i32_0 : i32, i32, i32
  }
  func.func @transform_1(%arg0: i32) -> (i32, i32) {
    %c0_i32 = arith.constant 0 : i32
    %c0_i32_0 = arith.constant 0 : i32
    %c0_i32_1 = arith.constant 0 : i32
    return %c0_i32, %c0_i32_0 : i32, i32
  }
  func.func @transform_2(%arg0: i32) -> (i32, i32) {
    %c0_i32 = arith.constant 0 : i32
    %c0_i32_0 = arith.constant 0 : i32
    %c0_i32_1 = arith.constant 0 : i32
    return %c0_i32, %c0_i32_0 : i32, i32
  }
  func.func @transform_3(%arg0: i32) -> (i32, i32, i32) {
    %c0_i32 = arith.constant 0 : i32
    %c0_i32_0 = arith.constant 0 : i32
    %c0_i32_1 = arith.constant 0 : i32
    %c0_i32_2 = arith.constant 0 : i32
    return %c0_i32, %c0_i32_0, %c0_i32_1 : i32, i32, i32
  }
  func.func @transform_4(%arg0: i32) -> (i32, i32, i32) {
    %c0_i32 = arith.constant 0 : i32
    %c0_i32_0 = arith.constant 0 : i32
    %c0_i32_1 = arith.constant 0 : i32
    %c0_i32_2 = arith.constant 0 : i32
    return %c0_i32, %c0_i32_0, %c0_i32_1 : i32, i32, i32
  }
  func.func @transform_5(%arg0: i32) -> (i32, i32, i32) {
    %c0_i32 = arith.constant 0 : i32
    %c0_i32_0 = arith.constant 0 : i32
    %c0_i32_1 = arith.constant 0 : i32
    %c0_i32_2 = arith.constant 0 : i32
    return %c0_i32, %c0_i32_0, %c0_i32_1 : i32, i32, i32
  }
  func.func @transform_6(%arg0: i32) -> (i32, i32, i32) {
    %c0_i32 = arith.constant 0 : i32
    %c0_i32_0 = arith.constant 0 : i32
    %c0_i32_1 = arith.constant 0 : i32
    %c0_i32_2 = arith.constant 0 : i32
    return %c0_i32, %c0_i32_0, %c0_i32_1 : i32, i32, i32
  }
  func.func @transform_7(%arg0: i32) -> (i32, i32, i32) {
    %c0_i32 = arith.constant 0 : i32
    %c0_i32_0 = arith.constant 0 : i32
    %c0_i32_1 = arith.constant 0 : i32
    %c0_i32_2 = arith.constant 0 : i32
    return %c0_i32, %c0_i32_0, %c0_i32_1 : i32, i32, i32
  }
  func.func @transform_8(%arg0: i32) -> (i32, i32, i32) {
    %c0_i32 = arith.constant 0 : i32
    %c0_i32_0 = arith.constant 0 : i32
    %c0_i32_1 = arith.constant 0 : i32
    %c0_i32_2 = arith.constant 0 : i32
    return %c0_i32, %c0_i32_0, %c0_i32_1 : i32, i32, i32
  }
  func.func @transform_9(%arg0: i32) -> (i32, i32, i32) {
    %c0_i32 = arith.constant 0 : i32
    %c0_i32_0 = arith.constant 0 : i32
    %c0_i32_1 = arith.constant 0 : i32
    %c0_i32_2 = arith.constant 0 : i32
    return %c0_i32, %c0_i32_0, %c0_i32_1 : i32, i32, i32
  }
  func.func @transform_10(%arg0: i32) -> (i32, i32, i32) {
    %c0_i32 = arith.constant 0 : i32
    %c0_i32_0 = arith.constant 0 : i32
    %c0_i32_1 = arith.constant 0 : i32
    %c0_i32_2 = arith.constant 0 : i32
    return %c0_i32, %c0_i32_0, %c0_i32_1 : i32, i32, i32
  }
  func.func @transform_11(%arg0: i32) -> (i32, i32, i32) {
    %c0_i32 = arith.constant 0 : i32
    %c0_i32_0 = arith.constant 0 : i32
    %c0_i32_1 = arith.constant 0 : i32
    %c0_i32_2 = arith.constant 0 : i32
    return %c0_i32, %c0_i32_0, %c0_i32_1 : i32, i32, i32
  }
  func.func @transform_12(%arg0: i32) -> (i32, i32, i32) {
    %c0_i32 = arith.constant 0 : i32
    %c0_i32_0 = arith.constant 0 : i32
    %c0_i32_1 = arith.constant 0 : i32
    %c0_i32_2 = arith.constant 0 : i32
    return %c0_i32, %c0_i32_0, %c0_i32_1 : i32, i32, i32
  }
  func.func @transform_13(%arg0: i32) -> (i32, i32, i32) {
    %c0_i32 = arith.constant 0 : i32
    %c0_i32_0 = arith.constant 0 : i32
    %c0_i32_1 = arith.constant 0 : i32
    %c0_i32_2 = arith.constant 0 : i32
    return %c0_i32, %c0_i32_0, %c0_i32_1 : i32, i32, i32
  }
  func.func @transform_14(%arg0: i32) -> (i32, i32, i32) {
    %c0_i32 = arith.constant 0 : i32
    %c0_i32_0 = arith.constant 0 : i32
    %c0_i32_1 = arith.constant 0 : i32
    %c0_i32_2 = arith.constant 0 : i32
    return %c0_i32, %c0_i32_0, %c0_i32_1 : i32, i32, i32
  }
  func.func @transform_15(%arg0: i32) -> (i32, i32) {
    %c0_i32 = arith.constant 0 : i32
    %c0_i32_0 = arith.constant 0 : i32
    %c0_i32_1 = arith.constant 0 : i32
    return %c0_i32, %c0_i32_0 : i32, i32
  }
  func.func @transform_16(%arg0: i32) -> (i32, i32) {
    %c0_i32 = arith.constant 0 : i32
    %c0_i32_0 = arith.constant 0 : i32
    %c0_i32_1 = arith.constant 0 : i32
    return %c0_i32, %c0_i32_0 : i32, i32
  }
  func.func @transform_17(%arg0: i32) -> (i32, i32) {
    %c0_i32 = arith.constant 0 : i32
    %c0_i32_0 = arith.constant 0 : i32
    %c0_i32_1 = arith.constant 0 : i32
    return %c0_i32, %c0_i32_0 : i32, i32
  }
  func.func @transform_18(%arg0: i32) -> (i32, i32) {
    %c0_i32 = arith.constant 0 : i32
    %c0_i32_0 = arith.constant 0 : i32
    %c0_i32_1 = arith.constant 0 : i32
    return %c0_i32, %c0_i32_0 : i32, i32
  }
  func.func @transform_19(%arg0: i32) -> (i32, i32, i32) {
    %c0_i32 = arith.constant 0 : i32
    %c0_i32_0 = arith.constant 0 : i32
    %c0_i32_1 = arith.constant 0 : i32
    return %arg0, %c0_i32, %c0_i32_0 : i32, i32, i32
  }
}

</mosaic_0001>

<llo_original>
// kernel: vit_forward.1
$region0: #{vit_forward.1}
  #allocation0 [shape = 'u32[]', space=smem, size = 0x4, offset = 0x4, fixed_abs, tag = 'smem constant byte address 0x4 - core index']
  #allocation1 [shape = 'u32[144,128]{1,0:T(1,128)}', space=vmem, size = 0x12000, scoped, tag = 'internal scratch']
  %s0 = inlined_call_operand.vmem [shape: bf16[2,4,192], index: 0, kind: input, shape index: {}]
  %s1 = inlined_call_operand.vmem [shape: bf16[192,32], index: 1, kind: input, shape index: {}]
  %s2 = inlined_call_operand.vmem [shape: f32[5,32], index: 2, kind: input, shape index: {}]
  %s3 = inlined_call_operand.vmem [shape: f32[2,1,32], index: 3, kind: input, shape index: {}]
  %s4 = inlined_call_operand.vmem [shape: f32[2,1,32], index: 4, kind: input, shape index: {}]
  %s5 = inlined_call_operand.vmem [shape: bf16[2,32,96], index: 5, kind: input, shape index: {}]
  %s6 = inlined_call_operand.vmem [shape: f32[2,1,96], index: 6, kind: input, shape index: {}]
  %s7 = inlined_call_operand.vmem [shape: bf16[2,32,32], index: 7, kind: input, shape index: {}]
  %s8 = inlined_call_operand.vmem [shape: f32[2,1,32], index: 8, kind: input, shape index: {}]
  %s9 = inlined_call_operand.vmem [shape: f32[2,1,32], index: 9, kind: input, shape index: {}]
  %s10 = inlined_call_operand.vmem [shape: f32[2,1,32], index: 10, kind: input, shape index: {}]
  %s11 = inlined_call_operand.vmem [shape: bf16[2,32,64], index: 11, kind: input, shape index: {}]
  %s12 = inlined_call_operand.vmem [shape: f32[2,1,64], index: 12, kind: input, shape index: {}]
  %s13 = inlined_call_operand.vmem [shape: bf16[2,64,32], index: 13, kind: input, shape index: {}]
  %s14 = inlined_call_operand.vmem [shape: f32[2,1,32], index: 14, kind: input, shape index: {}]
  %s15 = inlined_call_operand.vmem [shape: f32[1,32], index: 15, kind: input, shape index: {}]
  %s16 = inlined_call_operand.vmem [shape: f32[1,32], index: 16, kind: input, shape index: {}]
  %s17 = inlined_call_operand.vmem [shape: bf16[32,128], index: 17, kind: input, shape index: {}]
  %s18 = inlined_call_operand.vmem [shape: f32[1,128], index: 18, kind: input, shape index: {}]
  %s19 = inlined_call_operand.hbm [shape: f32[2,1,128], index: 19, kind: output, shape index: {}]
  %s20 = sld [smem:[#allocation0]]
  $region109: #{vit_forward.1} parent=0
    _
  %s22 = ssub.s32 1, %s20
  %s23 = scalar_select 0, %s22, %s20
  $region1: #{vit_forward.1} parent=0
    #allocation2 [shape = 'u8[1024]{0}', space=vmem, size = 0x400, scoped, tag = 'output window, operand 0']
    #allocation3 [shape = 's32[2]{0}', space=sflag, size = 0x8, scoped, tag = 'scoped memory for vit_forward.1']
    %24 = vsyncpa [#allocation3], 0
    %s25 = scalar_lea.sflag [#allocation3], 1
    %26 = vsyncpa %s25, 0
    loop: start=0, step=1, limit=4
    $region2: #{vit_forward.1} parent=1 // loop_pre_header
      _
    $region3: #{vit_forward.1} parent=1 // loop_header
      %s28 = sphi 0, %s32
      %p29 = scmp.ge.s32.totalorder %s28, 4
      %s38 = sphi 0, %s40
      %s41 = sphi 0, %s38
      %s42 = sphi 0, %s41
      %s58 = sphi 0, %s42
      %s62 = sphi 0, %s62
      %s64 = sphi 0, %s62
      %s65 = sphi 0, %s64
      %s79 = sphi 0, %s65
      %s83 = sphi 0, %s83
      %s85 = sphi 0, %s83
      %s86 = sphi 0, %s85
      %s100 = sphi 0, %s86
      %s104 = sphi 0, %s104
      %s106 = sphi 0, %s104
      %s107 = sphi 0, %s106
      %s121 = sphi 0, %s107
      %s125 = sphi 0, %s125
      %s127 = sphi 0, %s125
      %s128 = sphi 0, %s127
      %s142 = sphi 0, %s128
      %s146 = sphi 0, %s146
      %s148 = sphi 0, %s146
      %s149 = sphi 0, %s148
      %s163 = sphi 0, %s149
      %s167 = sphi 0, %s167
      %s169 = sphi 0, %s167
      %s170 = sphi 0, %s169
      %s184 = sphi 0, %s170
      %s188 = sphi 0, %s188
      %s190 = sphi 0, %s188
      %s191 = sphi 0, %s190
      %s205 = sphi 0, %s191
      %s209 = sphi 0, %s209
      %s211 = sphi 0, %s209
      %s212 = sphi 0, %s211
      %s226 = sphi 0, %s212
      %s230 = sphi 0, %s230
      %s232 = sphi 0, %s230
      %s233 = sphi 0, %s232
      %s247 = sphi 0, %s233
      %s251 = sphi 0, %s251
      %s253 = sphi 0, %s251
      %s254 = sphi 0, %s253
      %s268 = sphi 0, %s254
      %s272 = sphi 0, %s272
      %s274 = sphi 0, %s272
      %s275 = sphi 0, %s274
      %s289 = sphi 0, %s275
      %s293 = sphi 0, %s293
      %s295 = sphi 0, %s293
      %s296 = sphi 0, %s295
      %s310 = sphi 0, %s296
      %s314 = sphi 0, %s314
      %s316 = sphi 0, %s314
      %s317 = sphi 0, %s316
      %s331 = sphi 0, %s317
      %s335 = sphi 0, %s335
      %s337 = sphi 0, %s335
      %s338 = sphi 0, %s337
      %s352 = sphi 0, %s338
      %s356 = sphi 0, %s356
      %s358 = sphi 0, %s356
      %s359 = sphi 0, %s358
      %s373 = sphi 0, %s359
      %s377 = sphi 0, %s377
      %s379 = sphi 0, %s377
      %s380 = sphi 0, %s379
      %s394 = sphi 0, %s380
      %s398 = sphi 0, %s398
      %s400 = sphi 0, %s398
      %s401 = sphi 0, %s400
      %s415 = sphi 0, %s401
      %s419 = sphi 0, %s419
      %s421 = sphi 0, %s419
      %s422 = sphi 0, %s421
      %s436 = sphi 0, %s422
      %s442 = sphi 0, %s444
      %s445 = sphi 0, %s442
      %s446 = sphi 0, %s445
      %s462 = sphi 0, %s446
    $region4: #{vit_forward.1} parent=1 // loop_header_branch
      %31 = sbr.rel (%p29) target = $region8
    $region5: #{vit_forward.1} parent=1 // loop_body
      %s33 = ssub.s32 %s28, 1
      %s34 = ssub.s32 %s28, 2
      %s35 = sadd.s32 %s28, 1
      %s36 = ssub.s32 %s28, %s35
      %p37 = scmp.eq.s32.totalorder %s36, 0
      %s39 = sadd.s32 %s38, 1
      %s40 = scalar_select %p37, %s38, %s39
      %p43 = pneg %p37
      %p44 = scmp.eq.s32.totalorder %s28, 1
      %p45 = por %p43, %p44
      %p46 = scmp.ne.s32.totalorder %s38, %s41
      %p47 = scmp.eq.s32.totalorder %s28, 0
      %p48 = por %p46, %p47
      %p49 = scmp.ne.s32.totalorder %s38, %s41
      %p50 = scmp.eq.s32.totalorder %s33, 1
      %p51 = por %p49, %p50
      %p52 = scmp.ne.s32.totalorder %s41, %s42
      %p53 = scmp.eq.s32.totalorder %s33, 0
      %p54 = por %p52, %p53
      %p55 = scmp.ne.s32.totalorder %s41, %s42
      %p56 = scmp.eq.s32.totalorder %s34, 1
      %p57 = por %p55, %p56
      %p59 = scmp.ne.s32.totalorder %s42, %s58
      %p60 = scmp.eq.s32.totalorder %s34, 0
      %p61 = por %p59, %p60
      %s63 = sadd.s32 %s62, 1
      %p66 = scmp.eq.s32.totalorder %s28, 1
      %p67 = scmp.ne.s32.totalorder %s62, %s64
      %p68 = scmp.eq.s32.totalorder %s28, 0
      %p69 = por %p67, %p68
      %p70 = scmp.ne.s32.totalorder %s62, %s64
      %p71 = scmp.eq.s32.totalorder %s33, 1
      %p72 = por %p70, %p71
      %p73 = scmp.ne.s32.totalorder %s64, %s65
      %p74 = scmp.eq.s32.totalorder %s33, 0
      %p75 = por %p73, %p74
      %p76 = scmp.ne.s32.totalorder %s64, %s65
      %p77 = scmp.eq.s32.totalorder %s34, 1
      %p78 = por %p76, %p77
      %p80 = scmp.ne.s32.totalorder %s65, %s79
      %p81 = scmp.eq.s32.totalorder %s34, 0
      %p82 = por %p80, %p81
      %s84 = sadd.s32 %s83, 1
      %p87 = scmp.eq.s32.totalorder %s28, 1
      %p88 = scmp.ne.s32.totalorder %s83, %s85
      %p89 = scmp.eq.s32.totalorder %s28, 0
      %p90 = por %p88, %p89
      %p91 = scmp.ne.s32.totalorder %s83, %s85
      %p92 = scmp.eq.s32.totalorder %s33, 1
      %p93 = por %p91, %p92
      %p94 = scmp.ne.s32.totalorder %s85, %s86
      %p95 = scmp.eq.s32.totalorder %s33, 0
      %p96 = por %p94, %p95
      %p97 = scmp.ne.s32.totalorder %s85, %s86
      %p98 = scmp.eq.s32.totalorder %s34, 1
      %p99 = por %p97, %p98
      %p101 = scmp.ne.s32.totalorder %s86, %s100
      %p102 = scmp.eq.s32.totalorder %s34, 0
      %p103 = por %p101, %p102
      %s105 = sadd.s32 %s104, 1
      %p108 = scmp.eq.s32.totalorder %s28, 1
      %p109 = scmp.ne.s32.totalorder %s104, %s106
      %p110 = scmp.eq.s32.totalorder %s28, 0
      %p111 = por %p109, %p110
      %p112 = scmp.ne.s32.totalorder %s104, %s106
      %p113 = scmp.eq.s32.totalorder %s33, 1
      %p114 = por %p112, %p113
      %p115 = scmp.ne.s32.totalorder %s106, %s107
      %p116 = scmp.eq.s32.totalorder %s33, 0
      %p117 = por %p115, %p116
      %p118 = scmp.ne.s32.totalorder %s106, %s107
      %p119 = scmp.eq.s32.totalorder %s34, 1
      %p120 = por %p118, %p119
      %p122 = scmp.ne.s32.totalorder %s107, %s121
      %p123 = scmp.eq.s32.totalorder %s34, 0
      %p124 = por %p122, %p123
      %s126 = sadd.s32 %s125, 1
      %p129 = scmp.eq.s32.totalorder %s28, 1
      %p130 = scmp.ne.s32.totalorder %s125, %s127
      %p131 = scmp.eq.s32.totalorder %s28, 0
      %p132 = por %p130, %p131
      %p133 = scmp.ne.s32.totalorder %s125, %s127
      %p134 = scmp.eq.s32.totalorder %s33, 1
      %p135 = por %p133, %p134
      %p136 = scmp.ne.s32.totalorder %s127, %s128
      %p137 = scmp.eq.s32.totalorder %s33, 0
      %p138 = por %p136, %p137
      %p139 = scmp.ne.s32.totalorder %s127, %s128
      %p140 = scmp.eq.s32.totalorder %s34, 1
      %p141 = por %p139, %p140
      %p143 = scmp.ne.s32.totalorder %s128, %s142
      %p144 = scmp.eq.s32.totalorder %s34, 0
      %p145 = por %p143, %p144
      %s147 = sadd.s32 %s146, 1
      %p150 = scmp.eq.s32.totalorder %s28, 1
      %p151 = scmp.ne.s32.totalorder %s146, %s148
      %p152 = scmp.eq.s32.totalorder %s28, 0
      %p153 = por %p151, %p152
      %p154 = scmp.ne.s32.totalorder %s146, %s148
      %p155 = scmp.eq.s32.totalorder %s33, 1
      %p156 = por %p154, %p155
      %p157 = scmp.ne.s32.totalorder %s148, %s149
      %p158 = scmp.eq.s32.totalorder %s33, 0
      %p159 = por %p157, %p158
      %p160 = scmp.ne.s32.totalorder %s148, %s149
      %p161 = scmp.eq.s32.totalorder %s34, 1
      %p162 = por %p160, %p161
      %p164 = scmp.ne.s32.totalorder %s149, %s163
      %p165 = scmp.eq.s32.totalorder %s34, 0
      %p166 = por %p164, %p165
      %s168 = sadd.s32 %s167, 1
      %p171 = scmp.eq.s32.totalorder %s28, 1
      %p172 = scmp.ne.s32.totalorder %s167, %s169
      %p173 = scmp.eq.s32.totalorder %s28, 0
      %p174 = por %p172, %p173
      %p175 = scmp.ne.s32.totalorder %s167, %s169
      %p176 = scmp.eq.s32.totalorder %s33, 1
      %p177 = por %p175, %p176
      %p178 = scmp.ne.s32.totalorder %s169, %s170
      %p179 = scmp.eq.s32.totalorder %s33, 0
      %p180 = por %p178, %p179
      %p181 = scmp.ne.s32.totalorder %s169, %s170
      %p182 = scmp.eq.s32.totalorder %s34, 1
      %p183 = por %p181, %p182
      %p185 = scmp.ne.s32.totalorder %s170, %s184
      %p186 = scmp.eq.s32.totalorder %s34, 0
      %p187 = por %p185, %p186
      %s189 = sadd.s32 %s188, 1
      %p192 = scmp.eq.s32.totalorder %s28, 1
      %p193 = scmp.ne.s32.totalorder %s188, %s190
      %p194 = scmp.eq.s32.totalorder %s28, 0
      %p195 = por %p193, %p194
      %p196 = scmp.ne.s32.totalorder %s188, %s190
      %p197 = scmp.eq.s32.totalorder %s33, 1
      %p198 = por %p196, %p197
      %p199 = scmp.ne.s32.totalorder %s190, %s191
      %p200 = scmp.eq.s32.totalorder %s33, 0
      %p201 = por %p199, %p200
      %p202 = scmp.ne.s32.totalorder %s190, %s191
      %p203 = scmp.eq.s32.totalorder %s34, 1
      %p204 = por %p202, %p203
      %p206 = scmp.ne.s32.totalorder %s191, %s205
      %p207 = scmp.eq.s32.totalorder %s34, 0
      %p208 = por %p206, %p207
      %s210 = sadd.s32 %s209, 1
      %p213 = scmp.eq.s32.totalorder %s28, 1
      %p214 = scmp.ne.s32.totalorder %s209, %s211
      %p215 = scmp.eq.s32.totalorder %s28, 0
      %p216 = por %p214, %p215
      %p217 = scmp.ne.s32.totalorder %s209, %s211
      %p218 = scmp.eq.s32.totalorder %s33, 1
      %p219 = por %p217, %p218
      %p220 = scmp.ne.s32.totalorder %s211, %s212
      %p221 = scmp.eq.s32.totalorder %s33, 0
      %p222 = por %p220, %p221
      %p223 = scmp.ne.s32.totalorder %s211, %s212
      %p224 = scmp.eq.s32.totalorder %s34, 1
      %p225 = por %p223, %p224
      %p227 = scmp.ne.s32.totalorder %s212, %s226
      %p228 = scmp.eq.s32.totalorder %s34, 0
      %p229 = por %p227, %p228
      %s231 = sadd.s32 %s230, 1
      %p234 = scmp.eq.s32.totalorder %s28, 1
      %p235 = scmp.ne.s32.totalorder %s230, %s232
      %p236 = scmp.eq.s32.totalorder %s28, 0
      %p237 = por %p235, %p236
      %p238 = scmp.ne.s32.totalorder %s230, %s232
      %p239 = scmp.eq.s32.totalorder %s33, 1
      %p240 = por %p238, %p239
      %p241 = scmp.ne.s32.totalorder %s232, %s233
      %p242 = scmp.eq.s32.totalorder %s33, 0
      %p243 = por %p241, %p242
      %p244 = scmp.ne.s32.totalorder %s232, %s233
      %p245 = scmp.eq.s32.totalorder %s34, 1
      %p246 = por %p244, %p245
      %p248 = scmp.ne.s32.totalorder %s233, %s247
      %p249 = scmp.eq.s32.totalorder %s34, 0
      %p250 = por %p248, %p249
      %s252 = sadd.s32 %s251, 1
      %p255 = scmp.eq.s32.totalorder %s28, 1
      %p256 = scmp.ne.s32.totalorder %s251, %s253
      %p257 = scmp.eq.s32.totalorder %s28, 0
      %p258 = por %p256, %p257
      %p259 = scmp.ne.s32.totalorder %s251, %s253
      %p260 = scmp.eq.s32.totalorder %s33, 1
      %p261 = por %p259, %p260
      %p262 = scmp.ne.s32.totalorder %s253, %s254
      %p263 = scmp.eq.s32.totalorder %s33, 0
      %p264 = por %p262, %p263
      %p265 = scmp.ne.s32.totalorder %s253, %s254
      %p266 = scmp.eq.s32.totalorder %s34, 1
      %p267 = por %p265, %p266
      %p269 = scmp.ne.s32.totalorder %s254, %s268
      %p270 = scmp.eq.s32.totalorder %s34, 0
      %p271 = por %p269, %p270
      %s273 = sadd.s32 %s272, 1
      %p276 = scmp.eq.s32.totalorder %s28, 1
      %p277 = scmp.ne.s32.totalorder %s272, %s274
      %p278 = scmp.eq.s32.totalorder %s28, 0
      %p279 = por %p277, %p278
      %p280 = scmp.ne.s32.totalorder %s272, %s274
      %p281 = scmp.eq.s32.totalorder %s33, 1
      %p282 = por %p280, %p281
      %p283 = scmp.ne.s32.totalorder %s274, %s275
      %p284 = scmp.eq.s32.totalorder %s33, 0
      %p285 = por %p283, %p284
      %p286 = scmp.ne.s32.totalorder %s274, %s275
      %p287 = scmp.eq.s32.totalorder %s34, 1
      %p288 = por %p286, %p287
      %p290 = scmp.ne.s32.totalorder %s275, %s289
      %p291 = scmp.eq.s32.totalorder %s34, 0
      %p292 = por %p290, %p291
      %s294 = sadd.s32 %s293, 1
      %p297 = scmp.eq.s32.totalorder %s28, 1
      %p298 = scmp.ne.s32.totalorder %s293, %s295
      %p299 = scmp.eq.s32.totalorder %s28, 0
      %p300 = por %p298, %p299
      %p301 = scmp.ne.s32.totalorder %s293, %s295
      %p302 = scmp.eq.s32.totalorder %s33, 1
      %p303 = por %p301, %p302
      %p304 = scmp.ne.s32.totalorder %s295, %s296
      %p305 = scmp.eq.s32.totalorder %s33, 0
      %p306 = por %p304, %p305
      %p307 = scmp.ne.s32.totalorder %s295, %s296
      %p308 = scmp.eq.s32.totalorder %s34, 1
      %p309 = por %p307, %p308
      %p311 = scmp.ne.s32.totalorder %s296, %s310
      %p312 = scmp.eq.s32.totalorder %s34, 0
      %p313 = por %p311, %p312
      %s315 = sadd.s32 %s314, 1
      %p318 = scmp.eq.s32.totalorder %s28, 1
      %p319 = scmp.ne.s32.totalorder %s314, %s316
      %p320 = scmp.eq.s32.totalorder %s28, 0
      %p321 = por %p319, %p320
      %p322 = scmp.ne.s32.totalorder %s314, %s316
      %p323 = scmp.eq.s32.totalorder %s33, 1
      %p324 = por %p322, %p323
      %p325 = scmp.ne.s32.totalorder %s316, %s317
      %p326 = scmp.eq.s32.totalorder %s33, 0
      %p327 = por %p325, %p326
      %p328 = scmp.ne.s32.totalorder %s316, %s317
      %p329 = scmp.eq.s32.totalorder %s34, 1
      %p330 = por %p328, %p329
      %p332 = scmp.ne.s32.totalorder %s317, %s331
      %p333 = scmp.eq.s32.totalorder %s34, 0
      %p334 = por %p332, %p333
      %s336 = sadd.s32 %s335, 1
      %p339 = scmp.eq.s32.totalorder %s28, 1
      %p340 = scmp.ne.s32.totalorder %s335, %s337
      %p341 = scmp.eq.s32.totalorder %s28, 0
      %p342 = por %p340, %p341
      %p343 = scmp.ne.s32.totalorder %s335, %s337
      %p344 = scmp.eq.s32.totalorder %s33, 1
      %p345 = por %p343, %p344
      %p346 = scmp.ne.s32.totalorder %s337, %s338
      %p347 = scmp.eq.s32.totalorder %s33, 0
      %p348 = por %p346, %p347
      %p349 = scmp.ne.s32.totalorder %s337, %s338
      %p350 = scmp.eq.s32.totalorder %s34, 1
      %p351 = por %p349, %p350
      %p353 = scmp.ne.s32.totalorder %s338, %s352
      %p354 = scmp.eq.s32.totalorder %s34, 0
      %p355 = por %p353, %p354
      %s357 = sadd.s32 %s356, 1
      %p360 = scmp.eq.s32.totalorder %s28, 1
      %p361 = scmp.ne.s32.totalorder %s356, %s358
      %p362 = scmp.eq.s32.totalorder %s28, 0
      %p363 = por %p361, %p362
      %p364 = scmp.ne.s32.totalorder %s356, %s358
      %p365 = scmp.eq.s32.totalorder %s33, 1
      %p366 = por %p364, %p365
      %p367 = scmp.ne.s32.totalorder %s358, %s359
      %p368 = scmp.eq.s32.totalorder %s33, 0
      %p369 = por %p367, %p368
      %p370 = scmp.ne.s32.totalorder %s358, %s359
      %p371 = scmp.eq.s32.totalorder %s34, 1
      %p372 = por %p370, %p371
      %p374 = scmp.ne.s32.totalorder %s359, %s373
      %p375 = scmp.eq.s32.totalorder %s34, 0
      %p376 = por %p374, %p375
      %s378 = sadd.s32 %s377, 1
      %p381 = scmp.eq.s32.totalorder %s28, 1
      %p382 = scmp.ne.s32.totalorder %s377, %s379
      %p383 = scmp.eq.s32.totalorder %s28, 0
      %p384 = por %p382, %p383
      %p385 = scmp.ne.s32.totalorder %s377, %s379
      %p386 = scmp.eq.s32.totalorder %s33, 1
      %p387 = por %p385, %p386
      %p388 = scmp.ne.s32.totalorder %s379, %s380
      %p389 = scmp.eq.s32.totalorder %s33, 0
      %p390 = por %p388, %p389
      %p391 = scmp.ne.s32.totalorder %s379, %s380
      %p392 = scmp.eq.s32.totalorder %s34, 1
      %p393 = por %p391, %p392
      %p395 = scmp.ne.s32.totalorder %s380, %s394
      %p396 = scmp.eq.s32.totalorder %s34, 0
      %p397 = por %p395, %p396
      %s399 = sadd.s32 %s398, 1
      %p402 = scmp.eq.s32.totalorder %s28, 1
      %p403 = scmp.ne.s32.totalorder %s398, %s400
      %p404 = scmp.eq.s32.totalorder %s28, 0
      %p405 = por %p403, %p404
      %p406 = scmp.ne.s32.totalorder %s398, %s400
      %p407 = scmp.eq.s32.totalorder %s33, 1
      %p408 = por %p406, %p407
      %p409 = scmp.ne.s32.totalorder %s400, %s401
      %p410 = scmp.eq.s32.totalorder %s33, 0
      %p411 = por %p409, %p410
      %p412 = scmp.ne.s32.totalorder %s400, %s401
      %p413 = scmp.eq.s32.totalorder %s34, 1
      %p414 = por %p412, %p413
      %p416 = scmp.ne.s32.totalorder %s401, %s415
      %p417 = scmp.eq.s32.totalorder %s34, 0
      %p418 = por %p416, %p417
      %s420 = sadd.s32 %s419, 1
      %p423 = scmp.eq.s32.totalorder %s28, 1
      %p424 = scmp.ne.s32.totalorder %s419, %s421
      %p425 = scmp.eq.s32.totalorder %s28, 0
      %p426 = por %p424, %p425
      %p427 = scmp.ne.s32.totalorder %s419, %s421
      %p428 = scmp.eq.s32.totalorder %s33, 1
      %p429 = por %p427, %p428
      %p430 = scmp.ne.s32.totalorder %s421, %s422
      %p431 = scmp.eq.s32.totalorder %s33, 0
      %p432 = por %p430, %p431
      %p433 = scmp.ne.s32.totalorder %s421, %s422
      %p434 = scmp.eq.s32.totalorder %s34, 1
      %p435 = por %p433, %p434
      %p437 = scmp.ne.s32.totalorder %s422, %s436
      %p438 = scmp.eq.s32.totalorder %s34, 0
      %p439 = por %p437, %p438
      %s440 = ssub.s32 %s28, %s35
      %p441 = scmp.eq.s32.totalorder %s440, 0
      %s443 = sadd.s32 %s442, 1
      %s444 = scalar_select %p441, %s442, %s443
      %p447 = pneg %p441
      %p448 = scmp.eq.s32.totalorder %s28, 1
      %p449 = por %p447, %p448
      %p450 = scmp.ne.s32.totalorder %s442, %s445
      %p451 = scmp.eq.s32.totalorder %s28, 0
      %p452 = por %p450, %p451
      %p453 = scmp.ne.s32.totalorder %s442, %s445
      %p454 = scmp.eq.s32.totalorder %s33, 1
      %p455 = por %p453, %p454
      %p456 = scmp.ne.s32.totalorder %s445, %s446
      %p457 = scmp.eq.s32.totalorder %s33, 0
      %p458 = por %p456, %p457
      %p459 = scmp.ne.s32.totalorder %s445, %s446
      %p460 = scmp.eq.s32.totalorder %s34, 1
      %p461 = por %p459, %p460
      %p463 = scmp.ne.s32.totalorder %s446, %s462
      %p464 = scmp.eq.s32.totalorder %s34, 0
      %p465 = por %p463, %p464
      %p466 = scmp.le.s32.totalorder 1, %s28
      %p467 = scmp.lt.s32.totalorder %s28, 3
      %p468 = pnand %p466, %p467
      %p469 = pneg %p468
      // Predicated region
      $region9: #{vit_forward.1} parent=5 // pred_check
        _
      $region10: #{vit_forward.1} parent=5 // pred_check_branch
        %471 = sbr.rel (%p468) target = $region12
      $region11: #{vit_forward.1} parent=5 // pred_region
        %s472 = ssub.s32 %s28, 1
        // Predicated region
        $region13: #{vit_forward.1} parent=11 // pred_check
          %p473 = pneg %p75
        $region14: #{vit_forward.1} parent=11 // pred_check_branch
          %475 = sbr.rel (%p473) target = $region16
        $region15: #{vit_forward.1} parent=11 // pred_region
          _
        $region16: #{vit_forward.1} parent=11 // pred_fallthru
          _
        // Predicated region
        $region17: #{vit_forward.1} parent=11 // pred_check
          %p476 = pneg %p96
        $region18: #{vit_forward.1} parent=11 // pred_check_branch
          %478 = sbr.rel (%p476) target = $region20
        $region19: #{vit_forward.1} parent=11 // pred_region
          _
        $region20: #{vit_forward.1} parent=11 // pred_fallthru
          _
        // Predicated region
        $region21: #{vit_forward.1} parent=11 // pred_check
          %p479 = pneg %p117
        $region22: #{vit_forward.1} parent=11 // pred_check_branch
          %481 = sbr.rel (%p479) target = $region24
        $region23: #{vit_forward.1} parent=11 // pred_region
          _
        $region24: #{vit_forward.1} parent=11 // pred_fallthru
          _
        // Predicated region
        $region25: #{vit_forward.1} parent=11 // pred_check
          %p482 = pneg %p138
        $region26: #{vit_forward.1} parent=11 // pred_check_branch
          %484 = sbr.rel (%p482) target = $region28
        $region27: #{vit_forward.1} parent=11 // pred_region
          _
        $region28: #{vit_forward.1} parent=11 // pred_fallthru
          _
        // Predicated region
        $region29: #{vit_forward.1} parent=11 // pred_check
          %p485 = pneg %p159
        $region30: #{vit_forward.1} parent=11 // pred_check_branch
          %487 = sbr.rel (%p485) target = $region32
        $region31: #{vit_forward.1} parent=11 // pred_region
          _
        $region32: #{vit_forward.1} parent=11 // pred_fallthru
          _
        // Predicated region
        $region33: #{vit_forward.1} parent=11 // pred_check
          %p488 = pneg %p180
        $region34: #{vit_forward.1} parent=11 // pred_check_branch
          %490 = sbr.rel (%p488) target = $region36
        $region35: #{vit_forward.1} parent=11 // pred_region
          _
        $region36: #{vit_forward.1} parent=11 // pred_fallthru
          _
        // Predicated region
        $region37: #{vit_forward.1} parent=11 // pred_check
          %p491 = pneg %p201
        $region38: #{vit_forward.1} parent=11 // pred_check_branch
          %493 = sbr.rel (%p491) target = $region40
        $region39: #{vit_forward.1} parent=11 // pred_region
          _
        $region40: #{vit_forward.1} parent=11 // pred_fallthru
          _
        // Predicated region
        $region41: #{vit_forward.1} parent=11 // pred_check
          %p494 = pneg %p222
        $region42: #{vit_forward.1} parent=11 // pred_check_branch
          %496 = sbr.rel (%p494) target = $region44
        $region43: #{vit_forward.1} parent=11 // pred_region
          _
        $region44: #{vit_forward.1} parent=11 // pred_fallthru
          _
        // Predicated region
        $region45: #{vit_forward.1} parent=11 // pred_check
          %p497 = pneg %p243
        $region46: #{vit_forward.1} parent=11 // pred_check_branch
          %499 = sbr.rel (%p497) target = $region48
        $region47: #{vit_forward.1} parent=11 // pred_region
          _
        $region48: #{vit_forward.1} parent=11 // pred_fallthru
          _
        // Predicated region
        $region49: #{vit_forward.1} parent=11 // pred_check
          %p500 = pneg %p264
        $region50: #{vit_forward.1} parent=11 // pred_check_branch
          %502 = sbr.rel (%p500) target = $region52
        $region51: #{vit_forward.1} parent=11 // pred_region
          _
        $region52: #{vit_forward.1} parent=11 // pred_fallthru
          _
        // Predicated region
        $region53: #{vit_forward.1} parent=11 // pred_check
          %p503 = pneg %p285
        $region54: #{vit_forward.1} parent=11 // pred_check_branch
          %505 = sbr.rel (%p503) target = $region56
        $region55: #{vit_forward.1} parent=11 // pred_region
          _
        $region56: #{vit_forward.1} parent=11 // pred_fallthru
          _
        // Predicated region
        $region57: #{vit_forward.1} parent=11 // pred_check
          %p506 = pneg %p306
        $region58: #{vit_forward.1} parent=11 // pred_check_branch
          %508 = sbr.rel (%p506) target = $region60
        $region59: #{vit_forward.1} parent=11 // pred_region
          _
        $region60: #{vit_forward.1} parent=11 // pred_fallthru
          _
        // Predicated region
        $region61: #{vit_forward.1} parent=11 // pred_check
          %p509 = pneg %p327
        $region62: #{vit_forward.1} parent=11 // pred_check_branch
          %511 = sbr.rel (%p509) target = $region64
        $region63: #{vit_forward.1} parent=11 // pred_region
          _
        $region64: #{vit_forward.1} parent=11 // pred_fallthru
          _
        // Predicated region
        $region65: #{vit_forward.1} parent=11 // pred_check
          %p512 = pneg %p348
        $region66: #{vit_forward.1} parent=11 // pred_check_branch
          %514 = sbr.rel (%p512) target = $region68
        $region67: #{vit_forward.1} parent=11 // pred_region
          _
        $region68: #{vit_forward.1} parent=11 // pred_fallthru
          _
        // Predicated region
        $region69: #{vit_forward.1} parent=11 // pred_check
          %p515 = pneg %p369
        $region70: #{vit_forward.1} parent=11 // pred_check_branch
          %517 = sbr.rel (%p515) target = $region72
        $region71: #{vit_forward.1} parent=11 // pred_region
          _
        $region72: #{vit_forward.1} parent=11 // pred_fallthru
          _
        // Predicated region
        $region73: #{vit_forward.1} parent=11 // pred_check
          %p518 = pneg %p390
        $region74: #{vit_forward.1} parent=11 // pred_check_branch
          %520 = sbr.rel (%p518) target = $region76
        $region75: #{vit_forward.1} parent=11 // pred_region
          _
        $region76: #{vit_forward.1} parent=11 // pred_fallthru
          _
        // Predicated region
        $region77: #{vit_forward.1} parent=11 // pred_check
          %p521 = pneg %p411
        $region78: #{vit_forward.1} parent=11 // pred_check_branch
          %523 = sbr.rel (%p521) target = $region80
        $region79: #{vit_forward.1} parent=11 // pred_region
          _
        $region80: #{vit_forward.1} parent=11 // pred_fallthru
          _
        // Predicated region
        $region81: #{vit_forward.1} parent=11 // pred_check
          %p524 = pneg %p432
        $region82: #{vit_forward.1} parent=11 // pred_check_branch
          %526 = sbr.rel (%p524) target = $region84
        $region83: #{vit_forward.1} parent=11 // pred_region
          _
        $region84: #{vit_forward.1} parent=11 // pred_fallthru
          _
      $region12: #{vit_forward.1} parent=5 // pred_fallthru
        _
      %p527 = scmp.lt.s32.totalorder %s28, 2
      // Predicated region
      $region85: #{vit_forward.1} parent=5 // pred_check
        %p528 = pneg %p527
      $region86: #{vit_forward.1} parent=5 // pred_check_branch
        %530 = sbr.rel (%p528) target = $region88
      $region87: #{vit_forward.1} parent=5 // pred_region
        // Predicated region
        $region89: #{vit_forward.1} parent=87 // pred_check
          %p531 = pneg %p48
        $region90: #{vit_forward.1} parent=87 // pred_check_branch
          %533 = sbr.rel (%p531) target = $region92
        $region91: #{vit_forward.1} parent=87 // pred_region
          %p534 = scmp.lt.s32.totalorder %s28, 1
          %s535 = scalar_select %p534, %s28, 1
          %s536 = smul.addr %s535, 2
          %s537 = smul.addr %s536, 2
          %s538 = scalar_lea.vmem %s0, %s537
        $region92: #{vit_forward.1} parent=87 // pred_fallthru
          _
      $region88: #{vit_forward.1} parent=5 // pred_fallthru
        _
      %p539 = scmp.le.s32.totalorder 1, %s28
      %p540 = scmp.lt.s32.totalorder %s28, 3
      %p541 = pnand %p539, %p540
      %p542 = pneg %p541
      // Predicated region
      $region93: #{vit_forward.1} parent=5 // pred_check
        _
      $region94: #{vit_forward.1} parent=5 // pred_check_branch
        %544 = sbr.rel (%p541) target = $region96
      $region95: #{vit_forward.1} parent=5 // pred_region
        %s545 = ssub.s32 %s28, 1
        %p546 = scmp.lt.s32.totalorder %s33, 1
        %s547 = scalar_select %p546, %s33, 1
        %s548 = smul.addr %s547, 2
        %s549 = smul.addr %s548, 2
        %s550 = scalar_lea.vmem %s0, %s549
        %p551 = pneg %p54
        %p552 = pneg %p51
        %p553 = pneg %p75
        %p554 = pneg %p72
        %p555 = pneg %p96
        %p556 = pneg %p93
        %p557 = pneg %p117
        %p558 = pneg %p114
        %p559 = pneg %p138
        %p560 = pneg %p135
        %p561 = pneg %p159
        %p562 = pneg %p156
        %p563 = pneg %p180
        %p564 = pneg %p177
        %p565 = pneg %p201
        %p566 = pneg %p198
        %p567 = pneg %p222
        %p568 = pneg %p219
        %p569 = pneg %p243
        %p570 = pneg %p240
        %p571 = pneg %p264
        %p572 = pneg %p261
        %p573 = pneg %p285
        %p574 = pneg %p282
        %p575 = pneg %p306
        %p576 = pneg %p303
        %p577 = pneg %p327
        %p578 = pneg %p324
        %p579 = pneg %p348
        %p580 = pneg %p345
        %p581 = pneg %p369
        %p582 = pneg %p366
        %p583 = pneg %p390
        %p584 = pneg %p387
        %p585 = pneg %p411
        %p586 = pneg %p408
        %p587 = pneg %p432
        %p588 = pneg %p429
        %p589 = pneg %p458
        %p590 = pneg %p455
        %s591 = sand.u32 %s445, 1
        %s592 = scalar_lea.sflag [#allocation3], %s591
        %s593 = sand.u32 %s445, 1
        %s594 = scalar_lea.vmem [#allocation2], %s593
        %p595 = scmp.lt.s32.totalorder %s33, 1
        %s596 = scalar_select %p595, %s33, 1
        %s597 = smul.addr %s596, 2
        %s598 = smul.addr %s597, 2
        %s599 = scalar_lea.vmem %s0, %s598
        %v601 = vld [vmem:[%s599] sm:$0xf]
        %v602 = vld [vmem:[%s1] sm:$0xf]
        %v603 = vld [vmem:[%s1 + $0x4] sm:$0xf]
        %v604 = vld [vmem:[%s1 + $0x8] sm:$0xf]
        %v605 = vld [vmem:[%s1 + $0xc] sm:$0xf]
        %v606 = vld [vmem:[%s1 + $0x10] sm:$0xf]
        %v607 = vld [vmem:[%s1 + $0x14] sm:$0xf]
        %v608 = vld [vmem:[%s1 + $0x18] sm:$0xf]
        %v609 = vld [vmem:[%s1 + $0x1c] sm:$0xf]
        %v610 = vld [vmem:[%s1 + $0x20] sm:$0xf]
        %v611 = vld [vmem:[%s1 + $0x24] sm:$0xf]
        %v612 = vld [vmem:[%s1 + $0x28] sm:$0xf]
        %v613 = vld [vmem:[%s1 + $0x2c] sm:$0xf]
        %v614 = vld [vmem:[%s1 + $0x30] sm:$0xf]
        %v615 = vld [vmem:[%s1 + $0x34] sm:$0xf]
        %v616 = vld [vmem:[%s1 + $0x38] sm:$0xf]
        %v617 = vld [vmem:[%s1 + $0x3c] sm:$0xf]
        %v618 = vld [vmem:[%s1 + $0x40] sm:$0xf]
        %v619 = vld [vmem:[%s1 + $0x44] sm:$0xf]
        %v620 = vld [vmem:[%s1 + $0x48] sm:$0xf]
        %v621 = vld [vmem:[%s1 + $0x4c] sm:$0xf]
        %v622 = vld [vmem:[%s1 + $0x50] sm:$0xf]
        %v623 = vld [vmem:[%s1 + $0x54] sm:$0xf]
        %v624 = vld [vmem:[%s1 + $0x58] sm:$0xf]
        %v625 = vld [vmem:[%s1 + $0x5c] sm:$0xf]
        %v628 = vunpack.c.l.s4 1983009808
        %v629 = vunpack.c.0.s8 %v628
        %v630 = vlaneseq
        %v631 = vshrl.u32 %v630, 7
        %v632 = vsub.s32 %v629, %v631
        %v633 = vrot.slane %v601, %v632
        %v634 = vcombine.high %v633, %v633
        %v660 = vunpack.c.l.b16 %v602
        %v661 = vunpack.c.l.b16 %v603
        %v662 = vunpack.c.l.b16 %v604
        %v663 = vunpack.c.l.b16 %v605
        %v664 = vunpack.c.l.b16 %v606
        %v665 = vunpack.c.l.b16 %v607
        %v666 = vunpack.c.l.b16 %v608
        %v667 = vunpack.c.l.b16 %v609
        %v668 = vunpack.c.l.b16 %v610
        %v669 = vunpack.c.l.b16 %v611
        %v670 = vunpack.c.l.b16 %v612
        %v671 = vunpack.c.l.b16 %v613
        %v672 = vunpack.c.l.b16 %v614
        %v673 = vunpack.c.l.b16 %v615
        %v674 = vunpack.c.l.b16 %v616
        %v675 = vunpack.c.l.b16 %v617
        %v676 = vunpack.c.l.b16 %v618
        %v677 = vunpack.c.l.b16 %v619
        %v678 = vunpack.c.l.b16 %v620
        %v679 = vunpack.c.l.b16 %v621
        %v680 = vunpack.c.l.b16 %v622
        %v681 = vunpack.c.l.b16 %v623
        %v682 = vunpack.c.l.b16 %v624
        %v683 = vunpack.c.l.b16 %v625
        %v684 = vpack.c.b16 %v661, %v660
        %v685 = vpack.c.b16 %v663, %v662
        %v686 = vpack.c.b16 %v665, %v664
        %v687 = vpack.c.b16 %v667, %v666
        %v688 = vpack.c.b16 %v669, %v668
        %v689 = vpack.c.b16 %v671, %v670
        %v690 = vpack.c.b16 %v673, %v672
        %v691 = vpack.c.b16 %v675, %v674
        %v692 = vpack.c.b16 %v677, %v676
        %v693 = vpack.c.b16 %v679, %v678
        %v694 = vpack.c.b16 %v681, %v680
        %v695 = vpack.c.b16 %v683, %v682
        %vm708 = vcmask 523264
        %v710 = vsel %vm708, %v634, 0
        %712 = vmatprep.subr.bf16.mxu0 0
        %713 = vmatpush1.bf16.msra.mxu0 %v684
        %714 = vmatprep.subr.bf16.mxu0 0
        %715 = vmatpush1.bf16.msra.mxu0 %v685
        %716 = vmatprep.subr.bf16.mxu0 0
        %717 = vmatpush1.bf16.msra.mxu0 %v686
        %718 = vmatprep.subr.bf16.mxu0 0
        %719 = vmatpush1.bf16.msra.mxu0 %v687
        %720 = vmatprep.subr.bf16.mxu0 0
        %721 = vmatpush1.bf16.msra.mxu0 %v688
        %722 = vmatprep.subr.bf16.mxu0 0
        %723 = vmatpush1.bf16.msra.mxu0 %v689
        %724 = vmatprep.subr.bf16.mxu0 0
        %725 = vmatpush1.bf16.msra.mxu0 %v690
        %726 = vmatprep.subr.bf16.mxu0 0
        %727 = vmatpush1.bf16.msra.mxu0 %v691
        %728 = vmatprep.subr.bf16.mxu0 0
        %729 = vmatpush1.bf16.msra.mxu0 %v692
        %730 = vmatprep.subr.bf16.mxu0 0
        %731 = vmatpush1.bf16.msra.mxu0 %v693
        %732 = vmatprep.subr.bf16.mxu0 0
        %733 = vmatpush1.bf16.msra.mxu0 %v694
        %734 = vmatprep.subr.bf16.mxu0 0
        %735 = vmatpush1.bf16.msra.mxu0 %v695
        %736 = vmatprep.subr.bf16.mxu0 0
        %737 = vmatpush1.bf16.msra.mxu0 0
        %738 = vmatprep.subr.bf16.mxu0 0
        %739 = vmatpush1.bf16.msra.mxu0 0
        %740 = vmatprep.subr.bf16.mxu0 0
        %741 = vmatpush1.bf16.msra.mxu0 0
        %742 = vmatprep.subr.bf16.mxu0 0
        %743 = vmatpush1.bf16.msra.mxu0 0
        %744 = vmatprep.mubr.bf16.mxu0 %v710
        %745 = vmatmul.mubr.bf16.gmra.mrb[0].mxu0 %v633
        %v746 = vpop.f32.mrb[0].mxu0
        %v747 = vadd.f32 0.0, %v746
        %v748 = vpop.f32.mrb[0].mxu0
        %v749 = vpop.f32.mrb[0].mxu0
        %v750 = vpop.f32.mrb[0].mxu0
        %751 = vdwg.mxu0
        %v752 = vld [vmem:[%s2] sm:$0x1f]
        %v754 = vrot.slane %v747, 7
        %vm756 = vcmask 1040384
        %v757 = vsel %vm756, 0.0, %v754
        %v758 = vadd.f32 %v752, %v757
        %v759 = vld [vmem:[%s3] sm:$0x1]
        %v760 = vld [vmem:[%s4] sm:$0x1]
        %vm761 = vcmask 258048
        %v762 = vsel %vm761, %v758, 0.0
        %763 = vadd.xlane.f32.xlu0 %v762
        %v764 = vpop.xlane.xlu0 %763
        %v765 = vrcp.pop 32.0
        %v766 = vmul.f32 %v764, %v765
        %v767 = vmul.f32 %v758, %v758
        %v768 = vsel %vm761, %v767, 0.0
        %769 = vadd.xlane.f32.xlu0 %v768
        %v770 = vpop.xlane.xlu0 %769
        %v771 = vmul.f32 %v770, %v765
        %v772 = vmul.f32 %v766, %v766
        %v773 = vsub.f32 %v771, %v772
        %v774 = vmax.f32 %v773, 0.0
        %v775 = vsub.f32 %v758, %v766
        %v776 = vadd.f32 %v774, 1e-06
        %v777 = vrsqrt.pop %v776
        %v778 = vmul.f32 %v775, %v777
        %v780 = vlaneseq
        %v781 = vshrl.u32 %v780, 7
        %v782 = vsub.s32 0, %v781
        %v783 = vrot.slane %v759, %v782
        %v785 = vmul.f32 %v778, %v783
        %v787 = vlaneseq
        %v788 = vshrl.u32 %v787, 7
        %v789 = vsub.s32 0, %v788
        %v790 = vrot.slane %v760, %v789
        %v792 = vadd.f32 %v785, %v790
        %v793 = vpack.c.bf16 %v792, %v792
        %v794 = vld [vmem:[%s5] sm:$0xf]
        %v795 = vld [vmem:[%s5 + $0x4] sm:$0xf]
        %v796 = vld [vmem:[%s5 + $0x8] sm:$0xf]
        %v797 = vld [vmem:[%s5 + $0xc] sm:$0xf]
        %v798 = vld [vmem:[%s6] sm:$0x1]
        %v800 = vlaneseq
        %v801 = vshrl.u32 %v800, 7
        %v802 = vsub.s32 0, %v801
        %v803 = vrot.slane %v798, %v802
        %v809 = vunpack.c.l.b16 %v794
        %v810 = vunpack.c.l.b16 %v795
        %v811 = vunpack.c.l.b16 %v796
        %v812 = vunpack.c.l.b16 %v797
        %v813 = vpack.c.b16 %v810, %v809
        %v814 = vpack.c.b16 %v812, %v811
        %vm817 = vcmask 261120
        %v819 = vsel %vm817, %v793, 0
        %821 = vmatprep.subr.bf16.mxu0 0
        %822 = vmatpush1.bf16.msra.mxu0 %v813
        %823 = vmatprep.subr.bf16.mxu0 0
        %824 = vmatpush1.bf16.msra.mxu0 %v814
        %825 = vmatprep.subr.bf16.mxu0 0
        %826 = vmatpush1.bf16.msra.mxu0 0
        %827 = vmatprep.subr.bf16.mxu0 0
        %828 = vmatpush1.bf16.msra.mxu0 0
        %829 = vmatprep.subr.bf16.mxu0 0
        %830 = vmatpush1.bf16.msra.mxu0 0
        %831 = vmatprep.subr.bf16.mxu0 0
        %832 = vmatpush1.bf16.msra.mxu0 0
        %833 = vmatprep.subr.bf16.mxu0 0
        %834 = vmatpush1.bf16.msra.mxu0 0
        %835 = vmatprep.subr.bf16.mxu0 0
        %836 = vmatpush1.bf16.msra.mxu0 0
        %837 = vmatprep.subr.bf16.mxu0 0
        %838 = vmatpush1.bf16.msra.mxu0 0
        %839 = vmatprep.subr.bf16.mxu0 0
        %840 = vmatpush1.bf16.msra.mxu0 0
        %841 = vmatprep.subr.bf16.mxu0 0
        %842 = vmatpush1.bf16.msra.mxu0 0
        %843 = vmatprep.subr.bf16.mxu0 0
        %844 = vmatpush1.bf16.msra.mxu0 0
        %845 = vmatprep.subr.bf16.mxu0 0
        %846 = vmatpush1.bf16.msra.mxu0 0
        %847 = vmatprep.subr.bf16.mxu0 0
        %848 = vmatpush1.bf16.msra.mxu0 0
        %849 = vmatprep.subr.bf16.mxu0 0
        %850 = vmatpush1.bf16.msra.mxu0 0
        %851 = vmatprep.subr.bf16.mxu0 0
        %852 = vmatpush1.bf16.msra.mxu0 0
        %853 = vmatprep.mubr.bf16.mxu0 0
        %854 = vmatmul.mubr.bf16.gmra.mrb[0].mxu0 %v819
        %v855 = vpop.f32.mrb[0].mxu0
        %v856 = vadd.f32 %v803, %v855
        %v857 = vpop.f32.mrb[0].mxu0
        %v858 = vpop.f32.mrb[0].mxu0
        %v859 = vpop.f32.mrb[0].mxu0
        %860 = vdwg.mxu0
        %v861 = vpack.c.bf16 %v856, %v856
        %863 = vrot.lane.b32.xlu0 %v861, 96
        %v864 = vpop.permute.xlu0 %863
        %vm865 = vcmask 64512
        %v867 = vsel %vm865, %v861, 0
        %v870 = vsel %vm865, %v864, 0
        %872 = vmatprep.subr.bf16.mxu0 0
        %873 = vmatpush1.bf16.xpose.msra.mxu0 %v870
        %874 = vmatprep.subr.bf16.mxu0 0
        %875 = vmatpush1.bf16.xpose.msra.mxu0 0
        %876 = vmatprep.subr.bf16.mxu0 0
        %877 = vmatpush1.bf16.xpose.msra.mxu0 0
        %878 = vmatprep.subr.bf16.mxu0 0
        %879 = vmatpush1.bf16.xpose.msra.mxu0 0
        %880 = vmatprep.subr.bf16.mxu0 0
        %881 = vmatpush1.bf16.xpose.msra.mxu0 0
        %882 = vmatprep.subr.bf16.mxu0 0
        %883 = vmatpush1.bf16.xpose.msra.mxu0 0
        %884 = vmatprep.subr.bf16.mxu0 0
        %885 = vmatpush1.bf16.xpose.msra.mxu0 0
        %886 = vmatprep.subr.bf16.mxu0 0
        %887 = vmatpush1.bf16.xpose.msra.mxu0 0
        %888 = vmatprep.subr.bf16.mxu0 0
        %889 = vmatpush1.bf16.xpose.msra.mxu0 0
        %890 = vmatprep.subr.bf16.mxu0 0
        %891 = vmatpush1.bf16.xpose.msra.mxu0 0
        %892 = vmatprep.subr.bf16.mxu0 0
        %893 = vmatpush1.bf16.xpose.msra.mxu0 0
        %894 = vmatprep.subr.bf16.mxu0 0
        %895 = vmatpush1.bf16.xpose.msra.mxu0 0
        %896 = vmatprep.subr.bf16.mxu0 0
        %897 = vmatpush1.bf16.xpose.msra.mxu0 0
        %898 = vmatprep.subr.bf16.mxu0 0
        %899 = vmatpush1.bf16.xpose.msra.mxu0 0
        %900 = vmatprep.subr.bf16.mxu0 0
        %901 = vmatpush1.bf16.xpose.msra.mxu0 0
        %902 = vmatprep.subr.bf16.mxu0 0
        %903 = vmatpush1.bf16.xpose.msra.mxu0 0
        %904 = vmatprep.mubr.bf16.mxu0 0
        %905 = vmatmul.mubr.bf16.gmra.mrb[0].mxu0 %v867
        %v906 = vpop.f32.mrb[0].mxu0
        %v907 = vadd.f32 0.0, %v906
        %v908 = vpop.f32.mrb[0].mxu0
        %v909 = vpop.f32.mrb[0].mxu0
        %v910 = vpop.f32.mrb[0].mxu0
        %911 = vdwg.mxu0
        %vm912 = vcmask 36864
        %v913 = vsel %vm912, %v907, -inf
        %914 = vmax.xlane.f32.xlu0 %v913
        %v915 = vpop.xlane.xlu0 %914
        %v916 = vsub.f32 %v907, %v915
        %v917 = vmul.f32 %v916, 1.442695
        %v918 = vpow.pop %v917
        %v919 = vsel %vm912, %v918, 0.0
        %920 = vadd.xlane.f32.xlu0 %v919
        %v921 = vpop.xlane.xlu0 %920
        %v922 = vrcp.pop %v921
        %v923 = vmul.f32 %v918, %v922
        %v924 = vpack.c.bf16 %v923, %v923
        %925 = vrot.lane.b32.xlu0 %v861, 64
        %v926 = vpop.permute.xlu0 %925
        %vm927 = vcmask 39936
        %v929 = vsel %vm927, %v924, 0
        %vm931 = vcmask 1041408
        %vm932 = vcmask 1042432
        %v933 = vsel %vm931, 4294967295, 65535
        %v934 = vsel %vm932, %v933, 0
        %v936 = vand.u32 %v926, %v934
        %938 = vmatprep.subr.bf16.mxu0 0
        %939 = vmatpush1.bf16.msra.mxu0 %v936
        %940 = vmatprep.subr.bf16.mxu0 0
        %941 = vmatpush1.bf16.msra.mxu0 0
        %942 = vmatprep.subr.bf16.mxu0 0
        %943 = vmatpush1.bf16.msra.mxu0 0
        %944 = vmatprep.subr.bf16.mxu0 0
        %945 = vmatpush1.bf16.msra.mxu0 0
        %946 = vmatprep.subr.bf16.mxu0 0
        %947 = vmatpush1.bf16.msra.mxu0 0
        %948 = vmatprep.subr.bf16.mxu0 0
        %949 = vmatpush1.bf16.msra.mxu0 0
        %950 = vmatprep.subr.bf16.mxu0 0
        %951 = vmatpush1.bf16.msra.mxu0 0
        %952 = vmatprep.subr.bf16.mxu0 0
        %953 = vmatpush1.bf16.msra.mxu0 0
        %954 = vmatprep.subr.bf16.mxu0 0
        %955 = vmatpush1.bf16.msra.mxu0 0
        %956 = vmatprep.subr.bf16.mxu0 0
        %957 = vmatpush1.bf16.msra.mxu0 0
        %958 = vmatprep.subr.bf16.mxu0 0
        %959 = vmatpush1.bf16.msra.mxu0 0
        %960 = vmatprep.subr.bf16.mxu0 0
        %961 = vmatpush1.bf16.msra.mxu0 0
        %962 = vmatprep.subr.bf16.mxu0 0
        %963 = vmatpush1.bf16.msra.mxu0 0
        %964 = vmatprep.subr.bf16.mxu0 0
        %965 = vmatpush1.bf16.msra.mxu0 0
        %966 = vmatprep.subr.bf16.mxu0 0
        %967 = vmatpush1.bf16.msra.mxu0 0
        %968 = vmatprep.subr.bf16.mxu0 0
        %969 = vmatpush1.bf16.msra.mxu0 0
        %970 = vmatprep.mubr.bf16.mxu0 0
        %971 = vmatmul.mubr.bf16.gmra.mrb[0].mxu0 %v929
        %v972 = vpop.f32.mrb[0].mxu0
        %v973 = vadd.f32 0.0, %v972
        %v974 = vpop.f32.mrb[0].mxu0
        %v975 = vpop.f32.mrb[0].mxu0
        %v976 = vpop.f32.mrb[0].mxu0
        %977 = vdwg.mxu0
        %978 = vrot.lane.b32.xlu0 %v861, 120
        %v979 = vpop.permute.xlu0 %978
        %980 = vrot.lane.b32.xlu0 %v861, 88
        %v981 = vpop.permute.xlu0 %980
        %v983 = vsel %vm865, %v979, 0
        %v986 = vsel %vm865, %v981, 0
        %988 = vmatprep.subr.bf16.mxu0 0
        %989 = vmatpush1.bf16.xpose.msra.mxu0 %v986
        %990 = vmatprep.subr.bf16.mxu0 0
        %991 = vmatpush1.bf16.xpose.msra.mxu0 0
        %992 = vmatprep.subr.bf16.mxu0 0
        %993 = vmatpush1.bf16.xpose.msra.mxu0 0
        %994 = vmatprep.subr.bf16.mxu0 0
        %995 = vmatpush1.bf16.xpose.msra.mxu0 0
        %996 = vmatprep.subr.bf16.mxu0 0
        %997 = vmatpush1.bf16.xpose.msra.mxu0 0
        %998 = vmatprep.subr.bf16.mxu0 0
        %999 = vmatpush1.bf16.xpose.msra.mxu0 0
        %1000 = vmatprep.subr.bf16.mxu0 0
        %1001 = vmatpush1.bf16.xpose.msra.mxu0 0
        %1002 = vmatprep.subr.bf16.mxu0 0
        %1003 = vmatpush1.bf16.xpose.msra.mxu0 0
        %1004 = vmatprep.subr.bf16.mxu0 0
        %1005 = vmatpush1.bf16.xpose.msra.mxu0 0
        %1006 = vmatprep.subr.bf16.mxu0 0
        %1007 = vmatpush1.bf16.xpose.msra.mxu0 0
        %1008 = vmatprep.subr.bf16.mxu0 0
        %1009 = vmatpush1.bf16.xpose.msra.mxu0 0
        %1010 = vmatprep.subr.bf16.mxu0 0
        %1011 = vmatpush1.bf16.xpose.msra.mxu0 0
        %1012 = vmatprep.subr.bf16.mxu0 0
        %1013 = vmatpush1.bf16.xpose.msra.mxu0 0
        %1014 = vmatprep.subr.bf16.mxu0 0
        %1015 = vmatpush1.bf16.xpose.msra.mxu0 0
        %1016 = vmatprep.subr.bf16.mxu0 0
        %1017 = vmatpush1.bf16.xpose.msra.mxu0 0
        %1018 = vmatprep.subr.bf16.mxu0 0
        %1019 = vmatpush1.bf16.xpose.msra.mxu0 0
        %1020 = vmatprep.mubr.bf16.mxu0 0
        %1021 = vmatmul.mubr.bf16.gmra.mrb[0].mxu0 %v983
        %v1022 = vpop.f32.mrb[0].mxu0
        %v1023 = vadd.f32 0.0, %v1022
        %v1024 = vpop.f32.mrb[0].mxu0
        %v1025 = vpop.f32.mrb[0].mxu0
        %v1026 = vpop.f32.mrb[0].mxu0
        %1027 = vdwg.mxu0
        %v1028 = vsel %vm912, %v1023, -inf
        %1029 = vmax.xlane.f32.xlu0 %v1028
        %v1030 = vpop.xlane.xlu0 %1029
        %v1031 = vsub.f32 %v1023, %v1030
        %v1032 = vmul.f32 %v1031, 1.442695
        %v1033 = vpow.pop %v1032
        %v1034 = vsel %vm912, %v1033, 0.0
        %1035 = vadd.xlane.f32.xlu0 %v1034
        %v1036 = vpop.xlane.xlu0 %1035
        %v1037 = vrcp.pop %v1036
        %v1038 = vmul.f32 %v1033, %v1037
        %v1039 = vpack.c.bf16 %v1038, %v1038
        %1040 = vrot.lane.b32.xlu0 %v861, 56
        %v1041 = vpop.permute.xlu0 %1040
        %v1043 = vsel %vm927, %v1039, 0
        %v1046 = vand.u32 %v1041, %v934
        %1048 = vmatprep.subr.bf16.mxu0 0
        %1049 = vmatpush1.bf16.msra.mxu0 %v1046
        %1050 = vmatprep.subr.bf16.mxu0 0
        %1051 = vmatpush1.bf16.msra.mxu0 0
        %1052 = vmatprep.subr.bf16.mxu0 0
        %1053 = vmatpush1.bf16.msra.mxu0 0
        %1054 = vmatprep.subr.bf16.mxu0 0
        %1055 = vmatpush1.bf16.msra.mxu0 0
        %1056 = vmatprep.subr.bf16.mxu0 0
        %1057 = vmatpush1.bf16.msra.mxu0 0
        %1058 = vmatprep.subr.bf16.mxu0 0
        %1059 = vmatpush1.bf16.msra.mxu0 0
        %1060 = vmatprep.subr.bf16.mxu0 0
        %1061 = vmatpush1.bf16.msra.mxu0 0
        %1062 = vmatprep.subr.bf16.mxu0 0
        %1063 = vmatpush1.bf16.msra.mxu0 0
        %1064 = vmatprep.subr.bf16.mxu0 0
        %1065 = vmatpush1.bf16.msra.mxu0 0
        %1066 = vmatprep.subr.bf16.mxu0 0
        %1067 = vmatpush1.bf16.msra.mxu0 0
        %1068 = vmatprep.subr.bf16.mxu0 0
        %1069 = vmatpush1.bf16.msra.mxu0 0
        %1070 = vmatprep.subr.bf16.mxu0 0
        %1071 = vmatpush1.bf16.msra.mxu0 0
        %1072 = vmatprep.subr.bf16.mxu0 0
        %1073 = vmatpush1.bf16.msra.mxu0 0
        %1074 = vmatprep.subr.bf16.mxu0 0
        %1075 = vmatpush1.bf16.msra.mxu0 0
        %1076 = vmatprep.subr.bf16.mxu0 0
        %1077 = vmatpush1.bf16.msra.mxu0 0
        %1078 = vmatprep.subr.bf16.mxu0 0
        %1079 = vmatpush1.bf16.msra.mxu0 0
        %1080 = vmatprep.mubr.bf16.mxu0 0
        %1081 = vmatmul.mubr.bf16.gmra.mrb[0].mxu0 %v1043
        %v1082 = vpop.f32.mrb[0].mxu0
        %v1083 = vadd.f32 0.0, %v1082
        %v1084 = vpop.f32.mrb[0].mxu0
        %v1085 = vpop.f32.mrb[0].mxu0
        %v1086 = vpop.f32.mrb[0].mxu0
        %1087 = vdwg.mxu0
        %1088 = vrot.lane.b32.xlu0 %v861, 112
        %v1089 = vpop.permute.xlu0 %1088
        %1090 = vrot.lane.b32.xlu0 %v861, 80
        %v1091 = vpop.permute.xlu0 %1090
        %v1093 = vsel %vm865, %v1089, 0
        %v1096 = vsel %vm865, %v1091, 0
        %1098 = vmatprep.subr.bf16.mxu0 0
        %1099 = vmatpush1.bf16.xpose.msra.mxu0 %v1096
        %1100 = vmatprep.subr.bf16.mxu0 0
        %1101 = vmatpush1.bf16.xpose.msra.mxu0 0
        %1102 = vmatprep.subr.bf16.mxu0 0
        %1103 = vmatpush1.bf16.xpose.msra.mxu0 0
        %1104 = vmatprep.subr.bf16.mxu0 0
        %1105 = vmatpush1.bf16.xpose.msra.mxu0 0
        %1106 = vmatprep.subr.bf16.mxu0 0
        %1107 = vmatpush1.bf16.xpose.msra.mxu0 0
        %1108 = vmatprep.subr.bf16.mxu0 0
        %1109 = vmatpush1.bf16.xpose.msra.mxu0 0
        %1110 = vmatprep.subr.bf16.mxu0 0
        %1111 = vmatpush1.bf16.xpose.msra.mxu0 0
        %1112 = vmatprep.subr.bf16.mxu0 0
        %1113 = vmatpush1.bf16.xpose.msra.mxu0 0
        %1114 = vmatprep.subr.bf16.mxu0 0
        %1115 = vmatpush1.bf16.xpose.msra.mxu0 0
        %1116 = vmatprep.subr.bf16.mxu0 0
        %1117 = vmatpush1.bf16.xpose.msra.mxu0 0
        %1118 = vmatprep.subr.bf16.mxu0 0
        %1119 = vmatpush1.bf16.xpose.msra.mxu0 0
        %1120 = vmatprep.subr.bf16.mxu0 0
        %1121 = vmatpush1.bf16.xpose.msra.mxu0 0
        %1122 = vmatprep.subr.bf16.mxu0 0
        %1123 = vmatpush1.bf16.xpose.msra.mxu0 0
        %1124 = vmatprep.subr.bf16.mxu0 0
        %1125 = vmatpush1.bf16.xpose.msra.mxu0 0
        %1126 = vmatprep.subr.bf16.mxu0 0
        %1127 = vmatpush1.bf16.xpose.msra.mxu0 0
        %1128 = vmatprep.subr.bf16.mxu0 0
        %1129 = vmatpush1.bf16.xpose.msra.mxu0 0
        %1130 = vmatprep.mubr.bf16.mxu0 0
        %1131 = vmatmul.mubr.bf16.gmra.mrb[0].mxu0 %v1093
        %v1132 = vpop.f32.mrb[0].mxu0
        %v1133 = vadd.f32 0.0, %v1132
        %v1134 = vpop.f32.mrb[0].mxu0
        %v1135 = vpop.f32.mrb[0].mxu0
        %v1136 = vpop.f32.mrb[0].mxu0
        %1137 = vdwg.mxu0
        %v1138 = vsel %vm912, %v1133, -inf
        %1139 = vmax.xlane.f32.xlu0 %v1138
        %v1140 = vpop.xlane.xlu0 %1139
        %v1141 = vsub.f32 %v1133, %v1140
        %v1142 = vmul.f32 %v1141, 1.442695
        %v1143 = vpow.pop %v1142
        %v1144 = vsel %vm912, %v1143, 0.0
        %1145 = vadd.xlane.f32.xlu0 %v1144
        %v1146 = vpop.xlane.xlu0 %1145
        %v1147 = vrcp.pop %v1146
        %v1148 = vmul.f32 %v1143, %v1147
        %v1149 = vpack.c.bf16 %v1148, %v1148
        %1150 = vrot.lane.b32.xlu0 %v861, 48
        %v1151 = vpop.permute.xlu0 %1150
        %v1153 = vsel %vm927, %v1149, 0
        %v1156 = vand.u32 %v1151, %v934
        %1158 = vmatprep.subr.bf16.mxu0 0
        %1159 = vmatpush1.bf16.msra.mxu0 %v1156
        %1160 = vmatprep.subr.bf16.mxu0 0
        %1161 = vmatpush1.bf16.msra.mxu0 0
        %1162 = vmatprep.subr.bf16.mxu0 0
        %1163 = vmatpush1.bf16.msra.mxu0 0
        %1164 = vmatprep.subr.bf16.mxu0 0
        %1165 = vmatpush1.bf16.msra.mxu0 0
        %1166 = vmatprep.subr.bf16.mxu0 0
        %1167 = vmatpush1.bf16.msra.mxu0 0
        %1168 = vmatprep.subr.bf16.mxu0 0
        %1169 = vmatpush1.bf16.msra.mxu0 0
        %1170 = vmatprep.subr.bf16.mxu0 0
        %1171 = vmatpush1.bf16.msra.mxu0 0
        %1172 = vmatprep.subr.bf16.mxu0 0
        %1173 = vmatpush1.bf16.msra.mxu0 0
        %1174 = vmatprep.subr.bf16.mxu0 0
        %1175 = vmatpush1.bf16.msra.mxu0 0
        %1176 = vmatprep.subr.bf16.mxu0 0
        %1177 = vmatpush1.bf16.msra.mxu0 0
        %1178 = vmatprep.subr.bf16.mxu0 0
        %1179 = vmatpush1.bf16.msra.mxu0 0
        %1180 = vmatprep.subr.bf16.mxu0 0
        %1181 = vmatpush1.bf16.msra.mxu0 0
        %1182 = vmatprep.subr.bf16.mxu0 0
        %1183 = vmatpush1.bf16.msra.mxu0 0
        %1184 = vmatprep.subr.bf16.mxu0 0
        %1185 = vmatpush1.bf16.msra.mxu0 0
        %1186 = vmatprep.subr.bf16.mxu0 0
        %1187 = vmatpush1.bf16.msra.mxu0 0
        %1188 = vmatprep.subr.bf16.mxu0 0
        %1189 = vmatpush1.bf16.msra.mxu0 0
        %1190 = vmatprep.mubr.bf16.mxu0 0
        %1191 = vmatmul.mubr.bf16.gmra.mrb[0].mxu0 %v1153
        %v1192 = vpop.f32.mrb[0].mxu0
        %v1193 = vadd.f32 0.0, %v1192
        %v1194 = vpop.f32.mrb[0].mxu0
        %v1195 = vpop.f32.mrb[0].mxu0
        %v1196 = vpop.f32.mrb[0].mxu0
        %1197 = vdwg.mxu0
        %1198 = vrot.lane.b32.xlu0 %v861, 104
        %v1199 = vpop.permute.xlu0 %1198
        %1200 = vrot.lane.b32.xlu0 %v861, 72
        %v1201 = vpop.permute.xlu0 %1200
        %v1203 = vsel %vm865, %v1199, 0
        %v1206 = vsel %vm865, %v1201, 0
        %1208 = vmatprep.subr.bf16.mxu0 0
        %1209 = vmatpush1.bf16.xpose.msra.mxu0 %v1206
        %1210 = vmatprep.subr.bf16.mxu0 0
        %1211 = vmatpush1.bf16.xpose.msra.mxu0 0
        %1212 = vmatprep.subr.bf16.mxu0 0
        %1213 = vmatpush1.bf16.xpose.msra.mxu0 0
        %1214 = vmatprep.subr.bf16.mxu0 0
        %1215 = vmatpush1.bf16.xpose.msra.mxu0 0
        %1216 = vmatprep.subr.bf16.mxu0 0
        %1217 = vmatpush1.bf16.xpose.msra.mxu0 0
        %1218 = vmatprep.subr.bf16.mxu0 0
        %1219 = vmatpush1.bf16.xpose.msra.mxu0 0
        %1220 = vmatprep.subr.bf16.mxu0 0
        %1221 = vmatpush1.bf16.xpose.msra.mxu0 0
        %1222 = vmatprep.subr.bf16.mxu0 0
        %1223 = vmatpush1.bf16.xpose.msra.mxu0 0
        %1224 = vmatprep.subr.bf16.mxu0 0
        %1225 = vmatpush1.bf16.xpose.msra.mxu0 0
        %1226 = vmatprep.subr.bf16.mxu0 0
        %1227 = vmatpush1.bf16.xpose.msra.mxu0 0
        %1228 = vmatprep.subr.bf16.mxu0 0
        %1229 = vmatpush1.bf16.xpose.msra.mxu0 0
        %1230 = vmatprep.subr.bf16.mxu0 0
        %1231 = vmatpush1.bf16.xpose.msra.mxu0 0
        %1232 = vmatprep.subr.bf16.mxu0 0
        %1233 = vmatpush1.bf16.xpose.msra.mxu0 0
        %1234 = vmatprep.subr.bf16.mxu0 0
        %1235 = vmatpush1.bf16.xpose.msra.mxu0 0
        %1236 = vmatprep.subr.bf16.mxu0 0
        %1237 = vmatpush1.bf16.xpose.msra.mxu0 0
        %1238 = vmatprep.subr.bf16.mxu0 0
        %1239 = vmatpush1.bf16.xpose.msra.mxu0 0
        %1240 = vmatprep.mubr.bf16.mxu0 0
        %1241 = vmatmul.mubr.bf16.gmra.mrb[0].mxu0 %v1203
        %v1242 = vpop.f32.mrb[0].mxu0
        %v1243 = vadd.f32 0.0, %v1242
        %v1244 = vpop.f32.mrb[0].mxu0
        %v1245 = vpop.f32.mrb[0].mxu0
        %v1246 = vpop.f32.mrb[0].mxu0
        %1247 = vdwg.mxu0
        %v1248 = vsel %vm912, %v1243, -inf
        %1249 = vmax.xlane.f32.xlu0 %v1248
        %v1250 = vpop.xlane.xlu0 %1249
        %v1251 = vsub.f32 %v1243, %v1250
        %v1252 = vmul.f32 %v1251, 1.442695
        %v1253 = vpow.pop %v1252
        %v1254 = vsel %vm912, %v1253, 0.0
        %1255 = vadd.xlane.f32.xlu0 %v1254
        %v1256 = vpop.xlane.xlu0 %1255
        %v1257 = vrcp.pop %v1256
        %v1258 = vmul.f32 %v1253, %v1257
        %v1259 = vpack.c.bf16 %v1258, %v1258
        %1260 = vrot.lane.b32.xlu0 %v861, 40
        %v1261 = vpop.permute.xlu0 %1260
        %v1263 = vsel %vm927, %v1259, 0
        %v1266 = vand.u32 %v1261, %v934
        %1268 = vmatprep.subr.bf16.mxu0 0
        %1269 = vmatpush1.bf16.msra.mxu0 %v1266
        %1270 = vmatprep.subr.bf16.mxu0 0
        %1271 = vmatpush1.bf16.msra.mxu0 0
        %1272 = vmatprep.subr.bf16.mxu0 0
        %1273 = vmatpush1.bf16.msra.mxu0 0
        %1274 = vmatprep.subr.bf16.mxu0 0
        %1275 = vmatpush1.bf16.msra.mxu0 0
        %1276 = vmatprep.subr.bf16.mxu0 0
        %1277 = vmatpush1.bf16.msra.mxu0 0
        %1278 = vmatprep.subr.bf16.mxu0 0
        %1279 = vmatpush1.bf16.msra.mxu0 0
        %1280 = vmatprep.subr.bf16.mxu0 0
        %1281 = vmatpush1.bf16.msra.mxu0 0
        %1282 = vmatprep.subr.bf16.mxu0 0
        %1283 = vmatpush1.bf16.msra.mxu0 0
        %1284 = vmatprep.subr.bf16.mxu0 0
        %1285 = vmatpush1.bf16.msra.mxu0 0
        %1286 = vmatprep.subr.bf16.mxu0 0
        %1287 = vmatpush1.bf16.msra.mxu0 0
        %1288 = vmatprep.subr.bf16.mxu0 0
        %1289 = vmatpush1.bf16.msra.mxu0 0
        %1290 = vmatprep.subr.bf16.mxu0 0
        %1291 = vmatpush1.bf16.msra.mxu0 0
        %1292 = vmatprep.subr.bf16.mxu0 0
        %1293 = vmatpush1.bf16.msra.mxu0 0
        %1294 = vmatprep.subr.bf16.mxu0 0
        %1295 = vmatpush1.bf16.msra.mxu0 0
        %1296 = vmatprep.subr.bf16.mxu0 0
        %1297 = vmatpush1.bf16.msra.mxu0 0
        %1298 = vmatprep.subr.bf16.mxu0 0
        %1299 = vmatpush1.bf16.msra.mxu0 0
        %1300 = vmatprep.mubr.bf16.mxu0 0
        %1301 = vmatmul.mubr.bf16.gmra.mrb[0].mxu0 %v1263
        %v1302 = vpop.f32.mrb[0].mxu0
        %v1303 = vadd.f32 0.0, %v1302
        %v1304 = vpop.f32.mrb[0].mxu0
        %v1305 = vpop.f32.mrb[0].mxu0
        %v1306 = vpop.f32.mrb[0].mxu0
        %1307 = vdwg.mxu0
        %1309 = vrot.lane.b32.xlu0 %v1083, 8
        %v1310 = vpop.permute.xlu0 %1309
        %1313 = vrot.lane.b32.xlu0 %v1193, 16
        %v1314 = vpop.permute.xlu0 %1313
        %1317 = vrot.lane.b32.xlu0 %v1303, 24
        %v1318 = vpop.permute.xlu0 %1317
        %v1320 = vsel %vm865, %v973, %v1310
        %vm1321 = vcmask 130048
        %v1322 = vsel %vm1321, %v1320, %v1314
        %vm1323 = vcmask 195584
        %v1324 = vsel %vm1323, %v1322, %v1318
        %v1325 = vpack.c.bf16 %v1324, %v1324
        %v1326 = vld [vmem:[%s7] sm:$0xf]
        %v1327 = vld [vmem:[%s7 + $0x4] sm:$0xf]
        %v1328 = vld [vmem:[%s7 + $0x8] sm:$0xf]
        %v1329 = vld [vmem:[%s7 + $0xc] sm:$0xf]
        %v1334 = vunpack.c.l.b16 %v1326
        %v1335 = vunpack.c.l.b16 %v1327
        %v1336 = vunpack.c.l.b16 %v1328
        %v1337 = vunpack.c.l.b16 %v1329
        %v1338 = vpack.c.b16 %v1335, %v1334
        %v1339 = vpack.c.b16 %v1337, %v1336
        %v1343 = vsel %vm817, %v1325, 0
        %1345 = vmatprep.subr.bf16.mxu0 0
        %1346 = vmatpush1.bf16.msra.mxu0 %v1338
        %1347 = vmatprep.subr.bf16.mxu0 0
        %1348 = vmatpush1.bf16.msra.mxu0 %v1339
        %1349 = vmatprep.subr.bf16.mxu0 0
        %1350 = vmatpush1.bf16.msra.mxu0 0
        %1351 = vmatprep.subr.bf16.mxu0 0
        %1352 = vmatpush1.bf16.msra.mxu0 0
        %1353 = vmatprep.subr.bf16.mxu0 0
        %1354 = vmatpush1.bf16.msra.mxu0 0
        %1355 = vmatprep.subr.bf16.mxu0 0
        %1356 = vmatpush1.bf16.msra.mxu0 0
        %1357 = vmatprep.subr.bf16.mxu0 0
        %1358 = vmatpush1.bf16.msra.mxu0 0
        %1359 = vmatprep.subr.bf16.mxu0 0
        %1360 = vmatpush1.bf16.msra.mxu0 0
        %1361 = vmatprep.subr.bf16.mxu0 0
        %1362 = vmatpush1.bf16.msra.mxu0 0
        %1363 = vmatprep.subr.bf16.mxu0 0
        %1364 = vmatpush1.bf16.msra.mxu0 0
        %1365 = vmatprep.subr.bf16.mxu0 0
        %1366 = vmatpush1.bf16.msra.mxu0 0
        %1367 = vmatprep.subr.bf16.mxu0 0
        %1368 = vmatpush1.bf16.msra.mxu0 0
        %1369 = vmatprep.subr.bf16.mxu0 0
        %1370 = vmatpush1.bf16.msra.mxu0 0
        %1371 = vmatprep.subr.bf16.mxu0 0
        %1372 = vmatpush1.bf16.msra.mxu0 0
        %1373 = vmatprep.subr.bf16.mxu0 0
        %1374 = vmatpush1.bf16.msra.mxu0 0
        %1375 = vmatprep.subr.bf16.mxu0 0
        %1376 = vmatpush1.bf16.msra.mxu0 0
        %1377 = vmatprep.mubr.bf16.mxu0 0
        %1378 = vmatmul.mubr.bf16.gmra.mrb[0].mxu0 %v1343
        %v1379 = vpop.f32.mrb[0].mxu0
        %v1380 = vadd.f32 0.0, %v1379
        %v1381 = vpop.f32.mrb[0].mxu0
        %v1382 = vpop.f32.mrb[0].mxu0
        %v1383 = vpop.f32.mrb[0].mxu0
        %1384 = vdwg.mxu0
        %v1385 = vadd.f32 %v758, %v1380
        %v1386 = vld [vmem:[%s8] sm:$0x1]
        %v1388 = vlaneseq
        %v1389 = vshrl.u32 %v1388, 7
        %v1390 = vsub.s32 0, %v1389
        %v1391 = vrot.slane %v1386, %v1390
        %v1393 = vadd.f32 %v1385, %v1391
        %v1394 = vld [vmem:[%s9] sm:$0x1]
        %v1395 = vld [vmem:[%s10] sm:$0x1]
        %v1396 = vsel %vm761, %v1393, 0.0
        %1397 = vadd.xlane.f32.xlu0 %v1396
        %v1398 = vpop.xlane.xlu0 %1397
        %v1399 = vmul.f32 %v1398, %v765
        %v1400 = vmul.f32 %v1393, %v1393
        %v1401 = vsel %vm761, %v1400, 0.0
        %1402 = vadd.xlane.f32.xlu0 %v1401
        %v1403 = vpop.xlane.xlu0 %1402
        %v1404 = vmul.f32 %v1403, %v765
        %v1405 = vmul.f32 %v1399, %v1399
        %v1406 = vsub.f32 %v1404, %v1405
        %v1407 = vmax.f32 %v1406, 0.0
        %v1408 = vsub.f32 %v1393, %v1399
        %v1409 = vadd.f32 %v1407, 1e-06
        %v1410 = vrsqrt.pop %v1409
        %v1411 = vmul.f32 %v1408, %v1410
        %v1413 = vlaneseq
        %v1414 = vshrl.u32 %v1413, 7
        %v1415 = vsub.s32 0, %v1414
        %v1416 = vrot.slane %v1394, %v1415
        %v1418 = vmul.f32 %v1411, %v1416
        %v1420 = vlaneseq
        %v1421 = vshrl.u32 %v1420, 7
        %v1422 = vsub.s32 0, %v1421
        %v1423 = vrot.slane %v1395, %v1422
        %v1425 = vadd.f32 %v1418, %v1423
        %v1426 = vpack.c.bf16 %v1425, %v1425
        %v1427 = vld [vmem:[%s11] sm:$0xf]
        %v1428 = vld [vmem:[%s11 + $0x4] sm:$0xf]
        %v1429 = vld [vmem:[%s11 + $0x8] sm:$0xf]
        %v1430 = vld [vmem:[%s11 + $0xc] sm:$0xf]
        %v1431 = vld [vmem:[%s12] sm:$0x1]
        %v1433 = vlaneseq
        %v1434 = vshrl.u32 %v1433, 7
        %v1435 = vsub.s32 0, %v1434
        %v1436 = vrot.slane %v1431, %v1435
        %v1442 = vunpack.c.l.b16 %v1427
        %v1443 = vunpack.c.l.b16 %v1428
        %v1444 = vunpack.c.l.b16 %v1429
        %v1445 = vunpack.c.l.b16 %v1430
        %v1446 = vpack.c.b16 %v1443, %v1442
        %v1447 = vpack.c.b16 %v1445, %v1444
        %v1451 = vsel %vm817, %v1426, 0
        %1453 = vmatprep.subr.bf16.mxu0 0
        %1454 = vmatpush1.bf16.msra.mxu0 %v1446
        %1455 = vmatprep.subr.bf16.mxu0 0
        %1456 = vmatpush1.bf16.msra.mxu0 %v1447
        %1457 = vmatprep.subr.bf16.mxu0 0
        %1458 = vmatpush1.bf16.msra.mxu0 0
        %1459 = vmatprep.subr.bf16.mxu0 0
        %1460 = vmatpush1.bf16.msra.mxu0 0
        %1461 = vmatprep.subr.bf16.mxu0 0
        %1462 = vmatpush1.bf16.msra.mxu0 0
        %1463 = vmatprep.subr.bf16.mxu0 0
        %1464 = vmatpush1.bf16.msra.mxu0 0
        %1465 = vmatprep.subr.bf16.mxu0 0
        %1466 = vmatpush1.bf16.msra.mxu0 0
        %1467 = vmatprep.subr.bf16.mxu0 0
        %1468 = vmatpush1.bf16.msra.mxu0 0
        %1469 = vmatprep.subr.bf16.mxu0 0
        %1470 = vmatpush1.bf16.msra.mxu0 0
        %1471 = vmatprep.subr.bf16.mxu0 0
        %1472 = vmatpush1.bf16.msra.mxu0 0
        %1473 = vmatprep.subr.bf16.mxu0 0
        %1474 = vmatpush1.bf16.msra.mxu0 0
        %1475 = vmatprep.subr.bf16.mxu0 0
        %1476 = vmatpush1.bf16.msra.mxu0 0
        %1477 = vmatprep.subr.bf16.mxu0 0
        %1478 = vmatpush1.bf16.msra.mxu0 0
        %1479 = vmatprep.subr.bf16.mxu0 0
        %1480 = vmatpush1.bf16.msra.mxu0 0
        %1481 = vmatprep.subr.bf16.mxu0 0
        %1482 = vmatpush1.bf16.msra.mxu0 0
        %1483 = vmatprep.subr.bf16.mxu0 0
        %1484 = vmatpush1.bf16.msra.mxu0 0
        %1485 = vmatprep.mubr.bf16.mxu0 0
        %1486 = vmatmul.mubr.bf16.gmra.mrb[0].mxu0 %v1451
        %v1487 = vpop.f32.mrb[0].mxu0
        %v1488 = vadd.f32 %v1436, %v1487
        %v1489 = vpop.f32.mrb[0].mxu0
        %v1490 = vpop.f32.mrb[0].mxu0
        %v1491 = vpop.f32.mrb[0].mxu0
        %1492 = vdwg.mxu0
        %v1493 = vmul.f32 %v1488, 0.5
        %v1494 = vmul.f32 %v1488, 0.044715
        %v1495 = vmul.f32 %v1494, %v1488
        %v1496 = vmul.f32 %v1495, %v1488
        %v1497 = vadd.f32 %v1488, %v1496
        %v1498 = vmul.f32 %v1497, 0.7978846
        %v1499 = vtanh.pop %v1498
        %v1500 = vadd.f32 %v1499, 1.0
        %v1501 = vmul.f32 %v1493, %v1500
        %v1502 = vpack.c.bf16 %v1501, %v1501
        %v1503 = vld [vmem:[%s13] sm:$0xf]
        %v1504 = vld [vmem:[%s13 + $0x4] sm:$0xf]
        %v1505 = vld [vmem:[%s13 + $0x8] sm:$0xf]
        %v1506 = vld [vmem:[%s13 + $0xc] sm:$0xf]
        %v1507 = vld [vmem:[%s13 + $0x10] sm:$0xf]
        %v1508 = vld [vmem:[%s13 + $0x14] sm:$0xf]
        %v1509 = vld [vmem:[%s13 + $0x18] sm:$0xf]
        %v1510 = vld [vmem:[%s13 + $0x1c] sm:$0xf]
        %v1519 = vunpack.c.l.b16 %v1503
        %v1520 = vunpack.c.l.b16 %v1504
        %v1521 = vunpack.c.l.b16 %v1505
        %v1522 = vunpack.c.l.b16 %v1506
        %v1523 = vunpack.c.l.b16 %v1507
        %v1524 = vunpack.c.l.b16 %v1508
        %v1525 = vunpack.c.l.b16 %v1509
        %v1526 = vunpack.c.l.b16 %v1510
        %v1527 = vpack.c.b16 %v1520, %v1519
        %v1528 = vpack.c.b16 %v1522, %v1521
        %v1529 = vpack.c.b16 %v1524, %v1523
        %v1530 = vpack.c.b16 %v1526, %v1525
        %v1536 = vsel %vm708, %v1502, 0
        %1538 = vmatprep.subr.bf16.mxu0 0
        %1539 = vmatpush1.bf16.msra.mxu0 %v1527
        %1540 = vmatprep.subr.bf16.mxu0 0
        %1541 = vmatpush1.bf16.msra.mxu0 %v1528
        %1542 = vmatprep.subr.bf16.mxu0 0
        %1543 = vmatpush1.bf16.msra.mxu0 %v1529
        %1544 = vmatprep.subr.bf16.mxu0 0
        %1545 = vmatpush1.bf16.msra.mxu0 %v1530
        %1546 = vmatprep.subr.bf16.mxu0 0
        %1547 = vmatpush1.bf16.msra.mxu0 0
        %1548 = vmatprep.subr.bf16.mxu0 0
        %1549 = vmatpush1.bf16.msra.mxu0 0
        %1550 = vmatprep.subr.bf16.mxu0 0
        %1551 = vmatpush1.bf16.msra.mxu0 0
        %1552 = vmatprep.subr.bf16.mxu0 0
        %1553 = vmatpush1.bf16.msra.mxu0 0
        %1554 = vmatprep.subr.bf16.mxu0 0
        %1555 = vmatpush1.bf16.msra.mxu0 0
        %1556 = vmatprep.subr.bf16.mxu0 0
        %1557 = vmatpush1.bf16.msra.mxu0 0
        %1558 = vmatprep.subr.bf16.mxu0 0
        %1559 = vmatpush1.bf16.msra.mxu0 0
        %1560 = vmatprep.subr.bf16.mxu0 0
        %1561 = vmatpush1.bf16.msra.mxu0 0
        %1562 = vmatprep.subr.bf16.mxu0 0
        %1563 = vmatpush1.bf16.msra.mxu0 0
        %1564 = vmatprep.subr.bf16.mxu0 0
        %1565 = vmatpush1.bf16.msra.mxu0 0
        %1566 = vmatprep.subr.bf16.mxu0 0
        %1567 = vmatpush1.bf16.msra.mxu0 0
        %1568 = vmatprep.subr.bf16.mxu0 0
        %1569 = vmatpush1.bf16.msra.mxu0 0
        %1570 = vmatprep.mubr.bf16.mxu0 0
        %1571 = vmatmul.mubr.bf16.gmra.mrb[0].mxu0 %v1536
        %v1572 = vpop.f32.mrb[0].mxu0
        %v1573 = vadd.f32 0.0, %v1572
        %v1574 = vpop.f32.mrb[0].mxu0
        %v1575 = vpop.f32.mrb[0].mxu0
        %v1576 = vpop.f32.mrb[0].mxu0
        %1577 = vdwg.mxu0
        %v1578 = vadd.f32 %v1393, %v1573
        %v1579 = vld [vmem:[%s14] sm:$0x1]
        %v1581 = vlaneseq
        %v1582 = vshrl.u32 %v1581, 7
        %v1583 = vsub.s32 0, %v1582
        %v1584 = vrot.slane %v1579, %v1583
        %v1586 = vadd.f32 %v1578, %v1584
        %s1587 = scalar_lea.vmem %s3, 1
        %v1588 = vld [vmem:[%s1587] sm:$0x1]
        %s1589 = scalar_lea.vmem %s4, 1
        %v1590 = vld [vmem:[%s1589] sm:$0x1]
        %v1591 = vsel %vm761, %v1586, 0.0
        %1592 = vadd.xlane.f32.xlu0 %v1591
        %v1593 = vpop.xlane.xlu0 %1592
        %v1594 = vmul.f32 %v1593, %v765
        %v1595 = vmul.f32 %v1586, %v1586
        %v1596 = vsel %vm761, %v1595, 0.0
        %1597 = vadd.xlane.f32.xlu0 %v1596
        %v1598 = vpop.xlane.xlu0 %1597
        %v1599 = vmul.f32 %v1598, %v765
        %v1600 = vmul.f32 %v1594, %v1594
        %v1601 = vsub.f32 %v1599, %v1600
        %v1602 = vmax.f32 %v1601, 0.0
        %v1603 = vsub.f32 %v1586, %v1594
        %v1604 = vadd.f32 %v1602, 1e-06
        %v1605 = vrsqrt.pop %v1604
        %v1606 = vmul.f32 %v1603, %v1605
        %v1608 = vlaneseq
        %v1609 = vshrl.u32 %v1608, 7
        %v1610 = vsub.s32 0, %v1609
        %v1611 = vrot.slane %v1588, %v1610
        %v1613 = vmul.f32 %v1606, %v1611
        %v1615 = vlaneseq
        %v1616 = vshrl.u32 %v1615, 7
        %v1617 = vsub.s32 0, %v1616
        %v1618 = vrot.slane %v1590, %v1617
        %v1620 = vadd.f32 %v1613, %v1618
        %v1621 = vpack.c.bf16 %v1620, %v1620
        %s1622 = scalar_lea.vmem %s5, 16
        %v1623 = vld [vmem:[%s1622] sm:$0xf]
        %v1624 = vld [vmem:[%s1622 + $0x4] sm:$0xf]
        %v1625 = vld [vmem:[%s1622 + $0x8] sm:$0xf]
        %v1626 = vld [vmem:[%s1622 + $0xc] sm:$0xf]
        %s1627 = scalar_lea.vmem %s6, 1
        %v1628 = vld [vmem:[%s1627] sm:$0x1]
        %v1630 = vlaneseq
        %v1631 = vshrl.u32 %v1630, 7
        %v1632 = vsub.s32 0, %v1631
        %v1633 = vrot.slane %v1628, %v1632
        %v1639 = vunpack.c.l.b16 %v1623
        %v1640 = vunpack.c.l.b16 %v1624
        %v1641 = vunpack.c.l.b16 %v1625
        %v1642 = vunpack.c.l.b16 %v1626
        %v1643 = vpack.c.b16 %v1640, %v1639
        %v1644 = vpack.c.b16 %v1642, %v1641
        %v1648 = vsel %vm817, %v1621, 0
        %1650 = vmatprep.subr.bf16.mxu0 0
        %1651 = vmatpush1.bf16.msra.mxu0 %v1643
        %1652 = vmatprep.subr.bf16.mxu0 0
        %1653 = vmatpush1.bf16.msra.mxu0 %v1644
        %1654 = vmatprep.subr.bf16.mxu0 0
        %1655 = vmatpush1.bf16.msra.mxu0 0
        %1656 = vmatprep.subr.bf16.mxu0 0
        %1657 = vmatpush1.bf16.msra.mxu0 0
        %1658 = vmatprep.subr.bf16.mxu0 0
        %1659 = vmatpush1.bf16.msra.mxu0 0
        %1660 = vmatprep.subr.bf16.mxu0 0
        %1661 = vmatpush1.bf16.msra.mxu0 0
        %1662 = vmatprep.subr.bf16.mxu0 0
        %1663 = vmatpush1.bf16.msra.mxu0 0
        %1664 = vmatprep.subr.bf16.mxu0 0
        %1665 = vmatpush1.bf16.msra.mxu0 0
        %1666 = vmatprep.subr.bf16.mxu0 0
        %1667 = vmatpush1.bf16.msra.mxu0 0
        %1668 = vmatprep.subr.bf16.mxu0 0
        %1669 = vmatpush1.bf16.msra.mxu0 0
        %1670 = vmatprep.subr.bf16.mxu0 0
        %1671 = vmatpush1.bf16.msra.mxu0 0
        %1672 = vmatprep.subr.bf16.mxu0 0
        %1673 = vmatpush1.bf16.msra.mxu0 0
        %1674 = vmatprep.subr.bf16.mxu0 0
        %1675 = vmatpush1.bf16.msra.mxu0 0
        %1676 = vmatprep.subr.bf16.mxu0 0
        %1677 = vmatpush1.bf16.msra.mxu0 0
        %1678 = vmatprep.subr.bf16.mxu0 0
        %1679 = vmatpush1.bf16.msra.mxu0 0
        %1680 = vmatprep.subr.bf16.mxu0 0
        %1681 = vmatpush1.bf16.msra.mxu0 0
        %1682 = vmatprep.mubr.bf16.mxu0 0
        %1683 = vmatmul.mubr.bf16.gmra.mrb[0].mxu0 %v1648
        %v1684 = vpop.f32.mrb[0].mxu0
        %v1685 = vadd.f32 %v1633, %v1684
        %v1686 = vpop.f32.mrb[0].mxu0
        %v1687 = vpop.f32.mrb[0].mxu0
        %v1688 = vpop.f32.mrb[0].mxu0
        %1689 = vdwg.mxu0
        %v1690 = vpack.c.bf16 %v1685, %v1685
        %1692 = vrot.lane.b32.xlu0 %v1690, 96
        %v1693 = vpop.permute.xlu0 %1692
        %v1695 = vsel %vm865, %v1690, 0
        %v1698 = vsel %vm865, %v1693, 0
        %1700 = vmatprep.subr.bf16.mxu0 0
        %1701 = vmatpush1.bf16.xpose.msra.mxu0 %v1698
        %1702 = vmatprep.subr.bf16.mxu0 0
        %1703 = vmatpush1.bf16.xpose.msra.mxu0 0
        %1704 = vmatprep.subr.bf16.mxu0 0
        %1705 = vmatpush1.bf16.xpose.msra.mxu0 0
        %1706 = vmatprep.subr.bf16.mxu0 0
        %1707 = vmatpush1.bf16.xpose.msra.mxu0 0
        %1708 = vmatprep.subr.bf16.mxu0 0
        %1709 = vmatpush1.bf16.xpose.msra.mxu0 0
        %1710 = vmatprep.subr.bf16.mxu0 0
        %1711 = vmatpush1.bf16.xpose.msra.mxu0 0
        %1712 = vmatprep.subr.bf16.mxu0 0
        %1713 = vmatpush1.bf16.xpose.msra.mxu0 0
        %1714 = vmatprep.subr.bf16.mxu0 0
        %1715 = vmatpush1.bf16.xpose.msra.mxu0 0
        %1716 = vmatprep.subr.bf16.mxu0 0
        %1717 = vmatpush1.bf16.xpose.msra.mxu0 0
        %1718 = vmatprep.subr.bf16.mxu0 0
        %1719 = vmatpush1.bf16.xpose.msra.mxu0 0
        %1720 = vmatprep.subr.bf16.mxu0 0
        %1721 = vmatpush1.bf16.xpose.msra.mxu0 0
        %1722 = vmatprep.subr.bf16.mxu0 0
        %1723 = vmatpush1.bf16.xpose.msra.mxu0 0
        %1724 = vmatprep.subr.bf16.mxu0 0
        %1725 = vmatpush1.bf16.xpose.msra.mxu0 0
        %1726 = vmatprep.subr.bf16.mxu0 0
        %1727 = vmatpush1.bf16.xpose.msra.mxu0 0
        %1728 = vmatprep.subr.bf16.mxu0 0
        %1729 = vmatpush1.bf16.xpose.msra.mxu0 0
        %1730 = vmatprep.subr.bf16.mxu0 0
        %1731 = vmatpush1.bf16.xpose.msra.mxu0 0
        %1732 = vmatprep.mubr.bf16.mxu0 0
        %1733 = vmatmul.mubr.bf16.gmra.mrb[0].mxu0 %v1695
        %v1734 = vpop.f32.mrb[0].mxu0
        %v1735 = vadd.f32 0.0, %v1734
        %v1736 = vpop.f32.mrb[0].mxu0
        %v1737 = vpop.f32.mrb[0].mxu0
        %v1738 = vpop.f32.mrb[0].mxu0
        %1739 = vdwg.mxu0
        %v1740 = vsel %vm912, %v1735, -inf
        %1741 = vmax.xlane.f32.xlu0 %v1740
        %v1742 = vpop.xlane.xlu0 %1741
        %v1743 = vsub.f32 %v1735, %v1742
        %v1744 = vmul.f32 %v1743, 1.442695
        %v1745 = vpow.pop %v1744
        %v1746 = vsel %vm912, %v1745, 0.0
        %1747 = vadd.xlane.f32.xlu0 %v1746
        %v1748 = vpop.xlane.xlu0 %1747
        %v1749 = vrcp.pop %v1748
        %v1750 = vmul.f32 %v1745, %v1749
        %v1751 = vpack.c.bf16 %v1750, %v1750
        %1752 = vrot.lane.b32.xlu0 %v1690, 64
        %v1753 = vpop.permute.xlu0 %1752
        %v1755 = vsel %vm927, %v1751, 0
        %v1758 = vand.u32 %v1753, %v934
        %1760 = vmatprep.subr.bf16.mxu0 0
        %1761 = vmatpush1.bf16.msra.mxu0 %v1758
        %1762 = vmatprep.subr.bf16.mxu0 0
        %1763 = vmatpush1.bf16.msra.mxu0 0
        %1764 = vmatprep.subr.bf16.mxu0 0
        %1765 = vmatpush1.bf16.msra.mxu0 0
        %1766 = vmatprep.subr.bf16.mxu0 0
        %1767 = vmatpush1.bf16.msra.mxu0 0
        %1768 = vmatprep.subr.bf16.mxu0 0
        %1769 = vmatpush1.bf16.msra.mxu0 0
        %1770 = vmatprep.subr.bf16.mxu0 0
        %1771 = vmatpush1.bf16.msra.mxu0 0
        %1772 = vmatprep.subr.bf16.mxu0 0
        %1773 = vmatpush1.bf16.msra.mxu0 0
        %1774 = vmatprep.subr.bf16.mxu0 0
        %1775 = vmatpush1.bf16.msra.mxu0 0
        %1776 = vmatprep.subr.bf16.mxu0 0
        %1777 = vmatpush1.bf16.msra.mxu0 0
        %1778 = vmatprep.subr.bf16.mxu0 0
        %1779 = vmatpush1.bf16.msra.mxu0 0
        %1780 = vmatprep.subr.bf16.mxu0 0
        %1781 = vmatpush1.bf16.msra.mxu0 0
        %1782 = vmatprep.subr.bf16.mxu0 0
        %1783 = vmatpush1.bf16.msra.mxu0 0
        %1784 = vmatprep.subr.bf16.mxu0 0
        %1785 = vmatpush1.bf16.msra.mxu0 0
        %1786 = vmatprep.subr.bf16.mxu0 0
        %1787 = vmatpush1.bf16.msra.mxu0 0
        %1788 = vmatprep.subr.bf16.mxu0 0
        %1789 = vmatpush1.bf16.msra.mxu0 0
        %1790 = vmatprep.subr.bf16.mxu0 0
        %1791 = vmatpush1.bf16.msra.mxu0 0
        %1792 = vmatprep.mubr.bf16.mxu0 0
        %1793 = vmatmul.mubr.bf16.gmra.mrb[0].mxu0 %v1755
        %v1794 = vpop.f32.mrb[0].mxu0
        %v1795 = vadd.f32 0.0, %v1794
        %v1796 = vpop.f32.mrb[0].mxu0
        %v1797 = vpop.f32.mrb[0].mxu0
        %v1798 = vpop.f32.mrb[0].mxu0
        %1799 = vdwg.mxu0
        %1800 = vrot.lane.b32.xlu0 %v1690, 120
        %v1801 = vpop.permute.xlu0 %1800
        %1802 = vrot.lane.b32.xlu0 %v1690, 88
        %v1803 = vpop.permute.xlu0 %1802
        %v1805 = vsel %vm865, %v1801, 0
        %v1808 = vsel %vm865, %v1803, 0
        %1810 = vmatprep.subr.bf16.mxu0 0
        %1811 = vmatpush1.bf16.xpose.msra.mxu0 %v1808
        %1812 = vmatprep.subr.bf16.mxu0 0
        %1813 = vmatpush1.bf16.xpose.msra.mxu0 0
        %1814 = vmatprep.subr.bf16.mxu0 0
        %1815 = vmatpush1.bf16.xpose.msra.mxu0 0
        %1816 = vmatprep.subr.bf16.mxu0 0
        %1817 = vmatpush1.bf16.xpose.msra.mxu0 0
        %1818 = vmatprep.subr.bf16.mxu0 0
        %1819 = vmatpush1.bf16.xpose.msra.mxu0 0
        %1820 = vmatprep.subr.bf16.mxu0 0
        %1821 = vmatpush1.bf16.xpose.msra.mxu0 0
        %1822 = vmatprep.subr.bf16.mxu0 0
        %1823 = vmatpush1.bf16.xpose.msra.mxu0 0
        %1824 = vmatprep.subr.bf16.mxu0 0
        %1825 = vmatpush1.bf16.xpose.msra.mxu0 0
        %1826 = vmatprep.subr.bf16.mxu0 0
        %1827 = vmatpush1.bf16.xpose.msra.mxu0 0
        %1828 = vmatprep.subr.bf16.mxu0 0
        %1829 = vmatpush1.bf16.xpose.msra.mxu0 0
        %1830 = vmatprep.subr.bf16.mxu0 0
        %1831 = vmatpush1.bf16.xpose.msra.mxu0 0
        %1832 = vmatprep.subr.bf16.mxu0 0
        %1833 = vmatpush1.bf16.xpose.msra.mxu0 0
        %1834 = vmatprep.subr.bf16.mxu0 0
        %1835 = vmatpush1.bf16.xpose.msra.mxu0 0
        %1836 = vmatprep.subr.bf16.mxu0 0
        %1837 = vmatpush1.bf16.xpose.msra.mxu0 0
        %1838 = vmatprep.subr.bf16.mxu0 0
        %1839 = vmatpush1.bf16.xpose.msra.mxu0 0
        %1840 = vmatprep.subr.bf16.mxu0 0
        %1841 = vmatpush1.bf16.xpose.msra.mxu0 0
        %1842 = vmatprep.mubr.bf16.mxu0 0
        %1843 = vmatmul.mubr.bf16.gmra.mrb[0].mxu0 %v1805
        %v1844 = vpop.f32.mrb[0].mxu0
        %v1845 = vadd.f32 0.0, %v1844
        %v1846 = vpop.f32.mrb[0].mxu0
        %v1847 = vpop.f32.mrb[0].mxu0
        %v1848 = vpop.f32.mrb[0].mxu0
        %1849 = vdwg.mxu0
        %v1850 = vsel %vm912, %v1845, -inf
        %1851 = vmax.xlane.f32.xlu0 %v1850
        %v1852 = vpop.xlane.xlu0 %1851
        %v1853 = vsub.f32 %v1845, %v1852
        %v1854 = vmul.f32 %v1853, 1.442695
        %v1855 = vpow.pop %v1854
        %v1856 = vsel %vm912, %v1855, 0.0
        %1857 = vadd.xlane.f32.xlu0 %v1856
        %v1858 = vpop.xlane.xlu0 %1857
        %v1859 = vrcp.pop %v1858
        %v1860 = vmul.f32 %v1855, %v1859
        %v1861 = vpack.c.bf16 %v1860, %v1860
        %1862 = vrot.lane.b32.xlu0 %v1690, 56
        %v1863 = vpop.permute.xlu0 %1862
        %v1865 = vsel %vm927, %v1861, 0
        %v1868 = vand.u32 %v1863, %v934
        %1870 = vmatprep.subr.bf16.mxu0 0
        %1871 = vmatpush1.bf16.msra.mxu0 %v1868
        %1872 = vmatprep.subr.bf16.mxu0 0
        %1873 = vmatpush1.bf16.msra.mxu0 0
        %1874 = vmatprep.subr.bf16.mxu0 0
        %1875 = vmatpush1.bf16.msra.mxu0 0
        %1876 = vmatprep.subr.bf16.mxu0 0
        %1877 = vmatpush1.bf16.msra.mxu0 0
        %1878 = vmatprep.subr.bf16.mxu0 0
        %1879 = vmatpush1.bf16.msra.mxu0 0
        %1880 = vmatprep.subr.bf16.mxu0 0
        %1881 = vmatpush1.bf16.msra.mxu0 0
        %1882 = vmatprep.subr.bf16.mxu0 0
        %1883 = vmatpush1.bf16.msra.mxu0 0
        %1884 = vmatprep.subr.bf16.mxu0 0
        %1885 = vmatpush1.bf16.msra.mxu0 0
        %1886 = vmatprep.subr.bf16.mxu0 0
        %1887 = vmatpush1.bf16.msra.mxu0 0
        %1888 = vmatprep.subr.bf16.mxu0 0
        %1889 = vmatpush1.bf16.msra.mxu0 0
        %1890 = vmatprep.subr.bf16.mxu0 0
        %1891 = vmatpush1.bf16.msra.mxu0 0
        %1892 = vmatprep.subr.bf16.mxu0 0
        %1893 = vmatpush1.bf16.msra.mxu0 0
        %1894 = vmatprep.subr.bf16.mxu0 0
        %1895 = vmatpush1.bf16.msra.mxu0 0
        %1896 = vmatprep.subr.bf16.mxu0 0
        %1897 = vmatpush1.bf16.msra.mxu0 0
        %1898 = vmatprep.subr.bf16.mxu0 0
        %1899 = vmatpush1.bf16.msra.mxu0 0
        %1900 = vmatprep.subr.bf16.mxu0 0
        %1901 = vmatpush1.bf16.msra.mxu0 0
        %1902 = vmatprep.mubr.bf16.mxu0 0
        %1903 = vmatmul.mubr.bf16.gmra.mrb[0].mxu0 %v1865
        %v1904 = vpop.f32.mrb[0].mxu0
        %v1905 = vadd.f32 0.0, %v1904
        %v1906 = vpop.f32.mrb[0].mxu0
        %v1907 = vpop.f32.mrb[0].mxu0
        %v1908 = vpop.f32.mrb[0].mxu0
        %1909 = vdwg.mxu0
        %1910 = vrot.lane.b32.xlu0 %v1690, 112
        %v1911 = vpop.permute.xlu0 %1910
        %1912 = vrot.lane.b32.xlu0 %v1690, 80
        %v1913 = vpop.permute.xlu0 %1912
        %v1915 = vsel %vm865, %v1911, 0
        %v1918 = vsel %vm865, %v1913, 0
        %1920 = vmatprep.subr.bf16.mxu0 0
        %1921 = vmatpush1.bf16.xpose.msra.mxu0 %v1918
        %1922 = vmatprep.subr.bf16.mxu0 0
        %1923 = vmatpush1.bf16.xpose.msra.mxu0 0
        %1924 = vmatprep.subr.bf16.mxu0 0
        %1925 = vmatpush1.bf16.xpose.msra.mxu0 0
        %1926 = vmatprep.subr.bf16.mxu0 0
        %1927 = vmatpush1.bf16.xpose.msra.mxu0 0
        %1928 = vmatprep.subr.bf16.mxu0 0
        %1929 = vmatpush1.bf16.xpose.msra.mxu0 0
        %1930 = vmatprep.subr.bf16.mxu0 0
        %1931 = vmatpush1.bf16.xpose.msra.mxu0 0
        %1932 = vmatprep.subr.bf16.mxu0 0
        %1933 = vmatpush1.bf16.xpose.msra.mxu0 0
        %1934 = vmatprep.subr.bf16.mxu0 0
        %1935 = vmatpush1.bf16.xpose.msra.mxu0 0
        %1936 = vmatprep.subr.bf16.mxu0 0
        %1937 = vmatpush1.bf16.xpose.msra.mxu0 0
        %1938 = vmatprep.subr.bf16.mxu0 0
        %1939 = vmatpush1.bf16.xpose.msra.mxu0 0
        %1940 = vmatprep.subr.bf16.mxu0 0
        %1941 = vmatpush1.bf16.xpose.msra.mxu0 0
        %1942 = vmatprep.subr.bf16.mxu0 0
        %1943 = vmatpush1.bf16.xpose.msra.mxu0 0
        %1944 = vmatprep.subr.bf16.mxu0 0
        %1945 = vmatpush1.bf16.xpose.msra.mxu0 0
        %1946 = vmatprep.subr.bf16.mxu0 0
        %1947 = vmatpush1.bf16.xpose.msra.mxu0 0
        %1948 = vmatprep.subr.bf16.mxu0 0
        %1949 = vmatpush1.bf16.xpose.msra.mxu0 0
        %1950 = vmatprep.subr.bf16.mxu0 0
        %1951 = vmatpush1.bf16.xpose.msra.mxu0 0
        %1952 = vmatprep.mubr.bf16.mxu0 0
        %1953 = vmatmul.mubr.bf16.gmra.mrb[0].mxu0 %v1915
        %v1954 = vpop.f32.mrb[0].mxu0
        %v1955 = vadd.f32 0.0, %v1954
        %v1956 = vpop.f32.mrb[0].mxu0
        %v1957 = vpop.f32.mrb[0].mxu0
        %v1958 = vpop.f32.mrb[0].mxu0
        %1959 = vdwg.mxu0
        %v1960 = vsel %vm912, %v1955, -inf
        %1961 = vmax.xlane.f32.xlu0 %v1960
        %v1962 = vpop.xlane.xlu0 %1961
        %v1963 = vsub.f32 %v1955, %v1962
        %v1964 = vmul.f32 %v1963, 1.442695
        %v1965 = vpow.pop %v1964
        %v1966 = vsel %vm912, %v1965, 0.0
        %1967 = vadd.xlane.f32.xlu0 %v1966
        %v1968 = vpop.xlane.xlu0 %1967
        %v1969 = vrcp.pop %v1968
        %v1970 = vmul.f32 %v1965, %v1969
        %v1971 = vpack.c.bf16 %v1970, %v1970
        %1972 = vrot.lane.b32.xlu0 %v1690, 48
        %v1973 = vpop.permute.xlu0 %1972
        %v1975 = vsel %vm927, %v1971, 0
        %v1978 = vand.u32 %v1973, %v934
        %1980 = vmatprep.subr.bf16.mxu0 0
        %1981 = vmatpush1.bf16.msra.mxu0 %v1978
        %1982 = vmatprep.subr.bf16.mxu0 0
        %1983 = vmatpush1.bf16.msra.mxu0 0
        %1984 = vmatprep.subr.bf16.mxu0 0
        %1985 = vmatpush1.bf16.msra.mxu0 0
        %1986 = vmatprep.subr.bf16.mxu0 0
        %1987 = vmatpush1.bf16.msra.mxu0 0
        %1988 = vmatprep.subr.bf16.mxu0 0
        %1989 = vmatpush1.bf16.msra.mxu0 0
        %1990 = vmatprep.subr.bf16.mxu0 0
        %1991 = vmatpush1.bf16.msra.mxu0 0
        %1992 = vmatprep.subr.bf16.mxu0 0
        %1993 = vmatpush1.bf16.msra.mxu0 0
        %1994 = vmatprep.subr.bf16.mxu0 0
        %1995 = vmatpush1.bf16.msra.mxu0 0
        %1996 = vmatprep.subr.bf16.mxu0 0
        %1997 = vmatpush1.bf16.msra.mxu0 0
        %1998 = vmatprep.subr.bf16.mxu0 0
        %1999 = vmatpush1.bf16.msra.mxu0 0
        %2000 = vmatprep.subr.bf16.mxu0 0
        %2001 = vmatpush1.bf16.msra.mxu0 0
        %2002 = vmatprep.subr.bf16.mxu0 0
        %2003 = vmatpush1.bf16.msra.mxu0 0
        %2004 = vmatprep.subr.bf16.mxu0 0
        %2005 = vmatpush1.bf16.msra.mxu0 0
        %2006 = vmatprep.subr.bf16.mxu0 0
        %2007 = vmatpush1.bf16.msra.mxu0 0
        %2008 = vmatprep.subr.bf16.mxu0 0
        %2009 = vmatpush1.bf16.msra.mxu0 0
        %2010 = vmatprep.subr.bf16.mxu0 0
        %2011 = vmatpush1.bf16.msra.mxu0 0
        %2012 = vmatprep.mubr.bf16.mxu0 0
        %2013 = vmatmul.mubr.bf16.gmra.mrb[0].mxu0 %v1975
        %v2014 = vpop.f32.mrb[0].mxu0
        %v2015 = vadd.f32 0.0, %v2014
        %v2016 = vpop.f32.mrb[0].mxu0
        %v2017 = vpop.f32.mrb[0].mxu0
        %v2018 = vpop.f32.mrb[0].mxu0
        %2019 = vdwg.mxu0
        %2020 = vrot.lane.b32.xlu0 %v1690, 104
        %v2021 = vpop.permute.xlu0 %2020
        %2022 = vrot.lane.b32.xlu0 %v1690, 72
        %v2023 = vpop.permute.xlu0 %2022
        %v2025 = vsel %vm865, %v2021, 0
        %v2028 = vsel %vm865, %v2023, 0
        %2030 = vmatprep.subr.bf16.mxu0 0
        %2031 = vmatpush1.bf16.xpose.msra.mxu0 %v2028
        %2032 = vmatprep.subr.bf16.mxu0 0
        %2033 = vmatpush1.bf16.xpose.msra.mxu0 0
        %2034 = vmatprep.subr.bf16.mxu0 0
        %2035 = vmatpush1.bf16.xpose.msra.mxu0 0
        %2036 = vmatprep.subr.bf16.mxu0 0
        %2037 = vmatpush1.bf16.xpose.msra.mxu0 0
        %2038 = vmatprep.subr.bf16.mxu0 0
        %2039 = vmatpush1.bf16.xpose.msra.mxu0 0
        %2040 = vmatprep.subr.bf16.mxu0 0
        %2041 = vmatpush1.bf16.xpose.msra.mxu0 0
        %2042 = vmatprep.subr.bf16.mxu0 0
        %2043 = vmatpush1.bf16.xpose.msra.mxu0 0
        %2044 = vmatprep.subr.bf16.mxu0 0
        %2045 = vmatpush1.bf16.xpose.msra.mxu0 0
        %2046 = vmatprep.subr.bf16.mxu0 0
        %2047 = vmatpush1.bf16.xpose.msra.mxu0 0
        %2048 = vmatprep.subr.bf16.mxu0 0
        %2049 = vmatpush1.bf16.xpose.msra.mxu0 0
        %2050 = vmatprep.subr.bf16.mxu0 0
        %2051 = vmatpush1.bf16.xpose.msra.mxu0 0
        %2052 = vmatprep.subr.bf16.mxu0 0
        %2053 = vmatpush1.bf16.xpose.msra.mxu0 0
        %2054 = vmatprep.subr.bf16.mxu0 0
        %2055 = vmatpush1.bf16.xpose.msra.mxu0 0
        %2056 = vmatprep.subr.bf16.mxu0 0
        %2057 = vmatpush1.bf16.xpose.msra.mxu0 0
        %2058 = vmatprep.subr.bf16.mxu0 0
        %2059 = vmatpush1.bf16.xpose.msra.mxu0 0
        %2060 = vmatprep.subr.bf16.mxu0 0
        %2061 = vmatpush1.bf16.xpose.msra.mxu0 0
        %2062 = vmatprep.mubr.bf16.mxu0 0
        %2063 = vmatmul.mubr.bf16.gmra.mrb[0].mxu0 %v2025
        %v2064 = vpop.f32.mrb[0].mxu0
        %v2065 = vadd.f32 0.0, %v2064
        %v2066 = vpop.f32.mrb[0].mxu0
        %v2067 = vpop.f32.mrb[0].mxu0
        %v2068 = vpop.f32.mrb[0].mxu0
        %2069 = vdwg.mxu0
        %v2070 = vsel %vm912, %v2065, -inf
        %2071 = vmax.xlane.f32.xlu0 %v2070
        %v2072 = vpop.xlane.xlu0 %2071
        %v2073 = vsub.f32 %v2065, %v2072
        %v2074 = vmul.f32 %v2073, 1.442695
        %v2075 = vpow.pop %v2074
        %v2076 = vsel %vm912, %v2075, 0.0
        %2077 = vadd.xlane.f32.xlu0 %v2076
        %v2078 = vpop.xlane.xlu0 %2077
        %v2079 = vrcp.pop %v2078
        %v2080 = vmul.f32 %v2075, %v2079
        %v2081 = vpack.c.bf16 %v2080, %v2080
        %2082 = vrot.lane.b32.xlu0 %v1690, 40
        %v2083 = vpop.permute.xlu0 %2082
        %v2085 = vsel %vm927, %v2081, 0
        %v2088 = vand.u32 %v2083, %v934
        %2090 = vmatprep.subr.bf16.mxu0 0
        %2091 = vmatpush1.bf16.msra.mxu0 %v2088
        %2092 = vmatprep.subr.bf16.mxu0 0
        %2093 = vmatpush1.bf16.msra.mxu0 0
        %2094 = vmatprep.subr.bf16.mxu0 0
        %2095 = vmatpush1.bf16.msra.mxu0 0
        %2096 = vmatprep.subr.bf16.mxu0 0
        %2097 = vmatpush1.bf16.msra.mxu0 0
        %2098 = vmatprep.subr.bf16.mxu0 0
        %2099 = vmatpush1.bf16.msra.mxu0 0
        %2100 = vmatprep.subr.bf16.mxu0 0
        %2101 = vmatpush1.bf16.msra.mxu0 0
        %2102 = vmatprep.subr.bf16.mxu0 0
        %2103 = vmatpush1.bf16.msra.mxu0 0
        %2104 = vmatprep.subr.bf16.mxu0 0
        %2105 = vmatpush1.bf16.msra.mxu0 0
        %2106 = vmatprep.subr.bf16.mxu0 0
        %2107 = vmatpush1.bf16.msra.mxu0 0
        %2108 = vmatprep.subr.bf16.mxu0 0
        %2109 = vmatpush1.bf16.msra.mxu0 0
        %2110 = vmatprep.subr.bf16.mxu0 0
        %2111 = vmatpush1.bf16.msra.mxu0 0
        %2112 = vmatprep.subr.bf16.mxu0 0
        %2113 = vmatpush1.bf16.msra.mxu0 0
        %2114 = vmatprep.subr.bf16.mxu0 0
        %2115 = vmatpush1.bf16.msra.mxu0 0
        %2116 = vmatprep.subr.bf16.mxu0 0
        %2117 = vmatpush1.bf16.msra.mxu0 0
        %2118 = vmatprep.subr.bf16.mxu0 0
        %2119 = vmatpush1.bf16.msra.mxu0 0
        %2120 = vmatprep.subr.bf16.mxu0 0
        %2121 = vmatpush1.bf16.msra.mxu0 0
        %2122 = vmatprep.mubr.bf16.mxu0 0
        %2123 = vmatmul.mubr.bf16.gmra.mrb[0].mxu0 %v2085
        %v2124 = vpop.f32.mrb[0].mxu0
        %v2125 = vadd.f32 0.0, %v2124
        %v2126 = vpop.f32.mrb[0].mxu0
        %v2127 = vpop.f32.mrb[0].mxu0
        %v2128 = vpop.f32.mrb[0].mxu0
        %2129 = vdwg.mxu0
        %2131 = vrot.lane.b32.xlu0 %v1905, 8
        %v2132 = vpop.permute.xlu0 %2131
        %2135 = vrot.lane.b32.xlu0 %v2015, 16
        %v2136 = vpop.permute.xlu0 %2135
        %2139 = vrot.lane.b32.xlu0 %v2125, 24
        %v2140 = vpop.permute.xlu0 %2139
        %v2142 = vsel %vm865, %v1795, %v2132
        %v2143 = vsel %vm1321, %v2142, %v2136
        %v2144 = vsel %vm1323, %v2143, %v2140
        %v2145 = vpack.c.bf16 %v2144, %v2144
        %s2146 = scalar_lea.vmem %s7, 16
        %v2147 = vld [vmem:[%s2146] sm:$0xf]
        %v2148 = vld [vmem:[%s2146 + $0x4] sm:$0xf]
        %v2149 = vld [vmem:[%s2146 + $0x8] sm:$0xf]
        %v2150 = vld [vmem:[%s2146 + $0xc] sm:$0xf]
        %v2155 = vunpack.c.l.b16 %v2147
        %v2156 = vunpack.c.l.b16 %v2148
        %v2157 = vunpack.c.l.b16 %v2149
        %v2158 = vunpack.c.l.b16 %v2150
        %v2159 = vpack.c.b16 %v2156, %v2155
        %v2160 = vpack.c.b16 %v2158, %v2157
        %v2164 = vsel %vm817, %v2145, 0
        %2166 = vmatprep.subr.bf16.mxu0 0
        %2167 = vmatpush1.bf16.msra.mxu0 %v2159
        %2168 = vmatprep.subr.bf16.mxu0 0
        %2169 = vmatpush1.bf16.msra.mxu0 %v2160
        %2170 = vmatprep.subr.bf16.mxu0 0
        %2171 = vmatpush1.bf16.msra.mxu0 0
        %2172 = vmatprep.subr.bf16.mxu0 0
        %2173 = vmatpush1.bf16.msra.mxu0 0
        %2174 = vmatprep.subr.bf16.mxu0 0
        %2175 = vmatpush1.bf16.msra.mxu0 0
        %2176 = vmatprep.subr.bf16.mxu0 0
        %2177 = vmatpush1.bf16.msra.mxu0 0
        %2178 = vmatprep.subr.bf16.mxu0 0
        %2179 = vmatpush1.bf16.msra.mxu0 0
        %2180 = vmatprep.subr.bf16.mxu0 0
        %2181 = vmatpush1.bf16.msra.mxu0 0
        %2182 = vmatprep.subr.bf16.mxu0 0
        %2183 = vmatpush1.bf16.msra.mxu0 0
        %2184 = vmatprep.subr.bf16.mxu0 0
        %2185 = vmatpush1.bf16.msra.mxu0 0
        %2186 = vmatprep.subr.bf16.mxu0 0
        %2187 = vmatpush1.bf16.msra.mxu0 0
        %2188 = vmatprep.subr.bf16.mxu0 0
        %2189 = vmatpush1.bf16.msra.mxu0 0
        %2190 = vmatprep.subr.bf16.mxu0 0
        %2191 = vmatpush1.bf16.msra.mxu0 0
        %2192 = vmatprep.subr.bf16.mxu0 0
        %2193 = vmatpush1.bf16.msra.mxu0 0
        %2194 = vmatprep.subr.bf16.mxu0 0
        %2195 = vmatpush1.bf16.msra.mxu0 0
        %2196 = vmatprep.subr.bf16.mxu0 0
        %2197 = vmatpush1.bf16.msra.mxu0 0
        %2198 = vmatprep.mubr.bf16.mxu0 0
        %2199 = vmatmul.mubr.bf16.gmra.mrb[0].mxu0 %v2164
        %v2200 = vpop.f32.mrb[0].mxu0
        %v2201 = vadd.f32 0.0, %v2200
        %v2202 = vpop.f32.mrb[0].mxu0
        %v2203 = vpop.f32.mrb[0].mxu0
        %v2204 = vpop.f32.mrb[0].mxu0
        %2205 = vdwg.mxu0
        %v2206 = vadd.f32 %v1586, %v2201
        %s2207 = scalar_lea.vmem %s8, 1
        %v2208 = vld [vmem:[%s2207] sm:$0x1]
        %v2210 = vlaneseq
        %v2211 = vshrl.u32 %v2210, 7
        %v2212 = vsub.s32 0, %v2211
        %v2213 = vrot.slane %v2208, %v2212
        %v2215 = vadd.f32 %v2206, %v2213
        %s2216 = scalar_lea.vmem %s9, 1
        %v2217 = vld [vmem:[%s2216] sm:$0x1]
        %s2218 = scalar_lea.vmem %s10, 1
        %v2219 = vld [vmem:[%s2218] sm:$0x1]
        %v2220 = vsel %vm761, %v2215, 0.0
        %2221 = vadd.xlane.f32.xlu0 %v2220
        %v2222 = vpop.xlane.xlu0 %2221
        %v2223 = vmul.f32 %v2222, %v765
        %v2224 = vmul.f32 %v2215, %v2215
        %v2225 = vsel %vm761, %v2224, 0.0
        %2226 = vadd.xlane.f32.xlu0 %v2225
        %v2227 = vpop.xlane.xlu0 %2226
        %v2228 = vmul.f32 %v2227, %v765
        %v2229 = vmul.f32 %v2223, %v2223
        %v2230 = vsub.f32 %v2228, %v2229
        %v2231 = vmax.f32 %v2230, 0.0
        %v2232 = vsub.f32 %v2215, %v2223
        %v2233 = vadd.f32 %v2231, 1e-06
        %v2234 = vrsqrt.pop %v2233
        %v2235 = vmul.f32 %v2232, %v2234
        %v2237 = vlaneseq
        %v2238 = vshrl.u32 %v2237, 7
        %v2239 = vsub.s32 0, %v2238
        %v2240 = vrot.slane %v2217, %v2239
        %v2242 = vmul.f32 %v2235, %v2240
        %v2244 = vlaneseq
        %v2245 = vshrl.u32 %v2244, 7
        %v2246 = vsub.s32 0, %v2245
        %v2247 = vrot.slane %v2219, %v2246
        %v2249 = vadd.f32 %v2242, %v2247
        %v2250 = vpack.c.bf16 %v2249, %v2249
        %s2251 = scalar_lea.vmem %s11, 16
        %v2252 = vld [vmem:[%s2251] sm:$0xf]
        %v2253 = vld [vmem:[%s2251 + $0x4] sm:$0xf]
        %v2254 = vld [vmem:[%s2251 + $0x8] sm:$0xf]
        %v2255 = vld [vmem:[%s2251 + $0xc] sm:$0xf]
        %s2256 = scalar_lea.vmem %s12, 1
        %v2257 = vld [vmem:[%s2256] sm:$0x1]
        %v2259 = vlaneseq
        %v2260 = vshrl.u32 %v2259, 7
        %v2261 = vsub.s32 0, %v2260
        %v2262 = vrot.slane %v2257, %v2261
        %v2268 = vunpack.c.l.b16 %v2252
        %v2269 = vunpack.c.l.b16 %v2253
        %v2270 = vunpack.c.l.b16 %v2254
        %v2271 = vunpack.c.l.b16 %v2255
        %v2272 = vpack.c.b16 %v2269, %v2268
        %v2273 = vpack.c.b16 %v2271, %v2270
        %v2277 = vsel %vm817, %v2250, 0
        %2279 = vmatprep.subr.bf16.mxu0 0
        %2280 = vmatpush1.bf16.msra.mxu0 %v2272
        %2281 = vmatprep.subr.bf16.mxu0 0
        %2282 = vmatpush1.bf16.msra.mxu0 %v2273
        %2283 = vmatprep.subr.bf16.mxu0 0
        %2284 = vmatpush1.bf16.msra.mxu0 0
        %2285 = vmatprep.subr.bf16.mxu0 0
        %2286 = vmatpush1.bf16.msra.mxu0 0
        %2287 = vmatprep.subr.bf16.mxu0 0
        %2288 = vmatpush1.bf16.msra.mxu0 0
        %2289 = vmatprep.subr.bf16.mxu0 0
        %2290 = vmatpush1.bf16.msra.mxu0 0
        %2291 = vmatprep.subr.bf16.mxu0 0
        %2292 = vmatpush1.bf16.msra.mxu0 0
        %2293 = vmatprep.subr.bf16.mxu0 0
        %2294 = vmatpush1.bf16.msra.mxu0 0
        %2295 = vmatprep.subr.bf16.mxu0 0
        %2296 = vmatpush1.bf16.msra.mxu0 0
        %2297 = vmatprep.subr.bf16.mxu0 0
        %2298 = vmatpush1.bf16.msra.mxu0 0
        %2299 = vmatprep.subr.bf16.mxu0 0
        %2300 = vmatpush1.bf16.msra.mxu0 0
        %2301 = vmatprep.subr.bf16.mxu0 0
        %2302 = vmatpush1.bf16.msra.mxu0 0
        %2303 = vmatprep.subr.bf16.mxu0 0
        %2304 = vmatpush1.bf16.msra.mxu0 0
        %2305 = vmatprep.subr.bf16.mxu0 0
        %2306 = vmatpush1.bf16.msra.mxu0 0
        %2307 = vmatprep.subr.bf16.mxu0 0
        %2308 = vmatpush1.bf16.msra.mxu0 0
        %2309 = vmatprep.subr.bf16.mxu0 0
        %2310 = vmatpush1.bf16.msra.mxu0 0
        %2311 = vmatprep.mubr.bf16.mxu0 0
        %2312 = vmatmul.mubr.bf16.gmra.mrb[0].mxu0 %v2277
        %v2313 = vpop.f32.mrb[0].mxu0
        %v2314 = vadd.f32 %v2262, %v2313
        %v2315 = vpop.f32.mrb[0].mxu0
        %v2316 = vpop.f32.mrb[0].mxu0
        %v2317 = vpop.f32.mrb[0].mxu0
        %2318 = vdwg.mxu0
        %v2319 = vmul.f32 %v2314, 0.5
        %v2320 = vmul.f32 %v2314, 0.044715
        %v2321 = vmul.f32 %v2320, %v2314
        %v2322 = vmul.f32 %v2321, %v2314
        %v2323 = vadd.f32 %v2314, %v2322
        %v2324 = vmul.f32 %v2323, 0.7978846
        %v2325 = vtanh.pop %v2324
        %v2326 = vadd.f32 %v2325, 1.0
        %v2327 = vmul.f32 %v2319, %v2326
        %v2328 = vpack.c.bf16 %v2327, %v2327
        %s2329 = scalar_lea.vmem %s13, 32
        %v2330 = vld [vmem:[%s2329] sm:$0xf]
        %v2331 = vld [vmem:[%s2329 + $0x4] sm:$0xf]
        %v2332 = vld [vmem:[%s2329 + $0x8] sm:$0xf]
        %v2333 = vld [vmem:[%s2329 + $0xc] sm:$0xf]
        %v2334 = vld [vmem:[%s2329 + $0x10] sm:$0xf]
        %v2335 = vld [vmem:[%s2329 + $0x14] sm:$0xf]
        %v2336 = vld [vmem:[%s2329 + $0x18] sm:$0xf]
        %v2337 = vld [vmem:[%s2329 + $0x1c] sm:$0xf]
        %v2346 = vunpack.c.l.b16 %v2330
        %v2347 = vunpack.c.l.b16 %v2331
        %v2348 = vunpack.c.l.b16 %v2332
        %v2349 = vunpack.c.l.b16 %v2333
        %v2350 = vunpack.c.l.b16 %v2334
        %v2351 = vunpack.c.l.b16 %v2335
        %v2352 = vunpack.c.l.b16 %v2336
        %v2353 = vunpack.c.l.b16 %v2337
        %v2354 = vpack.c.b16 %v2347, %v2346
        %v2355 = vpack.c.b16 %v2349, %v2348
        %v2356 = vpack.c.b16 %v2351, %v2350
        %v2357 = vpack.c.b16 %v2353, %v2352
        %v2363 = vsel %vm708, %v2328, 0
        %2365 = vmatprep.subr.bf16.mxu0 0
        %2366 = vmatpush1.bf16.msra.mxu0 %v2354
        %2367 = vmatprep.subr.bf16.mxu0 0
        %2368 = vmatpush1.bf16.msra.mxu0 %v2355
        %2369 = vmatprep.subr.bf16.mxu0 0
        %2370 = vmatpush1.bf16.msra.mxu0 %v2356
        %2371 = vmatprep.subr.bf16.mxu0 0
        %2372 = vmatpush1.bf16.msra.mxu0 %v2357
        %2373 = vmatprep.subr.bf16.mxu0 0
        %2374 = vmatpush1.bf16.msra.mxu0 0
        %2375 = vmatprep.subr.bf16.mxu0 0
        %2376 = vmatpush1.bf16.msra.mxu0 0
        %2377 = vmatprep.subr.bf16.mxu0 0
        %2378 = vmatpush1.bf16.msra.mxu0 0
        %2379 = vmatprep.subr.bf16.mxu0 0
        %2380 = vmatpush1.bf16.msra.mxu0 0
        %2381 = vmatprep.subr.bf16.mxu0 0
        %2382 = vmatpush1.bf16.msra.mxu0 0
        %2383 = vmatprep.subr.bf16.mxu0 0
        %2384 = vmatpush1.bf16.msra.mxu0 0
        %2385 = vmatprep.subr.bf16.mxu0 0
        %2386 = vmatpush1.bf16.msra.mxu0 0
        %2387 = vmatprep.subr.bf16.mxu0 0
        %2388 = vmatpush1.bf16.msra.mxu0 0
        %2389 = vmatprep.subr.bf16.mxu0 0
        %2390 = vmatpush1.bf16.msra.mxu0 0
        %2391 = vmatprep.subr.bf16.mxu0 0
        %2392 = vmatpush1.bf16.msra.mxu0 0
        %2393 = vmatprep.subr.bf16.mxu0 0
        %2394 = vmatpush1.bf16.msra.mxu0 0
        %2395 = vmatprep.subr.bf16.mxu0 0
        %2396 = vmatpush1.bf16.msra.mxu0 0
        %2397 = vmatprep.mubr.bf16.mxu0 0
        %2398 = vmatmul.mubr.bf16.gmra.mrb[0].mxu0 %v2363
        %v2399 = vpop.f32.mrb[0].mxu0
        %v2400 = vadd.f32 0.0, %v2399
        %v2401 = vpop.f32.mrb[0].mxu0
        %v2402 = vpop.f32.mrb[0].mxu0
        %v2403 = vpop.f32.mrb[0].mxu0
        %2404 = vdwg.mxu0
        %v2405 = vadd.f32 %v2215, %v2400
        %s2406 = scalar_lea.vmem %s14, 1
        %v2407 = vld [vmem:[%s2406] sm:$0x1]
        %v2409 = vlaneseq
        %v2410 = vshrl.u32 %v2409, 7
        %v2411 = vsub.s32 0, %v2410
        %v2412 = vrot.slane %v2407, %v2411
        %v2414 = vadd.f32 %v2405, %v2412
        %v2415 = vld [vmem:[%s15] sm:$0x1]
        %v2416 = vld [vmem:[%s16] sm:$0x1]
        %vm2417 = vcmask 253952
        %v2418 = vsel %vm2417, %v2414, 0.0
        %2419 = vadd.xlane.f32.xlu0 %v2418
        %v2420 = vpop.xlane.xlu0 %2419
        %v2421 = vmul.f32 %v2420, %v765
        %v2422 = vmul.f32 %v2414, %v2414
        %v2423 = vsel %vm2417, %v2422, 0.0
        %2424 = vadd.xlane.f32.xlu0 %v2423
        %v2425 = vpop.xlane.xlu0 %2424
        %v2426 = vmul.f32 %v2425, %v765
        %v2427 = vmul.f32 %v2421, %v2421
        %v2428 = vsub.f32 %v2426, %v2427
        %v2429 = vmax.f32 %v2428, 0.0
        %v2430 = vsub.f32 %v2414, %v2421
        %v2431 = vadd.f32 %v2429, 1e-06
        %v2432 = vrsqrt.pop %v2431
        %v2433 = vmul.f32 %v2430, %v2432
        %v2434 = vmul.f32 %v2433, %v2415
        %v2435 = vadd.f32 %v2434, %v2416
        %v2436 = vpack.c.bf16 %v2435, %v2435
        %v2437 = vld [vmem:[%s17] sm:$0xf]
        %v2438 = vld [vmem:[%s17 + $0x4] sm:$0xf]
        %v2439 = vld [vmem:[%s17 + $0x8] sm:$0xf]
        %v2440 = vld [vmem:[%s17 + $0xc] sm:$0xf]
        %v2441 = vld [vmem:[%s18] sm:$0x1]
        %v2446 = vunpack.c.l.b16 %v2437
        %v2447 = vunpack.c.l.b16 %v2438
        %v2448 = vunpack.c.l.b16 %v2439
        %v2449 = vunpack.c.l.b16 %v2440
        %v2450 = vpack.c.b16 %v2447, %v2446
        %v2451 = vpack.c.b16 %v2449, %v2448
        %v2455 = vsel %vm817, %v2436, 0
        %2457 = vmatprep.subr.bf16.mxu0 0
        %2458 = vmatpush1.bf16.msra.mxu0 %v2450
        %2459 = vmatprep.subr.bf16.mxu0 0
        %2460 = vmatpush1.bf16.msra.mxu0 %v2451
        %2461 = vmatprep.subr.bf16.mxu0 0
        %2462 = vmatpush1.bf16.msra.mxu0 0
        %2463 = vmatprep.subr.bf16.mxu0 0
        %2464 = vmatpush1.bf16.msra.mxu0 0
        %2465 = vmatprep.subr.bf16.mxu0 0
        %2466 = vmatpush1.bf16.msra.mxu0 0
        %2467 = vmatprep.subr.bf16.mxu0 0
        %2468 = vmatpush1.bf16.msra.mxu0 0
        %2469 = vmatprep.subr.bf16.mxu0 0
        %2470 = vmatpush1.bf16.msra.mxu0 0
        %2471 = vmatprep.subr.bf16.mxu0 0
        %2472 = vmatpush1.bf16.msra.mxu0 0
        %2473 = vmatprep.subr.bf16.mxu0 0
        %2474 = vmatpush1.bf16.msra.mxu0 0
        %2475 = vmatprep.subr.bf16.mxu0 0
        %2476 = vmatpush1.bf16.msra.mxu0 0
        %2477 = vmatprep.subr.bf16.mxu0 0
        %2478 = vmatpush1.bf16.msra.mxu0 0
        %2479 = vmatprep.subr.bf16.mxu0 0
        %2480 = vmatpush1.bf16.msra.mxu0 0
        %2481 = vmatprep.subr.bf16.mxu0 0
        %2482 = vmatpush1.bf16.msra.mxu0 0
        %2483 = vmatprep.subr.bf16.mxu0 0
        %2484 = vmatpush1.bf16.msra.mxu0 0
        %2485 = vmatprep.subr.bf16.mxu0 0
        %2486 = vmatpush1.bf16.msra.mxu0 0
        %2487 = vmatprep.subr.bf16.mxu0 0
        %2488 = vmatpush1.bf16.msra.mxu0 0
        %2489 = vmatprep.mubr.bf16.mxu0 0
        %2490 = vmatmul.mubr.bf16.gmra.mrb[0].mxu0 %v2455
        %v2491 = vpop.f32.mrb[0].mxu0
        %v2492 = vadd.f32 %v2441, %v2491
        %v2493 = vpop.f32.mrb[0].mxu0
        %v2494 = vpop.f32.mrb[0].mxu0
        %v2495 = vpop.f32.mrb[0].mxu0
        %2496 = vdwg.mxu0
        %2497 = vst [vmem:[%s594] sm:$0x1] %v2492
        %s2498 = sand.u32 %s445, 1
        %s2499 = scalar_lea.sflag [#allocation3], %s2498
        %s2500 = sand.u32 %s445, 1
        %s2501 = scalar_lea.vmem [#allocation2], %s2500
        // Predicated region
        $region97: #{vit_forward.1} parent=95 // pred_check
          %p2502 = pneg %p455
        $region98: #{vit_forward.1} parent=95 // pred_check_branch
          %2504 = sbr.rel (%p2502) target = $region100
        $region99: #{vit_forward.1} parent=95 // pred_region
          %s2506 = ssub.s32 16, 16
          %2507 = vsyncadd %s2499, %s2506
          %s2508 = smul.addr %s33, 16
          %s2509 = scalar_lea.hbm %s19, %s2508
          %s2511 = sshll.u32 %s2501, 4
          %s2512 = int_to_ptr.vmem [resolvable:$true] %s2511
          %2514 = dma.vmem_to_hbm [thread:$0]  %s2512, 16, %s2509, %s2499
        $region100: #{vit_forward.1} parent=95 // pred_fallthru
          _
      $region96: #{vit_forward.1} parent=5 // pred_fallthru
        _
      %p2515 = scmp.le.s32.totalorder 2, %s28
      // Predicated region
      $region101: #{vit_forward.1} parent=5 // pred_check
        %p2516 = pneg %p2515
      $region102: #{vit_forward.1} parent=5 // pred_check_branch
        %2518 = sbr.rel (%p2516) target = $region104
      $region103: #{vit_forward.1} parent=5 // pred_region
        %s2519 = ssub.s32 %s28, 2
        // Predicated region
        $region105: #{vit_forward.1} parent=103 // pred_check
          %p2520 = pneg %p461
        $region106: #{vit_forward.1} parent=103 // pred_check_branch
          %2522 = sbr.rel (%p2520) target = $region108
        $region107: #{vit_forward.1} parent=103 // pred_region
          %s2523 = sand.u32 %s446, 1
          %s2524 = scalar_lea.sflag [#allocation3], %s2523
          %s2525 = sand.u32 %s446, 1
          %s2526 = scalar_lea.vmem [#allocation2], %s2525
          %2527 = dma.done %s2524, 16
        $region108: #{vit_forward.1} parent=103 // pred_fallthru
          _
      $region104: #{vit_forward.1} parent=5 // pred_fallthru
        _
    $region6: #{vit_forward.1} parent=1 // loop_footer
      %s32 = sadd.s32 1, %s28
    $region7: #{vit_forward.1} parent=1 // loop_footer_branch
      %27 = sbr.rel target = $region3
    $region8: #{vit_forward.1} parent=1 // loop_exit
      _
    %2528 = vsyncpa [#allocation3], 1
    %s2529 = scalar_lea.sflag [#allocation3], 1
    %2530 = vsyncpa %s2529, 1

</llo_original>
